<compile_context>
chip_gen: v5e
topology: v5e:2x2
jax: 0.10.0
libtpu: 0.0.40
codegen_flags: <defaults>
</compile_context>

<pallas_src>
import functools
import math

import jax
import jax.numpy as jnp
from jax import lax
from jax.experimental import pallas as pl
from jax.experimental.pallas import tpu as pltpu

NEG = -1e9  # additive mask value (stand-in for float('-inf') in the PyTorch masks)


# ------------------------------ fused kernel --------------------------------

def _fused_seq2seq_kernel(
    # per-batch activations / integer inputs
    enc_emb_ref,      # (1, S, D) f32  token+position embeddings
    kor_mask_ref,     # (1, 1, S) i32  encoder attention_mask (1 = token, 0 = pad)
    tgt_emb_ref,      # (1, T, D) f32  decoder input embeddings
    sgn_mask_ref,     # (1, 1, T) i32  decoder tgt_token attention_mask
    labels_ref,       # (1, T, 1) i32  target ids = input_ids[:, 1:]
    # encoder weights
    enc_emb_ln_ref,                                            # (2, D)
    enc_sa_wqkv_ref, enc_sa_bqkv_ref, enc_sa_wo_ref, enc_sa_bo_ref, enc_ln1_ref,
    enc_ff_w1_ref, enc_ff_b1_ref, enc_ff_w2_ref, enc_ff_b2_ref, enc_ln2_ref,
    # decoder weights
    dec_sa_wqkv_ref, dec_sa_bqkv_ref, dec_sa_wo_ref, dec_sa_bo_ref, dec_ln1_ref,
    dec_ca_wq_ref, dec_ca_bq_ref, dec_ca_wkv_ref, dec_ca_bkv_ref,
    dec_ca_wo_ref, dec_ca_bo_ref, dec_ln2_ref,
    dec_ff_w1_ref, dec_ff_b1_ref, dec_ff_w2_ref, dec_ff_b2_ref, dec_ln3_ref,
    # generator
    gen_w_ref, gen_b_ref,                                      # (D, V) (1, V)
    # output
    loss_ref,                                                  # (1, 1, 1) f32
    *, n_heads):
  f32 = jnp.float32
  bf16 = jnp.bfloat16
  S = enc_emb_ref.shape[1]
  T = tgt_emb_ref.shape[1]
  D = enc_emb_ref.shape[2]
  dh = D // n_heads
  scale = 1.0 / math.sqrt(dh)

  # ---- helpers (values, not refs) ----
  def split_heads(x2d, L):
    # (L, D) f32 -> (H, L, dh) bf16; single relayout feeding the batched einsum.
    return pltpu.einshape("lhd->hld", x2d.reshape(L, n_heads, dh)).astype(bf16)

  def attention(q3, k3, v3, add_mask, wo_ref, bo_ref, Lq):
    # q3/k3/v3: (H, L*, dh) bf16 operands, f32 MXU accumulation; q pre-scaled.
    s = jnp.einsum("hqd,hkd->hqk", q3, k3, preferred_element_type=f32)
    s = s + add_mask                    # broadcast at add time, never materialised
    s = s - jnp.max(s, axis=-1, keepdims=True)
    p = jnp.exp(s)
    p = p * pl.reciprocal(jnp.sum(p, axis=-1, keepdims=True), approx=True)
    o = jnp.einsum("hqk,hkd->hqd", p.astype(bf16), v3, preferred_element_type=f32)
    o2 = pltpu.einshape("hqd->qhd", o).reshape(Lq, D).astype(bf16)
    return jnp.dot(o2, wo_ref[...], preferred_element_type=f32) + bo_ref[...]

  def self_attention(x_bf, wqkv_ref, bqkv_ref, wo_ref, bo_ref, add_mask, L):
    # one fused (L, D) x (D, 3D) MXU push for Q, K and V
    qkv = jnp.dot(x_bf, wqkv_ref[...], preferred_element_type=f32) + bqkv_ref[...]
    q3 = split_heads(qkv[:, :D] * scale, L)
    k3 = split_heads(qkv[:, D:2 * D], L)
    v3 = split_heads(qkv[:, 2 * D:], L)
    return attention(q3, k3, v3, add_mask, wo_ref, bo_ref, L)

  def cross_attention(y_bf, mem_bf, wq_ref, bq_ref, wkv_ref, bkv_ref,
                      wo_ref, bo_ref, add_mask, Lq, Lk):
    q = jnp.dot(y_bf, wq_ref[...], preferred_element_type=f32) + bq_ref[...]
    kv = jnp.dot(mem_bf, wkv_ref[...], preferred_element_type=f32) + bkv_ref[...]
    q3 = split_heads(q * scale, Lq)
    k3 = split_heads(kv[:, :D], Lk)
    v3 = split_heads(kv[:, D:], Lk)
    return attention(q3, k3, v3, add_mask, wo_ref, bo_ref, Lq)

  def ffn(x_bf, w1_ref, b1_ref, w2_ref, b2_ref):
    h = jnp.maximum(
        jnp.dot(x_bf, w1_ref[...], preferred_element_type=f32) + b1_ref[...], 0.0)
    return jnp.dot(h.astype(bf16), w2_ref[...], preferred_element_type=f32) + b2_ref[...]

  def layer_norm(x, ln_ref, eps=1e-5):
    # TODO(synk): eps is config-driven in the reference (HF BERT often uses 1e-12).
    ln = ln_ref[...]
    mu = jnp.mean(x, axis=-1, keepdims=True)
    xc = x - mu
    var = jnp.mean(xc * xc, axis=-1, keepdims=True)
    return xc * lax.rsqrt(var + eps) * ln[0:1, :] + ln[1:2, :]

  # ---- additive masks, kept at broadcastable shapes ----
  kor_pad = jnp.where(kor_mask_ref[...] == 0, NEG, 0.0).astype(f32)   # (1,1,S)
  sgn_pad = jnp.where(sgn_mask_ref[...] == 0, NEG, 0.0).astype(f32)   # (1,1,T)
  row = lax.broadcasted_iota(jnp.int32, (T, T), 0)
  col = lax.broadcasted_iota(jnp.int32, (T, T), 1)
  causal = jnp.where(col > row, NEG, 0.0).astype(f32)                 # (T,T)
  self_mask = causal[None, :, :] + sgn_pad                            # (1,T,T)

  # ---- encoder (BERT-like, 1 layer) ----
  # TODO(synk): torch.no_grad() around the encoder only affects backward; a
  # forward-only fused kernel cannot represent gradient stopping.
  x = layer_norm(enc_emb_ref[0], enc_emb_ln_ref)                      # (S, D)
  x_bf = x.astype(bf16)
  a = self_attention(x_bf, enc_sa_wqkv_ref, enc_sa_bqkv_ref,
                     enc_sa_wo_ref, enc_sa_bo_ref, kor_pad, S)
  x = layer_norm(x + a, enc_ln1_ref)
  x_bf = x.astype(bf16)
  h = ffn(x_bf, enc_ff_w1_ref, enc_ff_b1_ref, enc_ff_w2_ref, enc_ff_b2_ref)
  mem = layer_norm(x + h, enc_ln2_ref)                                # (S, D)
  mem_bf = mem.astype(bf16)

  # ---- decoder layer (post-norm, ReLU FFN) ----
  # TODO(synk): reference decoder path adds no positional encoding to tgt_emb.
  y = tgt_emb_ref[0]                                                  # (T, D)
  y_bf = y.astype(bf16)
  sa = self_attention(y_bf, dec_sa_wqkv_ref, dec_sa_bqkv_ref,
                      dec_sa_wo_ref, dec_sa_bo_ref, self_mask, T)
  y = layer_norm(y + sa, dec_ln1_ref)
  y_bf = y.astype(bf16)
  ca = cross_attention(y_bf, mem_bf, dec_ca_wq_ref, dec_ca_bq_ref,
                       dec_ca_wkv_ref, dec_ca_bkv_ref,
                       dec_ca_wo_ref, dec_ca_bo_ref, kor_pad, T, S)
  y = layer_norm(y + ca, dec_ln2_ref)
  y_bf = y.astype(bf16)
  h = ffn(y_bf, dec_ff_w1_ref, dec_ff_b1_ref, dec_ff_w2_ref, dec_ff_b2_ref)
  y = layer_norm(y + h, dec_ln3_ref)                                  # (T, D)

  # ---- generator + cross-entropy partial sum (no one-hot, no HBM logits) ----
  # TODO(synk): at realistic vocab/d_model, tile the generator over V with an
  # online logsumexp (weight tiles streamed via BlockSpec) instead of holding
  # full (T, V) logits + (D, V) weight in VMEM (critical on v7x's 64 MiB).
  logits = (jnp.dot(y.astype(bf16), gen_w_ref[...], preferred_element_type=f32)
            + gen_b_ref[...])                                         # (T, V)
  V = logits.shape[1]
  m = jnp.max(logits, axis=-1, keepdims=True)
  lse = jnp.log(jnp.sum(jnp.exp(logits - m), axis=-1, keepdims=True)) + m
  col_ids = lax.broadcasted_iota(jnp.int32, (T, V), 1)
  tgt_logit = jnp.sum(jnp.where(col_ids == labels_ref[0], logits, 0.0),
                      axis=-1, keepdims=True)
  nll = lse - tgt_logit                                               # (T, 1)
  # TODO(synk): config-driven loss; assumes CrossEntropyLoss(reduction='mean')
  # with no ignore_index (padded target positions contribute to the mean).
  loss_ref[0] = jnp.sum(nll, axis=0, keepdims=True)                   # (1, 1)


# ------------------------------ model wrapper --------------------------------

def seq2seq_forward(params, korean_ids, korean_attn_mask, sign_input_ids,
                    sign_tgt_ids, sign_tgt_attn_mask, *, n_heads):
  B, S = korean_ids.shape
  T = sign_tgt_ids.shape[1]            # == max(input_len) - 1
  D = params["enc_tok_emb"].shape[1]
  FF = params["enc_ffn"]["w1"].shape[1]
  V = params["gen_w"].shape[1]
  H = n_heads

  # Embedding gathers stay in XLA; everything downstream is one fused kernel.
  enc_emb = (params["enc_tok_emb"][korean_ids]
             + params["enc_pos_emb"][None, :S, :]).astype(jnp.float32)   # (B,S,D)
  tgt_emb = params["de_emb"][sign_tgt_ids].astype(jnp.float32)           # (B,T,D)
  labels = sign_input_ids[:, 1:].astype(jnp.int32)[..., None]            # (B,T,1)
  kor_mask = korean_attn_mask.astype(jnp.int32)[:, None, :]              # (B,1,S)
  sgn_mask = sign_tgt_attn_mask.astype(jnp.int32)[:, None, :]            # (B,1,T)

  weights = [
      params["enc_emb_ln"],
      params["enc_sa"]["wqkv"], params["enc_sa"]["bqkv"],
      params["enc_sa"]["wo"], params["enc_sa"]["bo"], params["enc_ln1"],
      params["enc_ffn"]["w1"], params["enc_ffn"]["b1"],
      params["enc_ffn"]["w2"], params["enc_ffn"]["b2"], params["enc_ln2"],
      params["dec_sa"]["wqkv"], params["dec_sa"]["bqkv"],
      params["dec_sa"]["wo"], params["dec_sa"]["bo"], params["dec_ln1"],
      params["dec_ca"]["wq"], params["dec_ca"]["bq"],
      params["dec_ca"]["wkv"], params["dec_ca"]["bkv"],
      params["dec_ca"]["wo"], params["dec_ca"]["bo"], params["dec_ln2"],
      params["dec_ffn"]["w1"], params["dec_ffn"]["b1"],
      params["dec_ffn"]["w2"], params["dec_ffn"]["b2"], params["dec_ln3"],
      params["gen_w"], params["gen_b"],
  ]

  def _full(shape):
    zeros = (0,) * len(shape)
    return pl.BlockSpec(shape, lambda b, _z=zeros: _z)   # resident, same block ∀ b

  in_specs = ([
      pl.BlockSpec((1, S, D), lambda b: (b, 0, 0)),
      pl.BlockSpec((1, 1, S), lambda b: (b, 0, 0)),
      pl.BlockSpec((1, T, D), lambda b: (b, 0, 0)),
      pl.BlockSpec((1, 1, T), lambda b: (b, 0, 0)),
      pl.BlockSpec((1, T, 1), lambda b: (b, 0, 0)),
  ] + [_full(w.shape) for w in weights])

  # Advisory cost estimate so XLA schedules the gathers around the custom call.
  flops = 2 * B * (
      S * D * 3 * D + 2 * S * S * D + S * D * D + 2 * S * D * FF +   # encoder
      T * D * 3 * D + 2 * T * T * D + T * D * D +                    # dec self-attn
      T * D * D + S * D * 2 * D + 2 * T * S * D + T * D * D +        # dec cross-attn
      2 * T * D * FF +                                               # dec FFN
      T * D * V)                                                     # generator
  transcendentals = B * (H * (S * S + T * T + T * S) + T * V + S + 3 * T)
  inputs = [enc_emb, kor_mask, tgt_emb, sgn_mask, labels] + weights
  bytes_accessed = int(sum(a.size * a.dtype.itemsize for a in inputs)) + B * 4

  loss_sums = pl.pallas_call(
      functools.partial(_fused_seq2seq_kernel, n_heads=n_heads),
      out_shape=jax.ShapeDtypeStruct((B, 1, 1), jnp.float32),
      grid=(B,),
      in_specs=in_specs,
      out_specs=pl.BlockSpec((1, 1, 1), lambda b: (b, 0, 0)),
      compiler_params=pltpu.CompilerParams(
          dimension_semantics=("parallel",),        # shards batch across v7x's 2 TCs
          vmem_limit_bytes=32 * 1024 * 1024),
      cost_estimate=pl.CostEstimate(flops=int(flops),
                                    transcendentals=int(transcendentals),
                                    bytes_accessed=bytes_accessed),
  )(enc_emb, kor_mask, tgt_emb, sgn_mask, labels, *weights)

  # mean over all (batch, time) positions — invariant to flattening order.
  return jnp.sum(loss_sums) / (B * T)


# ------------------------------ parameter init -------------------------------

def init_params(key, *, d_model, d_ff, src_vocab, tgt_vocab, max_pos):
  keys = iter(jax.random.split(key, 24))

  def w(shape, dtype=jnp.float32, scale=0.02):
    return (scale * jax.random.normal(next(keys), shape,
                                      dtype=jnp.float32)).astype(dtype)

  def self_attn_block(d):    # fused [Wq | Wk | Wv] + output projection
    return {"wqkv": w((d, 3 * d), jnp.bfloat16),
            "bqkv": jnp.zeros((1, 3 * d), jnp.float32),
            "wo": w((d, d), jnp.bfloat16),
            "bo": jnp.zeros((1, d), jnp.float32)}

  def cross_attn_block(d):   # separate Q + fused [Wk | Wv] + output projection
    return {"wq": w((d, d), jnp.bfloat16), "bq": jnp.zeros((1, d), jnp.float32),
            "wkv": w((d, 2 * d), jnp.bfloat16),
            "bkv": jnp.zeros((1, 2 * d), jnp.float32),
            "wo": w((d, d), jnp.bfloat16), "bo": jnp.zeros((1, d), jnp.float32)}

  def ffn_block(d, dff):
    return {"w1": w((d, dff), jnp.bfloat16), "b1": jnp.zeros((1, dff), jnp.float32),
            "w2": w((dff, d), jnp.bfloat16), "b2": jnp.zeros((1, d), jnp.float32)}

  def ln(d):                 # row 0 = gamma, row 1 = beta
    return jnp.concatenate([jnp.ones((1, d), jnp.float32),
                            jnp.zeros((1, d), jnp.float32)], axis=0)

  D = d_model
  return {
      # encoder (BERT-like, 1 layer)
      "enc_tok_emb": w((src_vocab, D)),
      "enc_pos_emb": w((max_pos, D)),
      "enc_emb_ln": ln(D),
      "enc_sa": self_attn_block(D), "enc_ln1": ln(D),
      "enc_ffn": ffn_block(D, d_ff), "enc_ln2": ln(D),
      # decoder embedding (de_emb)
      "de_emb": w((tgt_vocab, D)),
      # decoder layer (nn.TransformerDecoderLayer style, post-norm, ReLU FFN)
      "dec_sa": self_attn_block(D), "dec_ln1": ln(D),
      "dec_ca": cross_attn_block(D), "dec_ln2": ln(D),
      "dec_ffn": ffn_block(D, d_ff), "dec_ln3": ln(D),
      # generator
      "gen_w": w((D, tgt_vocab), jnp.bfloat16),
      "gen_b": jnp.zeros((1, tgt_vocab), jnp.float32),
  }


# ---------------------------------- main -------------------------------------

if __name__ == "__main__":
  B, S, T = 2, 8, 8                 # batch, source seq, target seq (= max(input_len)-1)
  D, H, FF = 32, 4, 64              # hidden, heads, ffn
  SRC_VOCAB, TGT_VOCAB, MAX_POS = 64, 64, 16

  key = jax.random.PRNGKey(0)
  pkey, k1, k2 = jax.random.split(key, 3)
  params = init_params(pkey, d_model=D, d_ff=FF,
                       src_vocab=SRC_VOCAB, tgt_vocab=TGT_VOCAB, max_pos=MAX_POS)

  # tokenized_korean
  korean_ids = jax.random.randint(k1, (B, S), 4, SRC_VOCAB, dtype=jnp.int32)
  korean_attn_mask = jnp.array([[1] * S, [1] * 6 + [0] * 2], dtype=jnp.int32)

  # tokenized_sign: input_ids (B, T+1); tgt_token = shifted input; input_len = T+1
  sign_input_ids = jax.random.randint(k2, (B, T + 1), 4, TGT_VOCAB, dtype=jnp.int32)
  sign_input_ids = sign_input_ids.at[:, 0].set(2)        # BOS
  sign_tgt_ids = sign_input_ids[:, :-1]                  # (B, T) teacher-forcing input
  sign_tgt_attn_mask = jnp.array([[1] * T, [1] * 7 + [0] * 1], dtype=jnp.int32)

  fwd = jax.jit(functools.partial(seq2seq_forward, n_heads=H))
  loss = fwd(params, korean_ids, korean_attn_mask, sign_input_ids,
             sign_tgt_ids, sign_tgt_attn_mask)
  loss = jax.block_until_ready(loss)
  assert bool(jnp.isfinite(loss)), f"non-finite loss: {loss}"
  print("KERNEL_OK")
</pallas_src>

<mosaic_0001>
module attributes {stable_mosaic.version = 11 : i64} {
  func.func @_fused_seq2seq_kernel(%arg0: i32, %arg1: memref<1x8x32xf32, #tpu.memory_space<vmem>>, %arg2: memref<1x1x8xi32, #tpu.memory_space<vmem>>, %arg3: memref<1x8x32xf32, #tpu.memory_space<vmem>>, %arg4: memref<1x1x8xi32, #tpu.memory_space<vmem>>, %arg5: memref<1x8x1xi32, #tpu.memory_space<vmem>>, %arg6: memref<2x32xf32, #tpu.memory_space<vmem>>, %arg7: memref<32x96xbf16, #tpu.memory_space<vmem>>, %arg8: memref<1x96xf32, #tpu.memory_space<vmem>>, %arg9: memref<32x32xbf16, #tpu.memory_space<vmem>>, %arg10: memref<1x32xf32, #tpu.memory_space<vmem>>, %arg11: memref<2x32xf32, #tpu.memory_space<vmem>>, %arg12: memref<32x64xbf16, #tpu.memory_space<vmem>>, %arg13: memref<1x64xf32, #tpu.memory_space<vmem>>, %arg14: memref<64x32xbf16, #tpu.memory_space<vmem>>, %arg15: memref<1x32xf32, #tpu.memory_space<vmem>>, %arg16: memref<2x32xf32, #tpu.memory_space<vmem>>, %arg17: memref<32x96xbf16, #tpu.memory_space<vmem>>, %arg18: memref<1x96xf32, #tpu.memory_space<vmem>>, %arg19: memref<32x32xbf16, #tpu.memory_space<vmem>>, %arg20: memref<1x32xf32, #tpu.memory_space<vmem>>, %arg21: memref<2x32xf32, #tpu.memory_space<vmem>>, %arg22: memref<32x32xbf16, #tpu.memory_space<vmem>>, %arg23: memref<1x32xf32, #tpu.memory_space<vmem>>, %arg24: memref<32x64xbf16, #tpu.memory_space<vmem>>, %arg25: memref<1x64xf32, #tpu.memory_space<vmem>>, %arg26: memref<32x32xbf16, #tpu.memory_space<vmem>>, %arg27: memref<1x32xf32, #tpu.memory_space<vmem>>, %arg28: memref<2x32xf32, #tpu.memory_space<vmem>>, %arg29: memref<32x64xbf16, #tpu.memory_space<vmem>>, %arg30: memref<1x64xf32, #tpu.memory_space<vmem>>, %arg31: memref<64x32xbf16, #tpu.memory_space<vmem>>, %arg32: memref<1x32xf32, #tpu.memory_space<vmem>>, %arg33: memref<2x32xf32, #tpu.memory_space<vmem>>, %arg34: memref<32x64xbf16, #tpu.memory_space<vmem>>, %arg35: memref<1x64xf32, #tpu.memory_space<vmem>>, %arg36: memref<1x1x1xf32, #tpu.memory_space<vmem>>) attributes {dimension_semantics = [#tpu.dimension_semantics<parallel>], iteration_bounds = array<i64: 2>, scalar_prefetch = 0 : i64, scratch_operands = 0 : i64, tpu.core_type = #tpu.core_type<tc>, window_params = [{transform_indices = @transform_0, window_bounds = array<i64: 1, 8, 32>}, {transform_indices = @transform_1, window_bounds = array<i64: 1, 1, 8>}, {transform_indices = @transform_2, window_bounds = array<i64: 1, 8, 32>}, {transform_indices = @transform_3, window_bounds = array<i64: 1, 1, 8>}, {transform_indices = @transform_4, window_bounds = array<i64: 1, 8, 1>}, {pipeline_mode = #tpu.pipeline_mode<synchronous>, transform_indices = @transform_5, window_bounds = array<i64: 2, 32>}, {pipeline_mode = #tpu.pipeline_mode<synchronous>, transform_indices = @transform_6, window_bounds = array<i64: 32, 96>}, {pipeline_mode = #tpu.pipeline_mode<synchronous>, transform_indices = @transform_7, window_bounds = array<i64: 1, 96>}, {pipeline_mode = #tpu.pipeline_mode<synchronous>, transform_indices = @transform_8, window_bounds = array<i64: 32, 32>}, {pipeline_mode = #tpu.pipeline_mode<synchronous>, transform_indices = @transform_9, window_bounds = array<i64: 1, 32>}, {pipeline_mode = #tpu.pipeline_mode<synchronous>, transform_indices = @transform_10, window_bounds = array<i64: 2, 32>}, {pipeline_mode = #tpu.pipeline_mode<synchronous>, transform_indices = @transform_11, window_bounds = array<i64: 32, 64>}, {pipeline_mode = #tpu.pipeline_mode<synchronous>, transform_indices = @transform_12, window_bounds = array<i64: 1, 64>}, {pipeline_mode = #tpu.pipeline_mode<synchronous>, transform_indices = @transform_13, window_bounds = array<i64: 64, 32>}, {pipeline_mode = #tpu.pipeline_mode<synchronous>, transform_indices = @transform_14, window_bounds = array<i64: 1, 32>}, {pipeline_mode = #tpu.pipeline_mode<synchronous>, transform_indices = @transform_15, window_bounds = array<i64: 2, 32>}, {pipeline_mode = #tpu.pipeline_mode<synchronous>, transform_indices = @transform_16, window_bounds = array<i64: 32, 96>}, {pipeline_mode = #tpu.pipeline_mode<synchronous>, transform_indices = @transform_17, window_bounds = array<i64: 1, 96>}, {pipeline_mode = #tpu.pipeline_mode<synchronous>, transform_indices = @transform_18, window_bounds = array<i64: 32, 32>}, {pipeline_mode = #tpu.pipeline_mode<synchronous>, transform_indices = @transform_19, window_bounds = array<i64: 1, 32>}, {pipeline_mode = #tpu.pipeline_mode<synchronous>, transform_indices = @transform_20, window_bounds = array<i64: 2, 32>}, {pipeline_mode = #tpu.pipeline_mode<synchronous>, transform_indices = @transform_21, window_bounds = array<i64: 32, 32>}, {pipeline_mode = #tpu.pipeline_mode<synchronous>, transform_indices = @transform_22, window_bounds = array<i64: 1, 32>}, {pipeline_mode = #tpu.pipeline_mode<synchronous>, transform_indices = @transform_23, window_bounds = array<i64: 32, 64>}, {pipeline_mode = #tpu.pipeline_mode<synchronous>, transform_indices = @transform_24, window_bounds = array<i64: 1, 64>}, {pipeline_mode = #tpu.pipeline_mode<synchronous>, transform_indices = @transform_25, window_bounds = array<i64: 32, 32>}, {pipeline_mode = #tpu.pipeline_mode<synchronous>, transform_indices = @transform_26, window_bounds = array<i64: 1, 32>}, {pipeline_mode = #tpu.pipeline_mode<synchronous>, transform_indices = @transform_27, window_bounds = array<i64: 2, 32>}, {pipeline_mode = #tpu.pipeline_mode<synchronous>, transform_indices = @transform_28, window_bounds = array<i64: 32, 64>}, {pipeline_mode = #tpu.pipeline_mode<synchronous>, transform_indices = @transform_29, window_bounds = array<i64: 1, 64>}, {pipeline_mode = #tpu.pipeline_mode<synchronous>, transform_indices = @transform_30, window_bounds = array<i64: 64, 32>}, {pipeline_mode = #tpu.pipeline_mode<synchronous>, transform_indices = @transform_31, window_bounds = array<i64: 1, 32>}, {pipeline_mode = #tpu.pipeline_mode<synchronous>, transform_indices = @transform_32, window_bounds = array<i64: 2, 32>}, {pipeline_mode = #tpu.pipeline_mode<synchronous>, transform_indices = @transform_33, window_bounds = array<i64: 32, 64>}, {pipeline_mode = #tpu.pipeline_mode<synchronous>, transform_indices = @transform_34, window_bounds = array<i64: 1, 64>}, {transform_indices = @transform_35, window_bounds = array<i64: 1, 1, 1>}]} {
    %c0 = arith.constant 0 : index
    %c0_0 = arith.constant 0 : index
    %c0_1 = arith.constant 0 : index
    %0 = vector.load %arg2[%c0, %c0_0, %c0_1] : memref<1x1x8xi32, #tpu.memory_space<vmem>>, vector<1x1x8xi32>
    %c0_i32 = arith.constant 0 : i32
    %1 = vector.broadcast %c0_i32 : i32 to vector<1x1x8xi32>
    %2 = arith.cmpi eq, %0, %1 : vector<1x1x8xi32>
    %cst = arith.constant -1.000000e+09 : f32
    %cst_2 = arith.constant 0.000000e+00 : f32
    %3 = vector.broadcast %cst : f32 to vector<1x1x8xf32>
    %4 = vector.broadcast %cst_2 : f32 to vector<1x1x8xf32>
    %5 = arith.select %2, %3, %4 : vector<1x1x8xi1>, vector<1x1x8xf32>
    %c0_3 = arith.constant 0 : index
    %c0_4 = arith.constant 0 : index
    %c0_5 = arith.constant 0 : index
    %6 = vector.load %arg4[%c0_3, %c0_4, %c0_5] : memref<1x1x8xi32, #tpu.memory_space<vmem>>, vector<1x1x8xi32>
    %c0_i32_6 = arith.constant 0 : i32
    %7 = vector.broadcast %c0_i32_6 : i32 to vector<1x1x8xi32>
    %8 = arith.cmpi eq, %6, %7 : vector<1x1x8xi32>
    %cst_7 = arith.constant -1.000000e+09 : f32
    %cst_8 = arith.constant 0.000000e+00 : f32
    %9 = vector.broadcast %cst_7 : f32 to vector<1x1x8xf32>
    %10 = vector.broadcast %cst_8 : f32 to vector<1x1x8xf32>
    %11 = arith.select %8, %9, %10 : vector<1x1x8xi1>, vector<1x1x8xf32>
    %12 = tpu.iota {dimensions = array<i32: 0>} : vector<8x8xi32>
    %13 = tpu.iota {dimensions = array<i32: 1>} : vector<8x8xi32>
    %14 = arith.cmpi sgt, %13, %12 : vector<8x8xi32>
    %cst_9 = arith.constant -1.000000e+09 : f32
    %cst_10 = arith.constant 0.000000e+00 : f32
    %15 = vector.broadcast %cst_9 : f32 to vector<8x8xf32>
    %16 = vector.broadcast %cst_10 : f32 to vector<8x8xf32>
    %17 = arith.select %14, %15, %16 : vector<8x8xi1>, vector<8x8xf32>
    %18 = vector.shape_cast %17 : vector<8x8xf32> to vector<1x8x8xf32>
    %19 = vector.broadcast %11 : vector<1x1x8xf32> to vector<1x8x8xf32>
    %20 = arith.addf %18, %19 : vector<1x8x8xf32>
    %c0_11 = arith.constant 0 : index
    %c0_12 = arith.constant 0 : index
    %c0_13 = arith.constant 0 : index
    %21 = vector.load %arg1[%c0_11, %c0_12, %c0_13] : memref<1x8x32xf32, #tpu.memory_space<vmem>>, vector<1x8x32xf32>
    %22 = vector.shape_cast %21 : vector<1x8x32xf32> to vector<8x32xf32>
    %c0_14 = arith.constant 0 : index
    %c0_15 = arith.constant 0 : index
    %23 = vector.load %arg6[%c0_14, %c0_15] : memref<2x32xf32, #tpu.memory_space<vmem>>, vector<2x32xf32>
    %cst_16 = arith.constant dense<0.000000e+00> : vector<8xf32>
    %24 = vector.multi_reduction <add>, %22, %cst_16 [1] : vector<8x32xf32> to vector<8xf32>
    %25 = vector.shape_cast %24 : vector<8xf32> to vector<8x1xf32>
    %cst_17 = arith.constant 3.200000e+01 : f32
    %26 = vector.broadcast %cst_17 : f32 to vector<8x1xf32>
    %27 = arith.divf %25, %26 : vector<8x1xf32>
    %28 = vector.broadcast %27 : vector<8x1xf32> to vector<8x32xf32>
    %29 = arith.subf %22, %28 : vector<8x32xf32>
    %30 = arith.mulf %29, %29 : vector<8x32xf32>
    %cst_18 = arith.constant dense<0.000000e+00> : vector<8xf32>
    %31 = vector.multi_reduction <add>, %30, %cst_18 [1] : vector<8x32xf32> to vector<8xf32>
    %32 = vector.shape_cast %31 : vector<8xf32> to vector<8x1xf32>
    %cst_19 = arith.constant 3.200000e+01 : f32
    %33 = vector.broadcast %cst_19 : f32 to vector<8x1xf32>
    %34 = arith.divf %32, %33 : vector<8x1xf32>
    %cst_20 = arith.constant 9.99999974E-6 : f32
    %35 = vector.broadcast %cst_20 : f32 to vector<8x1xf32>
    %36 = arith.addf %34, %35 : vector<8x1xf32>
    %37 = math.rsqrt %36 : vector<8x1xf32>
    %38 = vector.broadcast %37 : vector<8x1xf32> to vector<8x32xf32>
    %39 = arith.mulf %29, %38 : vector<8x32xf32>
    %40 = vector.extract_strided_slice %23 {offsets = [0, 0], sizes = [1, 32], strides = [1, 1]} : vector<2x32xf32> to vector<1x32xf32>
    %41 = vector.broadcast %40 : vector<1x32xf32> to vector<8x32xf32>
    %42 = arith.mulf %39, %41 : vector<8x32xf32>
    %43 = vector.extract_strided_slice %23 {offsets = [1, 0], sizes = [1, 32], strides = [1, 1]} : vector<2x32xf32> to vector<1x32xf32>
    %44 = vector.broadcast %43 : vector<1x32xf32> to vector<8x32xf32>
    %45 = arith.addf %42, %44 : vector<8x32xf32>
    %46 = arith.truncf %45 : vector<8x32xf32> to vector<8x32xbf16>
    %c0_21 = arith.constant 0 : index
    %c0_22 = arith.constant 0 : index
    %47 = vector.load %arg7[%c0_21, %c0_22] : memref<32x96xbf16, #tpu.memory_space<vmem>>, vector<32x96xbf16>
    %cst_23 = arith.constant dense<0.000000e+00> : vector<8x96xf32>
    %48 = tpu.matmul %46, %47, %cst_23 {dimension_numbers = #tpu.dot_dimension_numbers<[1], [0], [0], [1], [0, 0, 1, 1], [], []>} : vector<8x32xbf16>, vector<32x96xbf16>, vector<8x96xf32> -> vector<8x96xf32>
    %c0_24 = arith.constant 0 : index
    %c0_25 = arith.constant 0 : index
    %49 = vector.load %arg8[%c0_24, %c0_25] : memref<1x96xf32, #tpu.memory_space<vmem>>, vector<1x96xf32>
    %50 = vector.broadcast %49 : vector<1x96xf32> to vector<8x96xf32>
    %51 = arith.addf %48, %50 : vector<8x96xf32>
    %52 = vector.extract_strided_slice %51 {offsets = [0, 0], sizes = [8, 32], strides = [1, 1]} : vector<8x96xf32> to vector<8x32xf32>
    %cst_26 = arith.constant 0.353553385 : f32
    %53 = vector.broadcast %cst_26 : f32 to vector<8x32xf32>
    %54 = arith.mulf %52, %53 : vector<8x32xf32>
    %55 = vector.shape_cast %54 : vector<8x32xf32> to vector<8x4x8xf32>
    %56 = tpu.transpose %55, [1, 0, 2] : vector<8x4x8xf32> -> vector<4x8x8xf32>
    %57 = arith.truncf %56 : vector<4x8x8xf32> to vector<4x8x8xbf16>
    %58 = vector.extract_strided_slice %51 {offsets = [0, 32], sizes = [8, 32], strides = [1, 1]} : vector<8x96xf32> to vector<8x32xf32>
    %59 = vector.shape_cast %58 : vector<8x32xf32> to vector<8x4x8xf32>
    %60 = tpu.transpose %59, [1, 0, 2] : vector<8x4x8xf32> -> vector<4x8x8xf32>
    %61 = arith.truncf %60 : vector<4x8x8xf32> to vector<4x8x8xbf16>
    %62 = vector.extract_strided_slice %51 {offsets = [0, 64], sizes = [8, 32], strides = [1, 1]} : vector<8x96xf32> to vector<8x32xf32>
    %63 = vector.shape_cast %62 : vector<8x32xf32> to vector<8x4x8xf32>
    %64 = tpu.transpose %63, [1, 0, 2] : vector<8x4x8xf32> -> vector<4x8x8xf32>
    %65 = arith.truncf %64 : vector<4x8x8xf32> to vector<4x8x8xbf16>
    "tpu.trace_start"() <{level = 10 : i32, message = "hqd,hkd->hqk"}> : () -> ()
    %cst_27 = arith.constant dense<0.000000e+00> : vector<4x8x8xf32>
    %66 = tpu.matmul %57, %61, %cst_27 {dimension_numbers = #tpu.dot_dimension_numbers<[2], [2], [1], [1], [0, 0, 0, 1, 1, 1], [0], [0]>} : vector<4x8x8xbf16>, vector<4x8x8xbf16>, vector<4x8x8xf32> -> vector<4x8x8xf32>
    "tpu.trace_stop"() : () -> ()
    %67 = vector.broadcast %5 : vector<1x1x8xf32> to vector<4x8x8xf32>
    %68 = arith.addf %66, %67 : vector<4x8x8xf32>
    %cst_28 = arith.constant dense<0xFF800000> : vector<4x8xf32>
    %69 = vector.multi_reduction <maximumf>, %68, %cst_28 [2] : vector<4x8x8xf32> to vector<4x8xf32>
    %70 = vector.shape_cast %69 : vector<4x8xf32> to vector<4x8x1xf32>
    %71 = vector.broadcast %70 : vector<4x8x1xf32> to vector<4x8x8xf32>
    %72 = arith.subf %68, %71 : vector<4x8x8xf32>
    %73 = math.exp %72 : vector<4x8x8xf32>
    %cst_29 = arith.constant dense<0.000000e+00> : vector<4x8xf32>
    %74 = vector.multi_reduction <add>, %73, %cst_29 [2] : vector<4x8x8xf32> to vector<4x8xf32>
    %75 = vector.shape_cast %74 : vector<4x8xf32> to vector<4x8x1xf32>
    %76 = tpu.reciprocal %75 {approx = true} : vector<4x8x1xf32> -> vector<4x8x1xf32>
    %77 = vector.broadcast %76 : vector<4x8x1xf32> to vector<4x8x8xf32>
    %78 = arith.mulf %73, %77 : vector<4x8x8xf32>
    %79 = arith.truncf %78 : vector<4x8x8xf32> to vector<4x8x8xbf16>
    "tpu.trace_start"() <{level = 10 : i32, message = "hqk,hkd->hqd"}> : () -> ()
    %cst_30 = arith.constant dense<0.000000e+00> : vector<4x8x8xf32>
    %80 = tpu.matmul %79, %65, %cst_30 {dimension_numbers = #tpu.dot_dimension_numbers<[2], [1], [1], [2], [0, 0, 0, 1, 1, 2], [0], [0]>} : vector<4x8x8xbf16>, vector<4x8x8xbf16>, vector<4x8x8xf32> -> vector<4x8x8xf32>
    "tpu.trace_stop"() : () -> ()
    %81 = tpu.transpose %80, [1, 0, 2] : vector<4x8x8xf32> -> vector<8x4x8xf32>
    %82 = vector.shape_cast %81 : vector<8x4x8xf32> to vector<8x32xf32>
    %83 = arith.truncf %82 : vector<8x32xf32> to vector<8x32xbf16>
    %c0_31 = arith.constant 0 : index
    %c0_32 = arith.constant 0 : index
    %84 = vector.load %arg9[%c0_31, %c0_32] : memref<32x32xbf16, #tpu.memory_space<vmem>>, vector<32x32xbf16>
    %cst_33 = arith.constant dense<0.000000e+00> : vector<8x32xf32>
    %85 = tpu.matmul %83, %84, %cst_33 {dimension_numbers = #tpu.dot_dimension_numbers<[1], [0], [0], [1], [0, 0, 1, 1], [], []>} : vector<8x32xbf16>, vector<32x32xbf16>, vector<8x32xf32> -> vector<8x32xf32>
    %c0_34 = arith.constant 0 : index
    %c0_35 = arith.constant 0 : index
    %86 = vector.load %arg10[%c0_34, %c0_35] : memref<1x32xf32, #tpu.memory_space<vmem>>, vector<1x32xf32>
    %87 = vector.broadcast %86 : vector<1x32xf32> to vector<8x32xf32>
    %88 = arith.addf %85, %87 : vector<8x32xf32>
    %89 = arith.addf %45, %88 : vector<8x32xf32>
    %c0_36 = arith.constant 0 : index
    %c0_37 = arith.constant 0 : index
    %90 = vector.load %arg11[%c0_36, %c0_37] : memref<2x32xf32, #tpu.memory_space<vmem>>, vector<2x32xf32>
    %cst_38 = arith.constant dense<0.000000e+00> : vector<8xf32>
    %91 = vector.multi_reduction <add>, %89, %cst_38 [1] : vector<8x32xf32> to vector<8xf32>
    %92 = vector.shape_cast %91 : vector<8xf32> to vector<8x1xf32>
    %cst_39 = arith.constant 3.200000e+01 : f32
    %93 = vector.broadcast %cst_39 : f32 to vector<8x1xf32>
    %94 = arith.divf %92, %93 : vector<8x1xf32>
    %95 = vector.broadcast %94 : vector<8x1xf32> to vector<8x32xf32>
    %96 = arith.subf %89, %95 : vector<8x32xf32>
    %97 = arith.mulf %96, %96 : vector<8x32xf32>
    %cst_40 = arith.constant dense<0.000000e+00> : vector<8xf32>
    %98 = vector.multi_reduction <add>, %97, %cst_40 [1] : vector<8x32xf32> to vector<8xf32>
    %99 = vector.shape_cast %98 : vector<8xf32> to vector<8x1xf32>
    %cst_41 = arith.constant 3.200000e+01 : f32
    %100 = vector.broadcast %cst_41 : f32 to vector<8x1xf32>
    %101 = arith.divf %99, %100 : vector<8x1xf32>
    %cst_42 = arith.constant 9.99999974E-6 : f32
    %102 = vector.broadcast %cst_42 : f32 to vector<8x1xf32>
    %103 = arith.addf %101, %102 : vector<8x1xf32>
    %104 = math.rsqrt %103 : vector<8x1xf32>
    %105 = vector.broadcast %104 : vector<8x1xf32> to vector<8x32xf32>
    %106 = arith.mulf %96, %105 : vector<8x32xf32>
    %107 = vector.extract_strided_slice %90 {offsets = [0, 0], sizes = [1, 32], strides = [1, 1]} : vector<2x32xf32> to vector<1x32xf32>
    %108 = vector.broadcast %107 : vector<1x32xf32> to vector<8x32xf32>
    %109 = arith.mulf %106, %108 : vector<8x32xf32>
    %110 = vector.extract_strided_slice %90 {offsets = [1, 0], sizes = [1, 32], strides = [1, 1]} : vector<2x32xf32> to vector<1x32xf32>
    %111 = vector.broadcast %110 : vector<1x32xf32> to vector<8x32xf32>
    %112 = arith.addf %109, %111 : vector<8x32xf32>
    %113 = arith.truncf %112 : vector<8x32xf32> to vector<8x32xbf16>
    %c0_43 = arith.constant 0 : index
    %c0_44 = arith.constant 0 : index
    %114 = vector.load %arg12[%c0_43, %c0_44] : memref<32x64xbf16, #tpu.memory_space<vmem>>, vector<32x64xbf16>
    %cst_45 = arith.constant dense<0.000000e+00> : vector<8x64xf32>
    %115 = tpu.matmul %113, %114, %cst_45 {dimension_numbers = #tpu.dot_dimension_numbers<[1], [0], [0], [1], [0, 0, 1, 1], [], []>} : vector<8x32xbf16>, vector<32x64xbf16>, vector<8x64xf32> -> vector<8x64xf32>
    %c0_46 = arith.constant 0 : index
    %c0_47 = arith.constant 0 : index
    %116 = vector.load %arg13[%c0_46, %c0_47] : memref<1x64xf32, #tpu.memory_space<vmem>>, vector<1x64xf32>
    %117 = vector.broadcast %116 : vector<1x64xf32> to vector<8x64xf32>
    %118 = arith.addf %115, %117 : vector<8x64xf32>
    %cst_48 = arith.constant 0.000000e+00 : f32
    %119 = vector.broadcast %cst_48 : f32 to vector<8x64xf32>
    %120 = arith.maximumf %118, %119 : vector<8x64xf32>
    %121 = arith.truncf %120 : vector<8x64xf32> to vector<8x64xbf16>
    %c0_49 = arith.constant 0 : index
    %c0_50 = arith.constant 0 : index
    %122 = vector.load %arg14[%c0_49, %c0_50] : memref<64x32xbf16, #tpu.memory_space<vmem>>, vector<64x32xbf16>
    %cst_51 = arith.constant dense<0.000000e+00> : vector<8x32xf32>
    %123 = tpu.matmul %121, %122, %cst_51 {dimension_numbers = #tpu.dot_dimension_numbers<[1], [0], [0], [1], [0, 0, 1, 1], [], []>} : vector<8x64xbf16>, vector<64x32xbf16>, vector<8x32xf32> -> vector<8x32xf32>
    %c0_52 = arith.constant 0 : index
    %c0_53 = arith.constant 0 : index
    %124 = vector.load %arg15[%c0_52, %c0_53] : memref<1x32xf32, #tpu.memory_space<vmem>>, vector<1x32xf32>
    %125 = vector.broadcast %124 : vector<1x32xf32> to vector<8x32xf32>
    %126 = arith.addf %123, %125 : vector<8x32xf32>
    %127 = arith.addf %112, %126 : vector<8x32xf32>
    %c0_54 = arith.constant 0 : index
    %c0_55 = arith.constant 0 : index
    %128 = vector.load %arg16[%c0_54, %c0_55] : memref<2x32xf32, #tpu.memory_space<vmem>>, vector<2x32xf32>
    %cst_56 = arith.constant dense<0.000000e+00> : vector<8xf32>
    %129 = vector.multi_reduction <add>, %127, %cst_56 [1] : vector<8x32xf32> to vector<8xf32>
    %130 = vector.shape_cast %129 : vector<8xf32> to vector<8x1xf32>
    %cst_57 = arith.constant 3.200000e+01 : f32
    %131 = vector.broadcast %cst_57 : f32 to vector<8x1xf32>
    %132 = arith.divf %130, %131 : vector<8x1xf32>
    %133 = vector.broadcast %132 : vector<8x1xf32> to vector<8x32xf32>
    %134 = arith.subf %127, %133 : vector<8x32xf32>
    %135 = arith.mulf %134, %134 : vector<8x32xf32>
    %cst_58 = arith.constant dense<0.000000e+00> : vector<8xf32>
    %136 = vector.multi_reduction <add>, %135, %cst_58 [1] : vector<8x32xf32> to vector<8xf32>
    %137 = vector.shape_cast %136 : vector<8xf32> to vector<8x1xf32>
    %cst_59 = arith.constant 3.200000e+01 : f32
    %138 = vector.broadcast %cst_59 : f32 to vector<8x1xf32>
    %139 = arith.divf %137, %138 : vector<8x1xf32>
    %cst_60 = arith.constant 9.99999974E-6 : f32
    %140 = vector.broadcast %cst_60 : f32 to vector<8x1xf32>
    %141 = arith.addf %139, %140 : vector<8x1xf32>
    %142 = math.rsqrt %141 : vector<8x1xf32>
    %143 = vector.broadcast %142 : vector<8x1xf32> to vector<8x32xf32>
    %144 = arith.mulf %134, %143 : vector<8x32xf32>
    %145 = vector.extract_strided_slice %128 {offsets = [0, 0], sizes = [1, 32], strides = [1, 1]} : vector<2x32xf32> to vector<1x32xf32>
    %146 = vector.broadcast %145 : vector<1x32xf32> to vector<8x32xf32>
    %147 = arith.mulf %144, %146 : vector<8x32xf32>
    %148 = vector.extract_strided_slice %128 {offsets = [1, 0], sizes = [1, 32], strides = [1, 1]} : vector<2x32xf32> to vector<1x32xf32>
    %149 = vector.broadcast %148 : vector<1x32xf32> to vector<8x32xf32>
    %150 = arith.addf %147, %149 : vector<8x32xf32>
    %151 = arith.truncf %150 : vector<8x32xf32> to vector<8x32xbf16>
    %c0_61 = arith.constant 0 : index
    %c0_62 = arith.constant 0 : index
    %c0_63 = arith.constant 0 : index
    %152 = vector.load %arg3[%c0_61, %c0_62, %c0_63] : memref<1x8x32xf32, #tpu.memory_space<vmem>>, vector<1x8x32xf32>
    %153 = vector.shape_cast %152 : vector<1x8x32xf32> to vector<8x32xf32>
    %154 = arith.truncf %153 : vector<8x32xf32> to vector<8x32xbf16>
    %c0_64 = arith.constant 0 : index
    %c0_65 = arith.constant 0 : index
    %155 = vector.load %arg17[%c0_64, %c0_65] : memref<32x96xbf16, #tpu.memory_space<vmem>>, vector<32x96xbf16>
    %cst_66 = arith.constant dense<0.000000e+00> : vector<8x96xf32>
    %156 = tpu.matmul %154, %155, %cst_66 {dimension_numbers = #tpu.dot_dimension_numbers<[1], [0], [0], [1], [0, 0, 1, 1], [], []>} : vector<8x32xbf16>, vector<32x96xbf16>, vector<8x96xf32> -> vector<8x96xf32>
    %c0_67 = arith.constant 0 : index
    %c0_68 = arith.constant 0 : index
    %157 = vector.load %arg18[%c0_67, %c0_68] : memref<1x96xf32, #tpu.memory_space<vmem>>, vector<1x96xf32>
    %158 = vector.broadcast %157 : vector<1x96xf32> to vector<8x96xf32>
    %159 = arith.addf %156, %158 : vector<8x96xf32>
    %160 = vector.extract_strided_slice %159 {offsets = [0, 0], sizes = [8, 32], strides = [1, 1]} : vector<8x96xf32> to vector<8x32xf32>
    %cst_69 = arith.constant 0.353553385 : f32
    %161 = vector.broadcast %cst_69 : f32 to vector<8x32xf32>
    %162 = arith.mulf %160, %161 : vector<8x32xf32>
    %163 = vector.shape_cast %162 : vector<8x32xf32> to vector<8x4x8xf32>
    %164 = tpu.transpose %163, [1, 0, 2] : vector<8x4x8xf32> -> vector<4x8x8xf32>
    %165 = arith.truncf %164 : vector<4x8x8xf32> to vector<4x8x8xbf16>
    %166 = vector.extract_strided_slice %159 {offsets = [0, 32], sizes = [8, 32], strides = [1, 1]} : vector<8x96xf32> to vector<8x32xf32>
    %167 = vector.shape_cast %166 : vector<8x32xf32> to vector<8x4x8xf32>
    %168 = tpu.transpose %167, [1, 0, 2] : vector<8x4x8xf32> -> vector<4x8x8xf32>
    %169 = arith.truncf %168 : vector<4x8x8xf32> to vector<4x8x8xbf16>
    %170 = vector.extract_strided_slice %159 {offsets = [0, 64], sizes = [8, 32], strides = [1, 1]} : vector<8x96xf32> to vector<8x32xf32>
    %171 = vector.shape_cast %170 : vector<8x32xf32> to vector<8x4x8xf32>
    %172 = tpu.transpose %171, [1, 0, 2] : vector<8x4x8xf32> -> vector<4x8x8xf32>
    %173 = arith.truncf %172 : vector<4x8x8xf32> to vector<4x8x8xbf16>
    "tpu.trace_start"() <{level = 10 : i32, message = "hqd,hkd->hqk"}> : () -> ()
    %cst_70 = arith.constant dense<0.000000e+00> : vector<4x8x8xf32>
    %174 = tpu.matmul %165, %169, %cst_70 {dimension_numbers = #tpu.dot_dimension_numbers<[2], [2], [1], [1], [0, 0, 0, 1, 1, 1], [0], [0]>} : vector<4x8x8xbf16>, vector<4x8x8xbf16>, vector<4x8x8xf32> -> vector<4x8x8xf32>
    "tpu.trace_stop"() : () -> ()
    %175 = vector.broadcast %20 : vector<1x8x8xf32> to vector<4x8x8xf32>
    %176 = arith.addf %174, %175 : vector<4x8x8xf32>
    %cst_71 = arith.constant dense<0xFF800000> : vector<4x8xf32>
    %177 = vector.multi_reduction <maximumf>, %176, %cst_71 [2] : vector<4x8x8xf32> to vector<4x8xf32>
    %178 = vector.shape_cast %177 : vector<4x8xf32> to vector<4x8x1xf32>
    %179 = vector.broadcast %178 : vector<4x8x1xf32> to vector<4x8x8xf32>
    %180 = arith.subf %176, %179 : vector<4x8x8xf32>
    %181 = math.exp %180 : vector<4x8x8xf32>
    %cst_72 = arith.constant dense<0.000000e+00> : vector<4x8xf32>
    %182 = vector.multi_reduction <add>, %181, %cst_72 [2] : vector<4x8x8xf32> to vector<4x8xf32>
    %183 = vector.shape_cast %182 : vector<4x8xf32> to vector<4x8x1xf32>
    %184 = tpu.reciprocal %183 {approx = true} : vector<4x8x1xf32> -> vector<4x8x1xf32>
    %185 = vector.broadcast %184 : vector<4x8x1xf32> to vector<4x8x8xf32>
    %186 = arith.mulf %181, %185 : vector<4x8x8xf32>
    %187 = arith.truncf %186 : vector<4x8x8xf32> to vector<4x8x8xbf16>
    "tpu.trace_start"() <{level = 10 : i32, message = "hqk,hkd->hqd"}> : () -> ()
    %cst_73 = arith.constant dense<0.000000e+00> : vector<4x8x8xf32>
    %188 = tpu.matmul %187, %173, %cst_73 {dimension_numbers = #tpu.dot_dimension_numbers<[2], [1], [1], [2], [0, 0, 0, 1, 1, 2], [0], [0]>} : vector<4x8x8xbf16>, vector<4x8x8xbf16>, vector<4x8x8xf32> -> vector<4x8x8xf32>
    "tpu.trace_stop"() : () -> ()
    %189 = tpu.transpose %188, [1, 0, 2] : vector<4x8x8xf32> -> vector<8x4x8xf32>
    %190 = vector.shape_cast %189 : vector<8x4x8xf32> to vector<8x32xf32>
    %191 = arith.truncf %190 : vector<8x32xf32> to vector<8x32xbf16>
    %c0_74 = arith.constant 0 : index
    %c0_75 = arith.constant 0 : index
    %192 = vector.load %arg19[%c0_74, %c0_75] : memref<32x32xbf16, #tpu.memory_space<vmem>>, vector<32x32xbf16>
    %cst_76 = arith.constant dense<0.000000e+00> : vector<8x32xf32>
    %193 = tpu.matmul %191, %192, %cst_76 {dimension_numbers = #tpu.dot_dimension_numbers<[1], [0], [0], [1], [0, 0, 1, 1], [], []>} : vector<8x32xbf16>, vector<32x32xbf16>, vector<8x32xf32> -> vector<8x32xf32>
    %c0_77 = arith.constant 0 : index
    %c0_78 = arith.constant 0 : index
    %194 = vector.load %arg20[%c0_77, %c0_78] : memref<1x32xf32, #tpu.memory_space<vmem>>, vector<1x32xf32>
    %195 = vector.broadcast %194 : vector<1x32xf32> to vector<8x32xf32>
    %196 = arith.addf %193, %195 : vector<8x32xf32>
    %197 = arith.addf %153, %196 : vector<8x32xf32>
    %c0_79 = arith.constant 0 : index
    %c0_80 = arith.constant 0 : index
    %198 = vector.load %arg21[%c0_79, %c0_80] : memref<2x32xf32, #tpu.memory_space<vmem>>, vector<2x32xf32>
    %cst_81 = arith.constant dense<0.000000e+00> : vector<8xf32>
    %199 = vector.multi_reduction <add>, %197, %cst_81 [1] : vector<8x32xf32> to vector<8xf32>
    %200 = vector.shape_cast %199 : vector<8xf32> to vector<8x1xf32>
    %cst_82 = arith.constant 3.200000e+01 : f32
    %201 = vector.broadcast %cst_82 : f32 to vector<8x1xf32>
    %202 = arith.divf %200, %201 : vector<8x1xf32>
    %203 = vector.broadcast %202 : vector<8x1xf32> to vector<8x32xf32>
    %204 = arith.subf %197, %203 : vector<8x32xf32>
    %205 = arith.mulf %204, %204 : vector<8x32xf32>
    %cst_83 = arith.constant dense<0.000000e+00> : vector<8xf32>
    %206 = vector.multi_reduction <add>, %205, %cst_83 [1] : vector<8x32xf32> to vector<8xf32>
    %207 = vector.shape_cast %206 : vector<8xf32> to vector<8x1xf32>
    %cst_84 = arith.constant 3.200000e+01 : f32
    %208 = vector.broadcast %cst_84 : f32 to vector<8x1xf32>
    %209 = arith.divf %207, %208 : vector<8x1xf32>
    %cst_85 = arith.constant 9.99999974E-6 : f32
    %210 = vector.broadcast %cst_85 : f32 to vector<8x1xf32>
    %211 = arith.addf %209, %210 : vector<8x1xf32>
    %212 = math.rsqrt %211 : vector<8x1xf32>
    %213 = vector.broadcast %212 : vector<8x1xf32> to vector<8x32xf32>
    %214 = arith.mulf %204, %213 : vector<8x32xf32>
    %215 = vector.extract_strided_slice %198 {offsets = [0, 0], sizes = [1, 32], strides = [1, 1]} : vector<2x32xf32> to vector<1x32xf32>
    %216 = vector.broadcast %215 : vector<1x32xf32> to vector<8x32xf32>
    %217 = arith.mulf %214, %216 : vector<8x32xf32>
    %218 = vector.extract_strided_slice %198 {offsets = [1, 0], sizes = [1, 32], strides = [1, 1]} : vector<2x32xf32> to vector<1x32xf32>
    %219 = vector.broadcast %218 : vector<1x32xf32> to vector<8x32xf32>
    %220 = arith.addf %217, %219 : vector<8x32xf32>
    %221 = arith.truncf %220 : vector<8x32xf32> to vector<8x32xbf16>
    %c0_86 = arith.constant 0 : index
    %c0_87 = arith.constant 0 : index
    %222 = vector.load %arg22[%c0_86, %c0_87] : memref<32x32xbf16, #tpu.memory_space<vmem>>, vector<32x32xbf16>
    %cst_88 = arith.constant dense<0.000000e+00> : vector<8x32xf32>
    %223 = tpu.matmul %221, %222, %cst_88 {dimension_numbers = #tpu.dot_dimension_numbers<[1], [0], [0], [1], [0, 0, 1, 1], [], []>} : vector<8x32xbf16>, vector<32x32xbf16>, vector<8x32xf32> -> vector<8x32xf32>
    %c0_89 = arith.constant 0 : index
    %c0_90 = arith.constant 0 : index
    %224 = vector.load %arg23[%c0_89, %c0_90] : memref<1x32xf32, #tpu.memory_space<vmem>>, vector<1x32xf32>
    %225 = vector.broadcast %224 : vector<1x32xf32> to vector<8x32xf32>
    %226 = arith.addf %223, %225 : vector<8x32xf32>
    %c0_91 = arith.constant 0 : index
    %c0_92 = arith.constant 0 : index
    %227 = vector.load %arg24[%c0_91, %c0_92] : memref<32x64xbf16, #tpu.memory_space<vmem>>, vector<32x64xbf16>
    %cst_93 = arith.constant dense<0.000000e+00> : vector<8x64xf32>
    %228 = tpu.matmul %151, %227, %cst_93 {dimension_numbers = #tpu.dot_dimension_numbers<[1], [0], [0], [1], [0, 0, 1, 1], [], []>} : vector<8x32xbf16>, vector<32x64xbf16>, vector<8x64xf32> -> vector<8x64xf32>
    %c0_94 = arith.constant 0 : index
    %c0_95 = arith.constant 0 : index
    %229 = vector.load %arg25[%c0_94, %c0_95] : memref<1x64xf32, #tpu.memory_space<vmem>>, vector<1x64xf32>
    %230 = vector.broadcast %229 : vector<1x64xf32> to vector<8x64xf32>
    %231 = arith.addf %228, %230 : vector<8x64xf32>
    %cst_96 = arith.constant 0.353553385 : f32
    %232 = vector.broadcast %cst_96 : f32 to vector<8x32xf32>
    %233 = arith.mulf %226, %232 : vector<8x32xf32>
    %234 = vector.shape_cast %233 : vector<8x32xf32> to vector<8x4x8xf32>
    %235 = tpu.transpose %234, [1, 0, 2] : vector<8x4x8xf32> -> vector<4x8x8xf32>
    %236 = arith.truncf %235 : vector<4x8x8xf32> to vector<4x8x8xbf16>
    %237 = vector.extract_strided_slice %231 {offsets = [0, 0], sizes = [8, 32], strides = [1, 1]} : vector<8x64xf32> to vector<8x32xf32>
    %238 = vector.shape_cast %237 : vector<8x32xf32> to vector<8x4x8xf32>
    %239 = tpu.transpose %238, [1, 0, 2] : vector<8x4x8xf32> -> vector<4x8x8xf32>
    %240 = arith.truncf %239 : vector<4x8x8xf32> to vector<4x8x8xbf16>
    %241 = vector.extract_strided_slice %231 {offsets = [0, 32], sizes = [8, 32], strides = [1, 1]} : vector<8x64xf32> to vector<8x32xf32>
    %242 = vector.shape_cast %241 : vector<8x32xf32> to vector<8x4x8xf32>
    %243 = tpu.transpose %242, [1, 0, 2] : vector<8x4x8xf32> -> vector<4x8x8xf32>
    %244 = arith.truncf %243 : vector<4x8x8xf32> to vector<4x8x8xbf16>
    "tpu.trace_start"() <{level = 10 : i32, message = "hqd,hkd->hqk"}> : () -> ()
    %cst_97 = arith.constant dense<0.000000e+00> : vector<4x8x8xf32>
    %245 = tpu.matmul %236, %240, %cst_97 {dimension_numbers = #tpu.dot_dimension_numbers<[2], [2], [1], [1], [0, 0, 0, 1, 1, 1], [0], [0]>} : vector<4x8x8xbf16>, vector<4x8x8xbf16>, vector<4x8x8xf32> -> vector<4x8x8xf32>
    "tpu.trace_stop"() : () -> ()
    %246 = vector.broadcast %5 : vector<1x1x8xf32> to vector<4x8x8xf32>
    %247 = arith.addf %245, %246 : vector<4x8x8xf32>
    %cst_98 = arith.constant dense<0xFF800000> : vector<4x8xf32>
    %248 = vector.multi_reduction <maximumf>, %247, %cst_98 [2] : vector<4x8x8xf32> to vector<4x8xf32>
    %249 = vector.shape_cast %248 : vector<4x8xf32> to vector<4x8x1xf32>
    %250 = vector.broadcast %249 : vector<4x8x1xf32> to vector<4x8x8xf32>
    %251 = arith.subf %247, %250 : vector<4x8x8xf32>
    %252 = math.exp %251 : vector<4x8x8xf32>
    %cst_99 = arith.constant dense<0.000000e+00> : vector<4x8xf32>
    %253 = vector.multi_reduction <add>, %252, %cst_99 [2] : vector<4x8x8xf32> to vector<4x8xf32>
    %254 = vector.shape_cast %253 : vector<4x8xf32> to vector<4x8x1xf32>
    %255 = tpu.reciprocal %254 {approx = true} : vector<4x8x1xf32> -> vector<4x8x1xf32>
    %256 = vector.broadcast %255 : vector<4x8x1xf32> to vector<4x8x8xf32>
    %257 = arith.mulf %252, %256 : vector<4x8x8xf32>
    %258 = arith.truncf %257 : vector<4x8x8xf32> to vector<4x8x8xbf16>
    "tpu.trace_start"() <{level = 10 : i32, message = "hqk,hkd->hqd"}> : () -> ()
    %cst_100 = arith.constant dense<0.000000e+00> : vector<4x8x8xf32>
    %259 = tpu.matmul %258, %244, %cst_100 {dimension_numbers = #tpu.dot_dimension_numbers<[2], [1], [1], [2], [0, 0, 0, 1, 1, 2], [0], [0]>} : vector<4x8x8xbf16>, vector<4x8x8xbf16>, vector<4x8x8xf32> -> vector<4x8x8xf32>
    "tpu.trace_stop"() : () -> ()
    %260 = tpu.transpose %259, [1, 0, 2] : vector<4x8x8xf32> -> vector<8x4x8xf32>
    %261 = vector.shape_cast %260 : vector<8x4x8xf32> to vector<8x32xf32>
    %262 = arith.truncf %261 : vector<8x32xf32> to vector<8x32xbf16>
    %c0_101 = arith.constant 0 : index
    %c0_102 = arith.constant 0 : index
    %263 = vector.load %arg26[%c0_101, %c0_102] : memref<32x32xbf16, #tpu.memory_space<vmem>>, vector<32x32xbf16>
    %cst_103 = arith.constant dense<0.000000e+00> : vector<8x32xf32>
    %264 = tpu.matmul %262, %263, %cst_103 {dimension_numbers = #tpu.dot_dimension_numbers<[1], [0], [0], [1], [0, 0, 1, 1], [], []>} : vector<8x32xbf16>, vector<32x32xbf16>, vector<8x32xf32> -> vector<8x32xf32>
    %c0_104 = arith.constant 0 : index
    %c0_105 = arith.constant 0 : index
    %265 = vector.load %arg27[%c0_104, %c0_105] : memref<1x32xf32, #tpu.memory_space<vmem>>, vector<1x32xf32>
    %266 = vector.broadcast %265 : vector<1x32xf32> to vector<8x32xf32>
    %267 = arith.addf %264, %266 : vector<8x32xf32>
    %268 = arith.addf %220, %267 : vector<8x32xf32>
    %c0_106 = arith.constant 0 : index
    %c0_107 = arith.constant 0 : index
    %269 = vector.load %arg28[%c0_106, %c0_107] : memref<2x32xf32, #tpu.memory_space<vmem>>, vector<2x32xf32>
    %cst_108 = arith.constant dense<0.000000e+00> : vector<8xf32>
    %270 = vector.multi_reduction <add>, %268, %cst_108 [1] : vector<8x32xf32> to vector<8xf32>
    %271 = vector.shape_cast %270 : vector<8xf32> to vector<8x1xf32>
    %cst_109 = arith.constant 3.200000e+01 : f32
    %272 = vector.broadcast %cst_109 : f32 to vector<8x1xf32>
    %273 = arith.divf %271, %272 : vector<8x1xf32>
    %274 = vector.broadcast %273 : vector<8x1xf32> to vector<8x32xf32>
    %275 = arith.subf %268, %274 : vector<8x32xf32>
    %276 = arith.mulf %275, %275 : vector<8x32xf32>
    %cst_110 = arith.constant dense<0.000000e+00> : vector<8xf32>
    %277 = vector.multi_reduction <add>, %276, %cst_110 [1] : vector<8x32xf32> to vector<8xf32>
    %278 = vector.shape_cast %277 : vector<8xf32> to vector<8x1xf32>
    %cst_111 = arith.constant 3.200000e+01 : f32
    %279 = vector.broadcast %cst_111 : f32 to vector<8x1xf32>
    %280 = arith.divf %278, %279 : vector<8x1xf32>
    %cst_112 = arith.constant 9.99999974E-6 : f32
    %281 = vector.broadcast %cst_112 : f32 to vector<8x1xf32>
    %282 = arith.addf %280, %281 : vector<8x1xf32>
    %283 = math.rsqrt %282 : vector<8x1xf32>
    %284 = vector.broadcast %283 : vector<8x1xf32> to vector<8x32xf32>
    %285 = arith.mulf %275, %284 : vector<8x32xf32>
    %286 = vector.extract_strided_slice %269 {offsets = [0, 0], sizes = [1, 32], strides = [1, 1]} : vector<2x32xf32> to vector<1x32xf32>
    %287 = vector.broadcast %286 : vector<1x32xf32> to vector<8x32xf32>
    %288 = arith.mulf %285, %287 : vector<8x32xf32>
    %289 = vector.extract_strided_slice %269 {offsets = [1, 0], sizes = [1, 32], strides = [1, 1]} : vector<2x32xf32> to vector<1x32xf32>
    %290 = vector.broadcast %289 : vector<1x32xf32> to vector<8x32xf32>
    %291 = arith.addf %288, %290 : vector<8x32xf32>
    %292 = arith.truncf %291 : vector<8x32xf32> to vector<8x32xbf16>
    %c0_113 = arith.constant 0 : index
    %c0_114 = arith.constant 0 : index
    %293 = vector.load %arg29[%c0_113, %c0_114] : memref<32x64xbf16, #tpu.memory_space<vmem>>, vector<32x64xbf16>
    %cst_115 = arith.constant dense<0.000000e+00> : vector<8x64xf32>
    %294 = tpu.matmul %292, %293, %cst_115 {dimension_numbers = #tpu.dot_dimension_numbers<[1], [0], [0], [1], [0, 0, 1, 1], [], []>} : vector<8x32xbf16>, vector<32x64xbf16>, vector<8x64xf32> -> vector<8x64xf32>
    %c0_116 = arith.constant 0 : index
    %c0_117 = arith.constant 0 : index
    %295 = vector.load %arg30[%c0_116, %c0_117] : memref<1x64xf32, #tpu.memory_space<vmem>>, vector<1x64xf32>
    %296 = vector.broadcast %295 : vector<1x64xf32> to vector<8x64xf32>
    %297 = arith.addf %294, %296 : vector<8x64xf32>
    %cst_118 = arith.constant 0.000000e+00 : f32
    %298 = vector.broadcast %cst_118 : f32 to vector<8x64xf32>
    %299 = arith.maximumf %297, %298 : vector<8x64xf32>
    %300 = arith.truncf %299 : vector<8x64xf32> to vector<8x64xbf16>
    %c0_119 = arith.constant 0 : index
    %c0_120 = arith.constant 0 : index
    %301 = vector.load %arg31[%c0_119, %c0_120] : memref<64x32xbf16, #tpu.memory_space<vmem>>, vector<64x32xbf16>
    %cst_121 = arith.constant dense<0.000000e+00> : vector<8x32xf32>
    %302 = tpu.matmul %300, %301, %cst_121 {dimension_numbers = #tpu.dot_dimension_numbers<[1], [0], [0], [1], [0, 0, 1, 1], [], []>} : vector<8x64xbf16>, vector<64x32xbf16>, vector<8x32xf32> -> vector<8x32xf32>
    %c0_122 = arith.constant 0 : index
    %c0_123 = arith.constant 0 : index
    %303 = vector.load %arg32[%c0_122, %c0_123] : memref<1x32xf32, #tpu.memory_space<vmem>>, vector<1x32xf32>
    %304 = vector.broadcast %303 : vector<1x32xf32> to vector<8x32xf32>
    %305 = arith.addf %302, %304 : vector<8x32xf32>
    %306 = arith.addf %291, %305 : vector<8x32xf32>
    %c0_124 = arith.constant 0 : index
    %c0_125 = arith.constant 0 : index
    %307 = vector.load %arg33[%c0_124, %c0_125] : memref<2x32xf32, #tpu.memory_space<vmem>>, vector<2x32xf32>
    %cst_126 = arith.constant dense<0.000000e+00> : vector<8xf32>
    %308 = vector.multi_reduction <add>, %306, %cst_126 [1] : vector<8x32xf32> to vector<8xf32>
    %309 = vector.shape_cast %308 : vector<8xf32> to vector<8x1xf32>
    %cst_127 = arith.constant 3.200000e+01 : f32
    %310 = vector.broadcast %cst_127 : f32 to vector<8x1xf32>
    %311 = arith.divf %309, %310 : vector<8x1xf32>
    %312 = vector.broadcast %311 : vector<8x1xf32> to vector<8x32xf32>
    %313 = arith.subf %306, %312 : vector<8x32xf32>
    %314 = arith.mulf %313, %313 : vector<8x32xf32>
    %cst_128 = arith.constant dense<0.000000e+00> : vector<8xf32>
    %315 = vector.multi_reduction <add>, %314, %cst_128 [1] : vector<8x32xf32> to vector<8xf32>
    %316 = vector.shape_cast %315 : vector<8xf32> to vector<8x1xf32>
    %cst_129 = arith.constant 3.200000e+01 : f32
    %317 = vector.broadcast %cst_129 : f32 to vector<8x1xf32>
    %318 = arith.divf %316, %317 : vector<8x1xf32>
    %cst_130 = arith.constant 9.99999974E-6 : f32
    %319 = vector.broadcast %cst_130 : f32 to vector<8x1xf32>
    %320 = arith.addf %318, %319 : vector<8x1xf32>
    %321 = math.rsqrt %320 : vector<8x1xf32>
    %322 = vector.broadcast %321 : vector<8x1xf32> to vector<8x32xf32>
    %323 = arith.mulf %313, %322 : vector<8x32xf32>
    %324 = vector.extract_strided_slice %307 {offsets = [0, 0], sizes = [1, 32], strides = [1, 1]} : vector<2x32xf32> to vector<1x32xf32>
    %325 = vector.broadcast %324 : vector<1x32xf32> to vector<8x32xf32>
    %326 = arith.mulf %323, %325 : vector<8x32xf32>
    %327 = vector.extract_strided_slice %307 {offsets = [1, 0], sizes = [1, 32], strides = [1, 1]} : vector<2x32xf32> to vector<1x32xf32>
    %328 = vector.broadcast %327 : vector<1x32xf32> to vector<8x32xf32>
    %329 = arith.addf %326, %328 : vector<8x32xf32>
    %330 = arith.truncf %329 : vector<8x32xf32> to vector<8x32xbf16>
    %c0_131 = arith.constant 0 : index
    %c0_132 = arith.constant 0 : index
    %331 = vector.load %arg34[%c0_131, %c0_132] : memref<32x64xbf16, #tpu.memory_space<vmem>>, vector<32x64xbf16>
    %cst_133 = arith.constant dense<0.000000e+00> : vector<8x64xf32>
    %332 = tpu.matmul %330, %331, %cst_133 {dimension_numbers = #tpu.dot_dimension_numbers<[1], [0], [0], [1], [0, 0, 1, 1], [], []>} : vector<8x32xbf16>, vector<32x64xbf16>, vector<8x64xf32> -> vector<8x64xf32>
    %c0_134 = arith.constant 0 : index
    %c0_135 = arith.constant 0 : index
    %333 = vector.load %arg35[%c0_134, %c0_135] : memref<1x64xf32, #tpu.memory_space<vmem>>, vector<1x64xf32>
    %334 = vector.broadcast %333 : vector<1x64xf32> to vector<8x64xf32>
    %335 = arith.addf %332, %334 : vector<8x64xf32>
    %cst_136 = arith.constant dense<0xFF800000> : vector<8xf32>
    %336 = vector.multi_reduction <maximumf>, %335, %cst_136 [1] : vector<8x64xf32> to vector<8xf32>
    %337 = vector.shape_cast %336 : vector<8xf32> to vector<8x1xf32>
    %338 = vector.broadcast %337 : vector<8x1xf32> to vector<8x64xf32>
    %339 = arith.subf %335, %338 : vector<8x64xf32>
    %340 = math.exp %339 : vector<8x64xf32>
    %cst_137 = arith.constant dense<0.000000e+00> : vector<8xf32>
    %341 = vector.multi_reduction <add>, %340, %cst_137 [1] : vector<8x64xf32> to vector<8xf32>
    %342 = vector.shape_cast %341 : vector<8xf32> to vector<8x1xf32>
    %343 = math.log %342 : vector<8x1xf32>
    %344 = arith.addf %343, %337 : vector<8x1xf32>
    %345 = tpu.iota {dimensions = array<i32: 1>} : vector<8x64xi32>
    %c0_138 = arith.constant 0 : index
    %c0_139 = arith.constant 0 : index
    %c0_140 = arith.constant 0 : index
    %346 = vector.load %arg5[%c0_138, %c0_139, %c0_140] : memref<1x8x1xi32, #tpu.memory_space<vmem>>, vector<1x8x1xi32>
    %347 = vector.shape_cast %346 : vector<1x8x1xi32> to vector<8x1xi32>
    %348 = vector.broadcast %347 : vector<8x1xi32> to vector<8x64xi32>
    %349 = arith.cmpi eq, %345, %348 : vector<8x64xi32>
    %cst_141 = arith.constant 0.000000e+00 : f32
    %350 = vector.broadcast %cst_141 : f32 to vector<8x64xf32>
    %351 = arith.select %349, %335, %350 : vector<8x64xi1>, vector<8x64xf32>
    %cst_142 = arith.constant dense<0.000000e+00> : vector<8xf32>
    %352 = vector.multi_reduction <add>, %351, %cst_142 [1] : vector<8x64xf32> to vector<8xf32>
    %353 = vector.shape_cast %352 : vector<8xf32> to vector<8x1xf32>
    %354 = arith.subf %344, %353 : vector<8x1xf32>
    %cst_143 = arith.constant dense<0.000000e+00> : vector<1xf32>
    %355 = vector.multi_reduction <add>, %354, %cst_143 [0] : vector<8x1xf32> to vector<1xf32>
    %356 = vector.shape_cast %355 : vector<1xf32> to vector<1x1xf32>
    %c0_144 = arith.constant 0 : index
    %c0_145 = arith.constant 0 : index
    %c0_146 = arith.constant 0 : index
    %357 = vector.load %arg36[%c0_144, %c0_145, %c0_146] : memref<1x1x1xf32, #tpu.memory_space<vmem>>, vector<1x1x1xf32>
    %358 = vector.shape_cast %357 : vector<1x1x1xf32> to vector<1x1xf32>
    %359 = vector.shape_cast %356 : vector<1x1xf32> to vector<1x1x1xf32>
    tpu.vector_store %arg36[%c0_144, %c0_145, %c0_146], %359 {strides = array<i32>} : memref<1x1x1xf32, #tpu.memory_space<vmem>>, vector<1x1x1xf32>,
    return
  }
  func.func @transform_0(%arg0: i32) -> (i32, i32, i32) {
    %c0_i32 = arith.constant 0 : i32
    %c0_i32_0 = arith.constant 0 : i32
    %c0_i32_1 = arith.constant 0 : i32
    return %arg0, %c0_i32, %c0_i32_0 : i32, i32, i32
  }
  func.func @transform_1(%arg0: i32) -> (i32, i32, i32) {
    %c0_i32 = arith.constant 0 : i32
    %c0_i32_0 = arith.constant 0 : i32
    %c0_i32_1 = arith.constant 0 : i32
    return %arg0, %c0_i32, %c0_i32_0 : i32, i32, i32
  }
  func.func @transform_2(%arg0: i32) -> (i32, i32, i32) {
    %c0_i32 = arith.constant 0 : i32
    %c0_i32_0 = arith.constant 0 : i32
    %c0_i32_1 = arith.constant 0 : i32
    return %arg0, %c0_i32, %c0_i32_0 : i32, i32, i32
  }
  func.func @transform_3(%arg0: i32) -> (i32, i32, i32) {
    %c0_i32 = arith.constant 0 : i32
    %c0_i32_0 = arith.constant 0 : i32
    %c0_i32_1 = arith.constant 0 : i32
    return %arg0, %c0_i32, %c0_i32_0 : i32, i32, i32
  }
  func.func @transform_4(%arg0: i32) -> (i32, i32, i32) {
    %c0_i32 = arith.constant 0 : i32
    %c0_i32_0 = arith.constant 0 : i32
    %c0_i32_1 = arith.constant 0 : i32
    return %arg0, %c0_i32, %c0_i32_0 : i32, i32, i32
  }
  func.func @transform_5(%arg0: i32) -> (i32, i32) {
    %c0_i32 = arith.constant 0 : i32
    %c0_i32_0 = arith.constant 0 : i32
    %c0_i32_1 = arith.constant 0 : i32
    return %c0_i32, %c0_i32_0 : i32, i32
  }
  func.func @transform_6(%arg0: i32) -> (i32, i32) {
    %c0_i32 = arith.constant 0 : i32
    %c0_i32_0 = arith.constant 0 : i32
    %c0_i32_1 = arith.constant 0 : i32
    return %c0_i32, %c0_i32_0 : i32, i32
  }
  func.func @transform_7(%arg0: i32) -> (i32, i32) {
    %c0_i32 = arith.constant 0 : i32
    %c0_i32_0 = arith.constant 0 : i32
    %c0_i32_1 = arith.constant 0 : i32
    return %c0_i32, %c0_i32_0 : i32, i32
  }
  func.func @transform_8(%arg0: i32) -> (i32, i32) {
    %c0_i32 = arith.constant 0 : i32
    %c0_i32_0 = arith.constant 0 : i32
    %c0_i32_1 = arith.constant 0 : i32
    return %c0_i32, %c0_i32_0 : i32, i32
  }
  func.func @transform_9(%arg0: i32) -> (i32, i32) {
    %c0_i32 = arith.constant 0 : i32
    %c0_i32_0 = arith.constant 0 : i32
    %c0_i32_1 = arith.constant 0 : i32
    return %c0_i32, %c0_i32_0 : i32, i32
  }
  func.func @transform_10(%arg0: i32) -> (i32, i32) {
    %c0_i32 = arith.constant 0 : i32
    %c0_i32_0 = arith.constant 0 : i32
    %c0_i32_1 = arith.constant 0 : i32
    return %c0_i32, %c0_i32_0 : i32, i32
  }
  func.func @transform_11(%arg0: i32) -> (i32, i32) {
    %c0_i32 = arith.constant 0 : i32
    %c0_i32_0 = arith.constant 0 : i32
    %c0_i32_1 = arith.constant 0 : i32
    return %c0_i32, %c0_i32_0 : i32, i32
  }
  func.func @transform_12(%arg0: i32) -> (i32, i32) {
    %c0_i32 = arith.constant 0 : i32
    %c0_i32_0 = arith.constant 0 : i32
    %c0_i32_1 = arith.constant 0 : i32
    return %c0_i32, %c0_i32_0 : i32, i32
  }
  func.func @transform_13(%arg0: i32) -> (i32, i32) {
    %c0_i32 = arith.constant 0 : i32
    %c0_i32_0 = arith.constant 0 : i32
    %c0_i32_1 = arith.constant 0 : i32
    return %c0_i32, %c0_i32_0 : i32, i32
  }
  func.func @transform_14(%arg0: i32) -> (i32, i32) {
    %c0_i32 = arith.constant 0 : i32
    %c0_i32_0 = arith.constant 0 : i32
    %c0_i32_1 = arith.constant 0 : i32
    return %c0_i32, %c0_i32_0 : i32, i32
  }
  func.func @transform_15(%arg0: i32) -> (i32, i32) {
    %c0_i32 = arith.constant 0 : i32
    %c0_i32_0 = arith.constant 0 : i32
    %c0_i32_1 = arith.constant 0 : i32
    return %c0_i32, %c0_i32_0 : i32, i32
  }
  func.func @transform_16(%arg0: i32) -> (i32, i32) {
    %c0_i32 = arith.constant 0 : i32
    %c0_i32_0 = arith.constant 0 : i32
    %c0_i32_1 = arith.constant 0 : i32
    return %c0_i32, %c0_i32_0 : i32, i32
  }
  func.func @transform_17(%arg0: i32) -> (i32, i32) {
    %c0_i32 = arith.constant 0 : i32
    %c0_i32_0 = arith.constant 0 : i32
    %c0_i32_1 = arith.constant 0 : i32
    return %c0_i32, %c0_i32_0 : i32, i32
  }
  func.func @transform_18(%arg0: i32) -> (i32, i32) {
    %c0_i32 = arith.constant 0 : i32
    %c0_i32_0 = arith.constant 0 : i32
    %c0_i32_1 = arith.constant 0 : i32
    return %c0_i32, %c0_i32_0 : i32, i32
  }
  func.func @transform_19(%arg0: i32) -> (i32, i32) {
    %c0_i32 = arith.constant 0 : i32
    %c0_i32_0 = arith.constant 0 : i32
    %c0_i32_1 = arith.constant 0 : i32
    return %c0_i32, %c0_i32_0 : i32, i32
  }
  func.func @transform_20(%arg0: i32) -> (i32, i32) {
    %c0_i32 = arith.constant 0 : i32
    %c0_i32_0 = arith.constant 0 : i32
    %c0_i32_1 = arith.constant 0 : i32
    return %c0_i32, %c0_i32_0 : i32, i32
  }
  func.func @transform_21(%arg0: i32) -> (i32, i32) {
    %c0_i32 = arith.constant 0 : i32
    %c0_i32_0 = arith.constant 0 : i32
    %c0_i32_1 = arith.constant 0 : i32
    return %c0_i32, %c0_i32_0 : i32, i32
  }
  func.func @transform_22(%arg0: i32) -> (i32, i32) {
    %c0_i32 = arith.constant 0 : i32
    %c0_i32_0 = arith.constant 0 : i32
    %c0_i32_1 = arith.constant 0 : i32
    return %c0_i32, %c0_i32_0 : i32, i32
  }
  func.func @transform_23(%arg0: i32) -> (i32, i32) {
    %c0_i32 = arith.constant 0 : i32
    %c0_i32_0 = arith.constant 0 : i32
    %c0_i32_1 = arith.constant 0 : i32
    return %c0_i32, %c0_i32_0 : i32, i32
  }
  func.func @transform_24(%arg0: i32) -> (i32, i32) {
    %c0_i32 = arith.constant 0 : i32
    %c0_i32_0 = arith.constant 0 : i32
    %c0_i32_1 = arith.constant 0 : i32
    return %c0_i32, %c0_i32_0 : i32, i32
  }
  func.func @transform_25(%arg0: i32) -> (i32, i32) {
    %c0_i32 = arith.constant 0 : i32
    %c0_i32_0 = arith.constant 0 : i32
    %c0_i32_1 = arith.constant 0 : i32
    return %c0_i32, %c0_i32_0 : i32, i32
  }
  func.func @transform_26(%arg0: i32) -> (i32, i32) {
    %c0_i32 = arith.constant 0 : i32
    %c0_i32_0 = arith.constant 0 : i32
    %c0_i32_1 = arith.constant 0 : i32
    return %c0_i32, %c0_i32_0 : i32, i32
  }
  func.func @transform_27(%arg0: i32) -> (i32, i32) {
    %c0_i32 = arith.constant 0 : i32
    %c0_i32_0 = arith.constant 0 : i32
    %c0_i32_1 = arith.constant 0 : i32
    return %c0_i32, %c0_i32_0 : i32, i32
  }
  func.func @transform_28(%arg0: i32) -> (i32, i32) {
    %c0_i32 = arith.constant 0 : i32
    %c0_i32_0 = arith.constant 0 : i32
    %c0_i32_1 = arith.constant 0 : i32
    return %c0_i32, %c0_i32_0 : i32, i32
  }
  func.func @transform_29(%arg0: i32) -> (i32, i32) {
    %c0_i32 = arith.constant 0 : i32
    %c0_i32_0 = arith.constant 0 : i32
    %c0_i32_1 = arith.constant 0 : i32
    return %c0_i32, %c0_i32_0 : i32, i32
  }
  func.func @transform_30(%arg0: i32) -> (i32, i32) {
    %c0_i32 = arith.constant 0 : i32
    %c0_i32_0 = arith.constant 0 : i32
    %c0_i32_1 = arith.constant 0 : i32
    return %c0_i32, %c0_i32_0 : i32, i32
  }
  func.func @transform_31(%arg0: i32) -> (i32, i32) {
    %c0_i32 = arith.constant 0 : i32
    %c0_i32_0 = arith.constant 0 : i32
    %c0_i32_1 = arith.constant 0 : i32
    return %c0_i32, %c0_i32_0 : i32, i32
  }
  func.func @transform_32(%arg0: i32) -> (i32, i32) {
    %c0_i32 = arith.constant 0 : i32
    %c0_i32_0 = arith.constant 0 : i32
    %c0_i32_1 = arith.constant 0 : i32
    return %c0_i32, %c0_i32_0 : i32, i32
  }
  func.func @transform_33(%arg0: i32) -> (i32, i32) {
    %c0_i32 = arith.constant 0 : i32
    %c0_i32_0 = arith.constant 0 : i32
    %c0_i32_1 = arith.constant 0 : i32
    return %c0_i32, %c0_i32_0 : i32, i32
  }
  func.func @transform_34(%arg0: i32) -> (i32, i32) {
    %c0_i32 = arith.constant 0 : i32
    %c0_i32_0 = arith.constant 0 : i32
    %c0_i32_1 = arith.constant 0 : i32
    return %c0_i32, %c0_i32_0 : i32, i32
  }
  func.func @transform_35(%arg0: i32) -> (i32, i32, i32) {
    %c0_i32 = arith.constant 0 : i32
    %c0_i32_0 = arith.constant 0 : i32
    %c0_i32_1 = arith.constant 0 : i32
    return %arg0, %c0_i32, %c0_i32_0 : i32, i32, i32
  }
}

</mosaic_0001>

<llo_original>
// kernel: seq2seq_forward.1
$region0: #{seq2seq_forward.1}
  #allocation0 [shape = 'u32[]', space=smem, size = 0x4, offset = 0x4, fixed_abs, tag = 'smem constant byte address 0x4 - core index']
  #allocation1 [shape = 'u32[72,128]{1,0:T(1,128)}', space=vmem, size = 0x9000, scoped, tag = 'internal scratch']
  %s0 = inlined_call_operand.smem [shape: u32[36], index: -1, kind: input, shape index: {}]
  %s1 = sld [smem:[%s0]]
  %s2 = scalar_lea.smem %s0, 1
  %s3 = sld [smem:[%s2]]
  %s4 = scalar_lea.smem %s0, 2
  %s5 = sld [smem:[%s4]]
  %s6 = scalar_lea.smem %s0, 3
  %s7 = sld [smem:[%s6]]
  %s8 = scalar_lea.smem %s0, 4
  %s9 = sld [smem:[%s8]]
  %s10 = scalar_lea.smem %s0, 5
  %s11 = sld [smem:[%s10]]
  %s12 = scalar_lea.smem %s0, 6
  %s13 = sld [smem:[%s12]]
  %s14 = scalar_lea.smem %s0, 7
  %s15 = sld [smem:[%s14]]
  %s16 = scalar_lea.smem %s0, 8
  %s17 = sld [smem:[%s16]]
  %s18 = scalar_lea.smem %s0, 9
  %s19 = sld [smem:[%s18]]
  %s20 = scalar_lea.smem %s0, 10
  %s21 = sld [smem:[%s20]]
  %s22 = scalar_lea.smem %s0, 11
  %s23 = sld [smem:[%s22]]
  %s24 = scalar_lea.smem %s0, 12
  %s25 = sld [smem:[%s24]]
  %s26 = scalar_lea.smem %s0, 13
  %s27 = sld [smem:[%s26]]
  %s28 = scalar_lea.smem %s0, 14
  %s29 = sld [smem:[%s28]]
  %s30 = scalar_lea.smem %s0, 15
  %s31 = sld [smem:[%s30]]
  %s32 = scalar_lea.smem %s0, 16
  %s33 = sld [smem:[%s32]]
  %s34 = scalar_lea.smem %s0, 17
  %s35 = sld [smem:[%s34]]
  %s36 = scalar_lea.smem %s0, 18
  %s37 = sld [smem:[%s36]]
  %s38 = scalar_lea.smem %s0, 19
  %s39 = sld [smem:[%s38]]
  %s40 = scalar_lea.smem %s0, 20
  %s41 = sld [smem:[%s40]]
  %s42 = scalar_lea.smem %s0, 21
  %s43 = sld [smem:[%s42]]
  %s44 = scalar_lea.smem %s0, 22
  %s45 = sld [smem:[%s44]]
  %s46 = scalar_lea.smem %s0, 23
  %s47 = sld [smem:[%s46]]
  %s48 = scalar_lea.smem %s0, 24
  %s49 = sld [smem:[%s48]]
  %s50 = scalar_lea.smem %s0, 25
  %s51 = sld [smem:[%s50]]
  %s52 = scalar_lea.smem %s0, 26
  %s53 = sld [smem:[%s52]]
  %s54 = scalar_lea.smem %s0, 27
  %s55 = sld [smem:[%s54]]
  %s56 = scalar_lea.smem %s0, 28
  %s57 = sld [smem:[%s56]]
  %s58 = scalar_lea.smem %s0, 29
  %s59 = sld [smem:[%s58]]
  %s60 = scalar_lea.smem %s0, 30
  %s61 = sld [smem:[%s60]]
  %s62 = scalar_lea.smem %s0, 31
  %s63 = sld [smem:[%s62]]
  %s64 = scalar_lea.smem %s0, 32
  %s65 = sld [smem:[%s64]]
  %s66 = scalar_lea.smem %s0, 33
  %s67 = sld [smem:[%s66]]
  %s68 = scalar_lea.smem %s0, 34
  %s69 = sld [smem:[%s68]]
  %s70 = scalar_lea.smem %s0, 35
  %s71 = sld [smem:[%s70]]
  %s72 = sld [smem:[#allocation0]]
  $region173: #{seq2seq_forward.1} parent=0
    _
  %s74 = ssub.s32 1, %s72
  %s75 = scalar_select 0, %s74, %s72
  loop: start=0, step=1, limit=4
  $region2: #{seq2seq_forward.1} parent=0 // loop_pre_header
    _
  $region3: #{seq2seq_forward.1} parent=0 // loop_header
    %s77 = sphi 0, %s81
    %p78 = scmp.ge.s32.totalorder %s77, 4
    %s87 = sphi 0, %s89
    %s90 = sphi 0, %s87
    %s91 = sphi 0, %s90
    %s107 = sphi 0, %s91
    %s113 = sphi 0, %s115
    %s116 = sphi 0, %s113
    %s117 = sphi 0, %s116
    %s133 = sphi 0, %s117
    %s139 = sphi 0, %s141
    %s142 = sphi 0, %s139
    %s143 = sphi 0, %s142
    %s159 = sphi 0, %s143
    %s165 = sphi 0, %s167
    %s168 = sphi 0, %s165
    %s169 = sphi 0, %s168
    %s185 = sphi 0, %s169
    %s191 = sphi 0, %s193
    %s194 = sphi 0, %s191
    %s195 = sphi 0, %s194
    %s211 = sphi 0, %s195
    %s215 = sphi 0, %s215
    %s217 = sphi 0, %s215
    %s218 = sphi 0, %s217
    %s232 = sphi 0, %s218
    %s236 = sphi 0, %s236
    %s238 = sphi 0, %s236
    %s239 = sphi 0, %s238
    %s253 = sphi 0, %s239
    %s257 = sphi 0, %s257
    %s259 = sphi 0, %s257
    %s260 = sphi 0, %s259
    %s274 = sphi 0, %s260
    %s278 = sphi 0, %s278
    %s280 = sphi 0, %s278
    %s281 = sphi 0, %s280
    %s295 = sphi 0, %s281
    %s299 = sphi 0, %s299
    %s301 = sphi 0, %s299
    %s302 = sphi 0, %s301
    %s316 = sphi 0, %s302
    %s320 = sphi 0, %s320
    %s322 = sphi 0, %s320
    %s323 = sphi 0, %s322
    %s337 = sphi 0, %s323
    %s341 = sphi 0, %s341
    %s343 = sphi 0, %s341
    %s344 = sphi 0, %s343
    %s358 = sphi 0, %s344
    %s362 = sphi 0, %s362
    %s364 = sphi 0, %s362
    %s365 = sphi 0, %s364
    %s379 = sphi 0, %s365
    %s383 = sphi 0, %s383
    %s385 = sphi 0, %s383
    %s386 = sphi 0, %s385
    %s400 = sphi 0, %s386
    %s404 = sphi 0, %s404
    %s406 = sphi 0, %s404
    %s407 = sphi 0, %s406
    %s421 = sphi 0, %s407
    %s425 = sphi 0, %s425
    %s427 = sphi 0, %s425
    %s428 = sphi 0, %s427
    %s442 = sphi 0, %s428
    %s446 = sphi 0, %s446
    %s448 = sphi 0, %s446
    %s449 = sphi 0, %s448
    %s463 = sphi 0, %s449
    %s467 = sphi 0, %s467
    %s469 = sphi 0, %s467
    %s470 = sphi 0, %s469
    %s484 = sphi 0, %s470
    %s488 = sphi 0, %s488
    %s490 = sphi 0, %s488
    %s491 = sphi 0, %s490
    %s505 = sphi 0, %s491
    %s509 = sphi 0, %s509
    %s511 = sphi 0, %s509
    %s512 = sphi 0, %s511
    %s526 = sphi 0, %s512
    %s530 = sphi 0, %s530
    %s532 = sphi 0, %s530
    %s533 = sphi 0, %s532
    %s547 = sphi 0, %s533
    %s551 = sphi 0, %s551
    %s553 = sphi 0, %s551
    %s554 = sphi 0, %s553
    %s568 = sphi 0, %s554
    %s572 = sphi 0, %s572
    %s574 = sphi 0, %s572
    %s575 = sphi 0, %s574
    %s589 = sphi 0, %s575
    %s593 = sphi 0, %s593
    %s595 = sphi 0, %s593
    %s596 = sphi 0, %s595
    %s610 = sphi 0, %s596
    %s614 = sphi 0, %s614
    %s616 = sphi 0, %s614
    %s617 = sphi 0, %s616
    %s631 = sphi 0, %s617
    %s635 = sphi 0, %s635
    %s637 = sphi 0, %s635
    %s638 = sphi 0, %s637
    %s652 = sphi 0, %s638
    %s656 = sphi 0, %s656
    %s658 = sphi 0, %s656
    %s659 = sphi 0, %s658
    %s673 = sphi 0, %s659
    %s677 = sphi 0, %s677
    %s679 = sphi 0, %s677
    %s680 = sphi 0, %s679
    %s694 = sphi 0, %s680
    %s698 = sphi 0, %s698
    %s700 = sphi 0, %s698
    %s701 = sphi 0, %s700
    %s715 = sphi 0, %s701
    %s719 = sphi 0, %s719
    %s721 = sphi 0, %s719
    %s722 = sphi 0, %s721
    %s736 = sphi 0, %s722
    %s740 = sphi 0, %s740
    %s742 = sphi 0, %s740
    %s743 = sphi 0, %s742
    %s757 = sphi 0, %s743
    %s761 = sphi 0, %s761
    %s763 = sphi 0, %s761
    %s764 = sphi 0, %s763
    %s778 = sphi 0, %s764
    %s782 = sphi 0, %s782
    %s784 = sphi 0, %s782
    %s785 = sphi 0, %s784
    %s799 = sphi 0, %s785
    %s803 = sphi 0, %s803
    %s805 = sphi 0, %s803
    %s806 = sphi 0, %s805
    %s820 = sphi 0, %s806
    %s824 = sphi 0, %s824
    %s826 = sphi 0, %s824
    %s827 = sphi 0, %s826
    %s841 = sphi 0, %s827
    %s847 = sphi 0, %s849
    %s850 = sphi 0, %s847
    %s851 = sphi 0, %s850
    %s867 = sphi 0, %s851
  $region4: #{seq2seq_forward.1} parent=0 // loop_header_branch
    %80 = sbr.rel (%p78) target = $region8
  $region5: #{seq2seq_forward.1} parent=0 // loop_body
    %s82 = ssub.s32 %s77, 1
    %s83 = ssub.s32 %s77, 2
    %s84 = sadd.s32 %s77, 1
    %s85 = ssub.s32 %s77, %s84
    %p86 = scmp.eq.s32.totalorder %s85, 0
    %s88 = sadd.s32 %s87, 1
    %s89 = scalar_select %p86, %s87, %s88
    %p92 = pneg %p86
    %p93 = scmp.eq.s32.totalorder %s77, 1
    %p94 = por %p92, %p93
    %p95 = scmp.ne.s32.totalorder %s87, %s90
    %p96 = scmp.eq.s32.totalorder %s77, 0
    %p97 = por %p95, %p96
    %p98 = scmp.ne.s32.totalorder %s87, %s90
    %p99 = scmp.eq.s32.totalorder %s82, 1
    %p100 = por %p98, %p99
    %p101 = scmp.ne.s32.totalorder %s90, %s91
    %p102 = scmp.eq.s32.totalorder %s82, 0
    %p103 = por %p101, %p102
    %p104 = scmp.ne.s32.totalorder %s90, %s91
    %p105 = scmp.eq.s32.totalorder %s83, 1
    %p106 = por %p104, %p105
    %p108 = scmp.ne.s32.totalorder %s91, %s107
    %p109 = scmp.eq.s32.totalorder %s83, 0
    %p110 = por %p108, %p109
    %s111 = ssub.s32 %s77, %s84
    %p112 = scmp.eq.s32.totalorder %s111, 0
    %s114 = sadd.s32 %s113, 1
    %s115 = scalar_select %p112, %s113, %s114
    %p118 = pneg %p112
    %p119 = scmp.eq.s32.totalorder %s77, 1
    %p120 = por %p118, %p119
    %p121 = scmp.ne.s32.totalorder %s113, %s116
    %p122 = scmp.eq.s32.totalorder %s77, 0
    %p123 = por %p121, %p122
    %p124 = scmp.ne.s32.totalorder %s113, %s116
    %p125 = scmp.eq.s32.totalorder %s82, 1
    %p126 = por %p124, %p125
    %p127 = scmp.ne.s32.totalorder %s116, %s117
    %p128 = scmp.eq.s32.totalorder %s82, 0
    %p129 = por %p127, %p128
    %p130 = scmp.ne.s32.totalorder %s116, %s117
    %p131 = scmp.eq.s32.totalorder %s83, 1
    %p132 = por %p130, %p131
    %p134 = scmp.ne.s32.totalorder %s117, %s133
    %p135 = scmp.eq.s32.totalorder %s83, 0
    %p136 = por %p134, %p135
    %s137 = ssub.s32 %s77, %s84
    %p138 = scmp.eq.s32.totalorder %s137, 0
    %s140 = sadd.s32 %s139, 1
    %s141 = scalar_select %p138, %s139, %s140
    %p144 = pneg %p138
    %p145 = scmp.eq.s32.totalorder %s77, 1
    %p146 = por %p144, %p145
    %p147 = scmp.ne.s32.totalorder %s139, %s142
    %p148 = scmp.eq.s32.totalorder %s77, 0
    %p149 = por %p147, %p148
    %p150 = scmp.ne.s32.totalorder %s139, %s142
    %p151 = scmp.eq.s32.totalorder %s82, 1
    %p152 = por %p150, %p151
    %p153 = scmp.ne.s32.totalorder %s142, %s143
    %p154 = scmp.eq.s32.totalorder %s82, 0
    %p155 = por %p153, %p154
    %p156 = scmp.ne.s32.totalorder %s142, %s143
    %p157 = scmp.eq.s32.totalorder %s83, 1
    %p158 = por %p156, %p157
    %p160 = scmp.ne.s32.totalorder %s143, %s159
    %p161 = scmp.eq.s32.totalorder %s83, 0
    %p162 = por %p160, %p161
    %s163 = ssub.s32 %s77, %s84
    %p164 = scmp.eq.s32.totalorder %s163, 0
    %s166 = sadd.s32 %s165, 1
    %s167 = scalar_select %p164, %s165, %s166
    %p170 = pneg %p164
    %p171 = scmp.eq.s32.totalorder %s77, 1
    %p172 = por %p170, %p171
    %p173 = scmp.ne.s32.totalorder %s165, %s168
    %p174 = scmp.eq.s32.totalorder %s77, 0
    %p175 = por %p173, %p174
    %p176 = scmp.ne.s32.totalorder %s165, %s168
    %p177 = scmp.eq.s32.totalorder %s82, 1
    %p178 = por %p176, %p177
    %p179 = scmp.ne.s32.totalorder %s168, %s169
    %p180 = scmp.eq.s32.totalorder %s82, 0
    %p181 = por %p179, %p180
    %p182 = scmp.ne.s32.totalorder %s168, %s169
    %p183 = scmp.eq.s32.totalorder %s83, 1
    %p184 = por %p182, %p183
    %p186 = scmp.ne.s32.totalorder %s169, %s185
    %p187 = scmp.eq.s32.totalorder %s83, 0
    %p188 = por %p186, %p187
    %s189 = ssub.s32 %s77, %s84
    %p190 = scmp.eq.s32.totalorder %s189, 0
    %s192 = sadd.s32 %s191, 1
    %s193 = scalar_select %p190, %s191, %s192
    %p196 = pneg %p190
    %p197 = scmp.eq.s32.totalorder %s77, 1
    %p198 = por %p196, %p197
    %p199 = scmp.ne.s32.totalorder %s191, %s194
    %p200 = scmp.eq.s32.totalorder %s77, 0
    %p201 = por %p199, %p200
    %p202 = scmp.ne.s32.totalorder %s191, %s194
    %p203 = scmp.eq.s32.totalorder %s82, 1
    %p204 = por %p202, %p203
    %p205 = scmp.ne.s32.totalorder %s194, %s195
    %p206 = scmp.eq.s32.totalorder %s82, 0
    %p207 = por %p205, %p206
    %p208 = scmp.ne.s32.totalorder %s194, %s195
    %p209 = scmp.eq.s32.totalorder %s83, 1
    %p210 = por %p208, %p209
    %p212 = scmp.ne.s32.totalorder %s195, %s211
    %p213 = scmp.eq.s32.totalorder %s83, 0
    %p214 = por %p212, %p213
    %s216 = sadd.s32 %s215, 1
    %p219 = scmp.eq.s32.totalorder %s77, 1
    %p220 = scmp.ne.s32.totalorder %s215, %s217
    %p221 = scmp.eq.s32.totalorder %s77, 0
    %p222 = por %p220, %p221
    %p223 = scmp.ne.s32.totalorder %s215, %s217
    %p224 = scmp.eq.s32.totalorder %s82, 1
    %p225 = por %p223, %p224
    %p226 = scmp.ne.s32.totalorder %s217, %s218
    %p227 = scmp.eq.s32.totalorder %s82, 0
    %p228 = por %p226, %p227
    %p229 = scmp.ne.s32.totalorder %s217, %s218
    %p230 = scmp.eq.s32.totalorder %s83, 1
    %p231 = por %p229, %p230
    %p233 = scmp.ne.s32.totalorder %s218, %s232
    %p234 = scmp.eq.s32.totalorder %s83, 0
    %p235 = por %p233, %p234
    %s237 = sadd.s32 %s236, 1
    %p240 = scmp.eq.s32.totalorder %s77, 1
    %p241 = scmp.ne.s32.totalorder %s236, %s238
    %p242 = scmp.eq.s32.totalorder %s77, 0
    %p243 = por %p241, %p242
    %p244 = scmp.ne.s32.totalorder %s236, %s238
    %p245 = scmp.eq.s32.totalorder %s82, 1
    %p246 = por %p244, %p245
    %p247 = scmp.ne.s32.totalorder %s238, %s239
    %p248 = scmp.eq.s32.totalorder %s82, 0
    %p249 = por %p247, %p248
    %p250 = scmp.ne.s32.totalorder %s238, %s239
    %p251 = scmp.eq.s32.totalorder %s83, 1
    %p252 = por %p250, %p251
    %p254 = scmp.ne.s32.totalorder %s239, %s253
    %p255 = scmp.eq.s32.totalorder %s83, 0
    %p256 = por %p254, %p255
    %s258 = sadd.s32 %s257, 1
    %p261 = scmp.eq.s32.totalorder %s77, 1
    %p262 = scmp.ne.s32.totalorder %s257, %s259
    %p263 = scmp.eq.s32.totalorder %s77, 0
    %p264 = por %p262, %p263
    %p265 = scmp.ne.s32.totalorder %s257, %s259
    %p266 = scmp.eq.s32.totalorder %s82, 1
    %p267 = por %p265, %p266
    %p268 = scmp.ne.s32.totalorder %s259, %s260
    %p269 = scmp.eq.s32.totalorder %s82, 0
    %p270 = por %p268, %p269
    %p271 = scmp.ne.s32.totalorder %s259, %s260
    %p272 = scmp.eq.s32.totalorder %s83, 1
    %p273 = por %p271, %p272
    %p275 = scmp.ne.s32.totalorder %s260, %s274
    %p276 = scmp.eq.s32.totalorder %s83, 0
    %p277 = por %p275, %p276
    %s279 = sadd.s32 %s278, 1
    %p282 = scmp.eq.s32.totalorder %s77, 1
    %p283 = scmp.ne.s32.totalorder %s278, %s280
    %p284 = scmp.eq.s32.totalorder %s77, 0
    %p285 = por %p283, %p284
    %p286 = scmp.ne.s32.totalorder %s278, %s280
    %p287 = scmp.eq.s32.totalorder %s82, 1
    %p288 = por %p286, %p287
    %p289 = scmp.ne.s32.totalorder %s280, %s281
    %p290 = scmp.eq.s32.totalorder %s82, 0
    %p291 = por %p289, %p290
    %p292 = scmp.ne.s32.totalorder %s280, %s281
    %p293 = scmp.eq.s32.totalorder %s83, 1
    %p294 = por %p292, %p293
    %p296 = scmp.ne.s32.totalorder %s281, %s295
    %p297 = scmp.eq.s32.totalorder %s83, 0
    %p298 = por %p296, %p297
    %s300 = sadd.s32 %s299, 1
    %p303 = scmp.eq.s32.totalorder %s77, 1
    %p304 = scmp.ne.s32.totalorder %s299, %s301
    %p305 = scmp.eq.s32.totalorder %s77, 0
    %p306 = por %p304, %p305
    %p307 = scmp.ne.s32.totalorder %s299, %s301
    %p308 = scmp.eq.s32.totalorder %s82, 1
    %p309 = por %p307, %p308
    %p310 = scmp.ne.s32.totalorder %s301, %s302
    %p311 = scmp.eq.s32.totalorder %s82, 0
    %p312 = por %p310, %p311
    %p313 = scmp.ne.s32.totalorder %s301, %s302
    %p314 = scmp.eq.s32.totalorder %s83, 1
    %p315 = por %p313, %p314
    %p317 = scmp.ne.s32.totalorder %s302, %s316
    %p318 = scmp.eq.s32.totalorder %s83, 0
    %p319 = por %p317, %p318
    %s321 = sadd.s32 %s320, 1
    %p324 = scmp.eq.s32.totalorder %s77, 1
    %p325 = scmp.ne.s32.totalorder %s320, %s322
    %p326 = scmp.eq.s32.totalorder %s77, 0
    %p327 = por %p325, %p326
    %p328 = scmp.ne.s32.totalorder %s320, %s322
    %p329 = scmp.eq.s32.totalorder %s82, 1
    %p330 = por %p328, %p329
    %p331 = scmp.ne.s32.totalorder %s322, %s323
    %p332 = scmp.eq.s32.totalorder %s82, 0
    %p333 = por %p331, %p332
    %p334 = scmp.ne.s32.totalorder %s322, %s323
    %p335 = scmp.eq.s32.totalorder %s83, 1
    %p336 = por %p334, %p335
    %p338 = scmp.ne.s32.totalorder %s323, %s337
    %p339 = scmp.eq.s32.totalorder %s83, 0
    %p340 = por %p338, %p339
    %s342 = sadd.s32 %s341, 1
    %p345 = scmp.eq.s32.totalorder %s77, 1
    %p346 = scmp.ne.s32.totalorder %s341, %s343
    %p347 = scmp.eq.s32.totalorder %s77, 0
    %p348 = por %p346, %p347
    %p349 = scmp.ne.s32.totalorder %s341, %s343
    %p350 = scmp.eq.s32.totalorder %s82, 1
    %p351 = por %p349, %p350
    %p352 = scmp.ne.s32.totalorder %s343, %s344
    %p353 = scmp.eq.s32.totalorder %s82, 0
    %p354 = por %p352, %p353
    %p355 = scmp.ne.s32.totalorder %s343, %s344
    %p356 = scmp.eq.s32.totalorder %s83, 1
    %p357 = por %p355, %p356
    %p359 = scmp.ne.s32.totalorder %s344, %s358
    %p360 = scmp.eq.s32.totalorder %s83, 0
    %p361 = por %p359, %p360
    %s363 = sadd.s32 %s362, 1
    %p366 = scmp.eq.s32.totalorder %s77, 1
    %p367 = scmp.ne.s32.totalorder %s362, %s364
    %p368 = scmp.eq.s32.totalorder %s77, 0
    %p369 = por %p367, %p368
    %p370 = scmp.ne.s32.totalorder %s362, %s364
    %p371 = scmp.eq.s32.totalorder %s82, 1
    %p372 = por %p370, %p371
    %p373 = scmp.ne.s32.totalorder %s364, %s365
    %p374 = scmp.eq.s32.totalorder %s82, 0
    %p375 = por %p373, %p374
    %p376 = scmp.ne.s32.totalorder %s364, %s365
    %p377 = scmp.eq.s32.totalorder %s83, 1
    %p378 = por %p376, %p377
    %p380 = scmp.ne.s32.totalorder %s365, %s379
    %p381 = scmp.eq.s32.totalorder %s83, 0
    %p382 = por %p380, %p381
    %s384 = sadd.s32 %s383, 1
    %p387 = scmp.eq.s32.totalorder %s77, 1
    %p388 = scmp.ne.s32.totalorder %s383, %s385
    %p389 = scmp.eq.s32.totalorder %s77, 0
    %p390 = por %p388, %p389
    %p391 = scmp.ne.s32.totalorder %s383, %s385
    %p392 = scmp.eq.s32.totalorder %s82, 1
    %p393 = por %p391, %p392
    %p394 = scmp.ne.s32.totalorder %s385, %s386
    %p395 = scmp.eq.s32.totalorder %s82, 0
    %p396 = por %p394, %p395
    %p397 = scmp.ne.s32.totalorder %s385, %s386
    %p398 = scmp.eq.s32.totalorder %s83, 1
    %p399 = por %p397, %p398
    %p401 = scmp.ne.s32.totalorder %s386, %s400
    %p402 = scmp.eq.s32.totalorder %s83, 0
    %p403 = por %p401, %p402
    %s405 = sadd.s32 %s404, 1
    %p408 = scmp.eq.s32.totalorder %s77, 1
    %p409 = scmp.ne.s32.totalorder %s404, %s406
    %p410 = scmp.eq.s32.totalorder %s77, 0
    %p411 = por %p409, %p410
    %p412 = scmp.ne.s32.totalorder %s404, %s406
    %p413 = scmp.eq.s32.totalorder %s82, 1
    %p414 = por %p412, %p413
    %p415 = scmp.ne.s32.totalorder %s406, %s407
    %p416 = scmp.eq.s32.totalorder %s82, 0
    %p417 = por %p415, %p416
    %p418 = scmp.ne.s32.totalorder %s406, %s407
    %p419 = scmp.eq.s32.totalorder %s83, 1
    %p420 = por %p418, %p419
    %p422 = scmp.ne.s32.totalorder %s407, %s421
    %p423 = scmp.eq.s32.totalorder %s83, 0
    %p424 = por %p422, %p423
    %s426 = sadd.s32 %s425, 1
    %p429 = scmp.eq.s32.totalorder %s77, 1
    %p430 = scmp.ne.s32.totalorder %s425, %s427
    %p431 = scmp.eq.s32.totalorder %s77, 0
    %p432 = por %p430, %p431
    %p433 = scmp.ne.s32.totalorder %s425, %s427
    %p434 = scmp.eq.s32.totalorder %s82, 1
    %p435 = por %p433, %p434
    %p436 = scmp.ne.s32.totalorder %s427, %s428
    %p437 = scmp.eq.s32.totalorder %s82, 0
    %p438 = por %p436, %p437
    %p439 = scmp.ne.s32.totalorder %s427, %s428
    %p440 = scmp.eq.s32.totalorder %s83, 1
    %p441 = por %p439, %p440
    %p443 = scmp.ne.s32.totalorder %s428, %s442
    %p444 = scmp.eq.s32.totalorder %s83, 0
    %p445 = por %p443, %p444
    %s447 = sadd.s32 %s446, 1
    %p450 = scmp.eq.s32.totalorder %s77, 1
    %p451 = scmp.ne.s32.totalorder %s446, %s448
    %p452 = scmp.eq.s32.totalorder %s77, 0
    %p453 = por %p451, %p452
    %p454 = scmp.ne.s32.totalorder %s446, %s448
    %p455 = scmp.eq.s32.totalorder %s82, 1
    %p456 = por %p454, %p455
    %p457 = scmp.ne.s32.totalorder %s448, %s449
    %p458 = scmp.eq.s32.totalorder %s82, 0
    %p459 = por %p457, %p458
    %p460 = scmp.ne.s32.totalorder %s448, %s449
    %p461 = scmp.eq.s32.totalorder %s83, 1
    %p462 = por %p460, %p461
    %p464 = scmp.ne.s32.totalorder %s449, %s463
    %p465 = scmp.eq.s32.totalorder %s83, 0
    %p466 = por %p464, %p465
    %s468 = sadd.s32 %s467, 1
    %p471 = scmp.eq.s32.totalorder %s77, 1
    %p472 = scmp.ne.s32.totalorder %s467, %s469
    %p473 = scmp.eq.s32.totalorder %s77, 0
    %p474 = por %p472, %p473
    %p475 = scmp.ne.s32.totalorder %s467, %s469
    %p476 = scmp.eq.s32.totalorder %s82, 1
    %p477 = por %p475, %p476
    %p478 = scmp.ne.s32.totalorder %s469, %s470
    %p479 = scmp.eq.s32.totalorder %s82, 0
    %p480 = por %p478, %p479
    %p481 = scmp.ne.s32.totalorder %s469, %s470
    %p482 = scmp.eq.s32.totalorder %s83, 1
    %p483 = por %p481, %p482
    %p485 = scmp.ne.s32.totalorder %s470, %s484
    %p486 = scmp.eq.s32.totalorder %s83, 0
    %p487 = por %p485, %p486
    %s489 = sadd.s32 %s488, 1
    %p492 = scmp.eq.s32.totalorder %s77, 1
    %p493 = scmp.ne.s32.totalorder %s488, %s490
    %p494 = scmp.eq.s32.totalorder %s77, 0
    %p495 = por %p493, %p494
    %p496 = scmp.ne.s32.totalorder %s488, %s490
    %p497 = scmp.eq.s32.totalorder %s82, 1
    %p498 = por %p496, %p497
    %p499 = scmp.ne.s32.totalorder %s490, %s491
    %p500 = scmp.eq.s32.totalorder %s82, 0
    %p501 = por %p499, %p500
    %p502 = scmp.ne.s32.totalorder %s490, %s491
    %p503 = scmp.eq.s32.totalorder %s83, 1
    %p504 = por %p502, %p503
    %p506 = scmp.ne.s32.totalorder %s491, %s505
    %p507 = scmp.eq.s32.totalorder %s83, 0
    %p508 = por %p506, %p507
    %s510 = sadd.s32 %s509, 1
    %p513 = scmp.eq.s32.totalorder %s77, 1
    %p514 = scmp.ne.s32.totalorder %s509, %s511
    %p515 = scmp.eq.s32.totalorder %s77, 0
    %p516 = por %p514, %p515
    %p517 = scmp.ne.s32.totalorder %s509, %s511
    %p518 = scmp.eq.s32.totalorder %s82, 1
    %p519 = por %p517, %p518
    %p520 = scmp.ne.s32.totalorder %s511, %s512
    %p521 = scmp.eq.s32.totalorder %s82, 0
    %p522 = por %p520, %p521
    %p523 = scmp.ne.s32.totalorder %s511, %s512
    %p524 = scmp.eq.s32.totalorder %s83, 1
    %p525 = por %p523, %p524
    %p527 = scmp.ne.s32.totalorder %s512, %s526
    %p528 = scmp.eq.s32.totalorder %s83, 0
    %p529 = por %p527, %p528
    %s531 = sadd.s32 %s530, 1
    %p534 = scmp.eq.s32.totalorder %s77, 1
    %p535 = scmp.ne.s32.totalorder %s530, %s532
    %p536 = scmp.eq.s32.totalorder %s77, 0
    %p537 = por %p535, %p536
    %p538 = scmp.ne.s32.totalorder %s530, %s532
    %p539 = scmp.eq.s32.totalorder %s82, 1
    %p540 = por %p538, %p539
    %p541 = scmp.ne.s32.totalorder %s532, %s533
    %p542 = scmp.eq.s32.totalorder %s82, 0
    %p543 = por %p541, %p542
    %p544 = scmp.ne.s32.totalorder %s532, %s533
    %p545 = scmp.eq.s32.totalorder %s83, 1
    %p546 = por %p544, %p545
    %p548 = scmp.ne.s32.totalorder %s533, %s547
    %p549 = scmp.eq.s32.totalorder %s83, 0
    %p550 = por %p548, %p549
    %s552 = sadd.s32 %s551, 1
    %p555 = scmp.eq.s32.totalorder %s77, 1
    %p556 = scmp.ne.s32.totalorder %s551, %s553
    %p557 = scmp.eq.s32.totalorder %s77, 0
    %p558 = por %p556, %p557
    %p559 = scmp.ne.s32.totalorder %s551, %s553
    %p560 = scmp.eq.s32.totalorder %s82, 1
    %p561 = por %p559, %p560
    %p562 = scmp.ne.s32.totalorder %s553, %s554
    %p563 = scmp.eq.s32.totalorder %s82, 0
    %p564 = por %p562, %p563
    %p565 = scmp.ne.s32.totalorder %s553, %s554
    %p566 = scmp.eq.s32.totalorder %s83, 1
    %p567 = por %p565, %p566
    %p569 = scmp.ne.s32.totalorder %s554, %s568
    %p570 = scmp.eq.s32.totalorder %s83, 0
    %p571 = por %p569, %p570
    %s573 = sadd.s32 %s572, 1
    %p576 = scmp.eq.s32.totalorder %s77, 1
    %p577 = scmp.ne.s32.totalorder %s572, %s574
    %p578 = scmp.eq.s32.totalorder %s77, 0
    %p579 = por %p577, %p578
    %p580 = scmp.ne.s32.totalorder %s572, %s574
    %p581 = scmp.eq.s32.totalorder %s82, 1
    %p582 = por %p580, %p581
    %p583 = scmp.ne.s32.totalorder %s574, %s575
    %p584 = scmp.eq.s32.totalorder %s82, 0
    %p585 = por %p583, %p584
    %p586 = scmp.ne.s32.totalorder %s574, %s575
    %p587 = scmp.eq.s32.totalorder %s83, 1
    %p588 = por %p586, %p587
    %p590 = scmp.ne.s32.totalorder %s575, %s589
    %p591 = scmp.eq.s32.totalorder %s83, 0
    %p592 = por %p590, %p591
    %s594 = sadd.s32 %s593, 1
    %p597 = scmp.eq.s32.totalorder %s77, 1
    %p598 = scmp.ne.s32.totalorder %s593, %s595
    %p599 = scmp.eq.s32.totalorder %s77, 0
    %p600 = por %p598, %p599
    %p601 = scmp.ne.s32.totalorder %s593, %s595
    %p602 = scmp.eq.s32.totalorder %s82, 1
    %p603 = por %p601, %p602
    %p604 = scmp.ne.s32.totalorder %s595, %s596
    %p605 = scmp.eq.s32.totalorder %s82, 0
    %p606 = por %p604, %p605
    %p607 = scmp.ne.s32.totalorder %s595, %s596
    %p608 = scmp.eq.s32.totalorder %s83, 1
    %p609 = por %p607, %p608
    %p611 = scmp.ne.s32.totalorder %s596, %s610
    %p612 = scmp.eq.s32.totalorder %s83, 0
    %p613 = por %p611, %p612
    %s615 = sadd.s32 %s614, 1
    %p618 = scmp.eq.s32.totalorder %s77, 1
    %p619 = scmp.ne.s32.totalorder %s614, %s616
    %p620 = scmp.eq.s32.totalorder %s77, 0
    %p621 = por %p619, %p620
    %p622 = scmp.ne.s32.totalorder %s614, %s616
    %p623 = scmp.eq.s32.totalorder %s82, 1
    %p624 = por %p622, %p623
    %p625 = scmp.ne.s32.totalorder %s616, %s617
    %p626 = scmp.eq.s32.totalorder %s82, 0
    %p627 = por %p625, %p626
    %p628 = scmp.ne.s32.totalorder %s616, %s617
    %p629 = scmp.eq.s32.totalorder %s83, 1
    %p630 = por %p628, %p629
    %p632 = scmp.ne.s32.totalorder %s617, %s631
    %p633 = scmp.eq.s32.totalorder %s83, 0
    %p634 = por %p632, %p633
    %s636 = sadd.s32 %s635, 1
    %p639 = scmp.eq.s32.totalorder %s77, 1
    %p640 = scmp.ne.s32.totalorder %s635, %s637
    %p641 = scmp.eq.s32.totalorder %s77, 0
    %p642 = por %p640, %p641
    %p643 = scmp.ne.s32.totalorder %s635, %s637
    %p644 = scmp.eq.s32.totalorder %s82, 1
    %p645 = por %p643, %p644
    %p646 = scmp.ne.s32.totalorder %s637, %s638
    %p647 = scmp.eq.s32.totalorder %s82, 0
    %p648 = por %p646, %p647
    %p649 = scmp.ne.s32.totalorder %s637, %s638
    %p650 = scmp.eq.s32.totalorder %s83, 1
    %p651 = por %p649, %p650
    %p653 = scmp.ne.s32.totalorder %s638, %s652
    %p654 = scmp.eq.s32.totalorder %s83, 0
    %p655 = por %p653, %p654
    %s657 = sadd.s32 %s656, 1
    %p660 = scmp.eq.s32.totalorder %s77, 1
    %p661 = scmp.ne.s32.totalorder %s656, %s658
    %p662 = scmp.eq.s32.totalorder %s77, 0
    %p663 = por %p661, %p662
    %p664 = scmp.ne.s32.totalorder %s656, %s658
    %p665 = scmp.eq.s32.totalorder %s82, 1
    %p666 = por %p664, %p665
    %p667 = scmp.ne.s32.totalorder %s658, %s659
    %p668 = scmp.eq.s32.totalorder %s82, 0
    %p669 = por %p667, %p668
    %p670 = scmp.ne.s32.totalorder %s658, %s659
    %p671 = scmp.eq.s32.totalorder %s83, 1
    %p672 = por %p670, %p671
    %p674 = scmp.ne.s32.totalorder %s659, %s673
    %p675 = scmp.eq.s32.totalorder %s83, 0
    %p676 = por %p674, %p675
    %s678 = sadd.s32 %s677, 1
    %p681 = scmp.eq.s32.totalorder %s77, 1
    %p682 = scmp.ne.s32.totalorder %s677, %s679
    %p683 = scmp.eq.s32.totalorder %s77, 0
    %p684 = por %p682, %p683
    %p685 = scmp.ne.s32.totalorder %s677, %s679
    %p686 = scmp.eq.s32.totalorder %s82, 1
    %p687 = por %p685, %p686
    %p688 = scmp.ne.s32.totalorder %s679, %s680
    %p689 = scmp.eq.s32.totalorder %s82, 0
    %p690 = por %p688, %p689
    %p691 = scmp.ne.s32.totalorder %s679, %s680
    %p692 = scmp.eq.s32.totalorder %s83, 1
    %p693 = por %p691, %p692
    %p695 = scmp.ne.s32.totalorder %s680, %s694
    %p696 = scmp.eq.s32.totalorder %s83, 0
    %p697 = por %p695, %p696
    %s699 = sadd.s32 %s698, 1
    %p702 = scmp.eq.s32.totalorder %s77, 1
    %p703 = scmp.ne.s32.totalorder %s698, %s700
    %p704 = scmp.eq.s32.totalorder %s77, 0
    %p705 = por %p703, %p704
    %p706 = scmp.ne.s32.totalorder %s698, %s700
    %p707 = scmp.eq.s32.totalorder %s82, 1
    %p708 = por %p706, %p707
    %p709 = scmp.ne.s32.totalorder %s700, %s701
    %p710 = scmp.eq.s32.totalorder %s82, 0
    %p711 = por %p709, %p710
    %p712 = scmp.ne.s32.totalorder %s700, %s701
    %p713 = scmp.eq.s32.totalorder %s83, 1
    %p714 = por %p712, %p713
    %p716 = scmp.ne.s32.totalorder %s701, %s715
    %p717 = scmp.eq.s32.totalorder %s83, 0
    %p718 = por %p716, %p717
    %s720 = sadd.s32 %s719, 1
    %p723 = scmp.eq.s32.totalorder %s77, 1
    %p724 = scmp.ne.s32.totalorder %s719, %s721
    %p725 = scmp.eq.s32.totalorder %s77, 0
    %p726 = por %p724, %p725
    %p727 = scmp.ne.s32.totalorder %s719, %s721
    %p728 = scmp.eq.s32.totalorder %s82, 1
    %p729 = por %p727, %p728
    %p730 = scmp.ne.s32.totalorder %s721, %s722
    %p731 = scmp.eq.s32.totalorder %s82, 0
    %p732 = por %p730, %p731
    %p733 = scmp.ne.s32.totalorder %s721, %s722
    %p734 = scmp.eq.s32.totalorder %s83, 1
    %p735 = por %p733, %p734
    %p737 = scmp.ne.s32.totalorder %s722, %s736
    %p738 = scmp.eq.s32.totalorder %s83, 0
    %p739 = por %p737, %p738
    %s741 = sadd.s32 %s740, 1
    %p744 = scmp.eq.s32.totalorder %s77, 1
    %p745 = scmp.ne.s32.totalorder %s740, %s742
    %p746 = scmp.eq.s32.totalorder %s77, 0
    %p747 = por %p745, %p746
    %p748 = scmp.ne.s32.totalorder %s740, %s742
    %p749 = scmp.eq.s32.totalorder %s82, 1
    %p750 = por %p748, %p749
    %p751 = scmp.ne.s32.totalorder %s742, %s743
    %p752 = scmp.eq.s32.totalorder %s82, 0
    %p753 = por %p751, %p752
    %p754 = scmp.ne.s32.totalorder %s742, %s743
    %p755 = scmp.eq.s32.totalorder %s83, 1
    %p756 = por %p754, %p755
    %p758 = scmp.ne.s32.totalorder %s743, %s757
    %p759 = scmp.eq.s32.totalorder %s83, 0
    %p760 = por %p758, %p759
    %s762 = sadd.s32 %s761, 1
    %p765 = scmp.eq.s32.totalorder %s77, 1
    %p766 = scmp.ne.s32.totalorder %s761, %s763
    %p767 = scmp.eq.s32.totalorder %s77, 0
    %p768 = por %p766, %p767
    %p769 = scmp.ne.s32.totalorder %s761, %s763
    %p770 = scmp.eq.s32.totalorder %s82, 1
    %p771 = por %p769, %p770
    %p772 = scmp.ne.s32.totalorder %s763, %s764
    %p773 = scmp.eq.s32.totalorder %s82, 0
    %p774 = por %p772, %p773
    %p775 = scmp.ne.s32.totalorder %s763, %s764
    %p776 = scmp.eq.s32.totalorder %s83, 1
    %p777 = por %p775, %p776
    %p779 = scmp.ne.s32.totalorder %s764, %s778
    %p780 = scmp.eq.s32.totalorder %s83, 0
    %p781 = por %p779, %p780
    %s783 = sadd.s32 %s782, 1
    %p786 = scmp.eq.s32.totalorder %s77, 1
    %p787 = scmp.ne.s32.totalorder %s782, %s784
    %p788 = scmp.eq.s32.totalorder %s77, 0
    %p789 = por %p787, %p788
    %p790 = scmp.ne.s32.totalorder %s782, %s784
    %p791 = scmp.eq.s32.totalorder %s82, 1
    %p792 = por %p790, %p791
    %p793 = scmp.ne.s32.totalorder %s784, %s785
    %p794 = scmp.eq.s32.totalorder %s82, 0
    %p795 = por %p793, %p794
    %p796 = scmp.ne.s32.totalorder %s784, %s785
    %p797 = scmp.eq.s32.totalorder %s83, 1
    %p798 = por %p796, %p797
    %p800 = scmp.ne.s32.totalorder %s785, %s799
    %p801 = scmp.eq.s32.totalorder %s83, 0
    %p802 = por %p800, %p801
    %s804 = sadd.s32 %s803, 1
    %p807 = scmp.eq.s32.totalorder %s77, 1
    %p808 = scmp.ne.s32.totalorder %s803, %s805
    %p809 = scmp.eq.s32.totalorder %s77, 0
    %p810 = por %p808, %p809
    %p811 = scmp.ne.s32.totalorder %s803, %s805
    %p812 = scmp.eq.s32.totalorder %s82, 1
    %p813 = por %p811, %p812
    %p814 = scmp.ne.s32.totalorder %s805, %s806
    %p815 = scmp.eq.s32.totalorder %s82, 0
    %p816 = por %p814, %p815
    %p817 = scmp.ne.s32.totalorder %s805, %s806
    %p818 = scmp.eq.s32.totalorder %s83, 1
    %p819 = por %p817, %p818
    %p821 = scmp.ne.s32.totalorder %s806, %s820
    %p822 = scmp.eq.s32.totalorder %s83, 0
    %p823 = por %p821, %p822
    %s825 = sadd.s32 %s824, 1
    %p828 = scmp.eq.s32.totalorder %s77, 1
    %p829 = scmp.ne.s32.totalorder %s824, %s826
    %p830 = scmp.eq.s32.totalorder %s77, 0
    %p831 = por %p829, %p830
    %p832 = scmp.ne.s32.totalorder %s824, %s826
    %p833 = scmp.eq.s32.totalorder %s82, 1
    %p834 = por %p832, %p833
    %p835 = scmp.ne.s32.totalorder %s826, %s827
    %p836 = scmp.eq.s32.totalorder %s82, 0
    %p837 = por %p835, %p836
    %p838 = scmp.ne.s32.totalorder %s826, %s827
    %p839 = scmp.eq.s32.totalorder %s83, 1
    %p840 = por %p838, %p839
    %p842 = scmp.ne.s32.totalorder %s827, %s841
    %p843 = scmp.eq.s32.totalorder %s83, 0
    %p844 = por %p842, %p843
    %s845 = ssub.s32 %s77, %s84
    %p846 = scmp.eq.s32.totalorder %s845, 0
    %s848 = sadd.s32 %s847, 1
    %s849 = scalar_select %p846, %s847, %s848
    %p852 = pneg %p846
    %p853 = scmp.eq.s32.totalorder %s77, 1
    %p854 = por %p852, %p853
    %p855 = scmp.ne.s32.totalorder %s847, %s850
    %p856 = scmp.eq.s32.totalorder %s77, 0
    %p857 = por %p855, %p856
    %p858 = scmp.ne.s32.totalorder %s847, %s850
    %p859 = scmp.eq.s32.totalorder %s82, 1
    %p860 = por %p858, %p859
    %p861 = scmp.ne.s32.totalorder %s850, %s851
    %p862 = scmp.eq.s32.totalorder %s82, 0
    %p863 = por %p861, %p862
    %p864 = scmp.ne.s32.totalorder %s850, %s851
    %p865 = scmp.eq.s32.totalorder %s83, 1
    %p866 = por %p864, %p865
    %p868 = scmp.ne.s32.totalorder %s851, %s867
    %p869 = scmp.eq.s32.totalorder %s83, 0
    %p870 = por %p868, %p869
    %p871 = scmp.le.s32.totalorder 1, %s77
    %p872 = scmp.lt.s32.totalorder %s77, 3
    %p873 = pnand %p871, %p872
    %p874 = pneg %p873
    // Predicated region
    $region9: #{seq2seq_forward.1} parent=5 // pred_check
      _
    $region10: #{seq2seq_forward.1} parent=5 // pred_check_branch
      %876 = sbr.rel (%p873) target = $region12
    $region11: #{seq2seq_forward.1} parent=5 // pred_region
      %s877 = ssub.s32 %s77, 1
      // Predicated region
      $region13: #{seq2seq_forward.1} parent=11 // pred_check
        %p878 = pneg %p228
      $region14: #{seq2seq_forward.1} parent=11 // pred_check_branch
        %880 = sbr.rel (%p878) target = $region16
      $region15: #{seq2seq_forward.1} parent=11 // pred_region
        _
      $region16: #{seq2seq_forward.1} parent=11 // pred_fallthru
        _
      // Predicated region
      $region17: #{seq2seq_forward.1} parent=11 // pred_check
        %p881 = pneg %p249
      $region18: #{seq2seq_forward.1} parent=11 // pred_check_branch
        %883 = sbr.rel (%p881) target = $region20
      $region19: #{seq2seq_forward.1} parent=11 // pred_region
        _
      $region20: #{seq2seq_forward.1} parent=11 // pred_fallthru
        _
      // Predicated region
      $region21: #{seq2seq_forward.1} parent=11 // pred_check
        %p884 = pneg %p270
      $region22: #{seq2seq_forward.1} parent=11 // pred_check_branch
        %886 = sbr.rel (%p884) target = $region24
      $region23: #{seq2seq_forward.1} parent=11 // pred_region
        _
      $region24: #{seq2seq_forward.1} parent=11 // pred_fallthru
        _
      // Predicated region
      $region25: #{seq2seq_forward.1} parent=11 // pred_check
        %p887 = pneg %p291
      $region26: #{seq2seq_forward.1} parent=11 // pred_check_branch
        %889 = sbr.rel (%p887) target = $region28
      $region27: #{seq2seq_forward.1} parent=11 // pred_region
        _
      $region28: #{seq2seq_forward.1} parent=11 // pred_fallthru
        _
      // Predicated region
      $region29: #{seq2seq_forward.1} parent=11 // pred_check
        %p890 = pneg %p312
      $region30: #{seq2seq_forward.1} parent=11 // pred_check_branch
        %892 = sbr.rel (%p890) target = $region32
      $region31: #{seq2seq_forward.1} parent=11 // pred_region
        _
      $region32: #{seq2seq_forward.1} parent=11 // pred_fallthru
        _
      // Predicated region
      $region33: #{seq2seq_forward.1} parent=11 // pred_check
        %p893 = pneg %p333
      $region34: #{seq2seq_forward.1} parent=11 // pred_check_branch
        %895 = sbr.rel (%p893) target = $region36
      $region35: #{seq2seq_forward.1} parent=11 // pred_region
        _
      $region36: #{seq2seq_forward.1} parent=11 // pred_fallthru
        _
      // Predicated region
      $region37: #{seq2seq_forward.1} parent=11 // pred_check
        %p896 = pneg %p354
      $region38: #{seq2seq_forward.1} parent=11 // pred_check_branch
        %898 = sbr.rel (%p896) target = $region40
      $region39: #{seq2seq_forward.1} parent=11 // pred_region
        _
      $region40: #{seq2seq_forward.1} parent=11 // pred_fallthru
        _
      // Predicated region
      $region41: #{seq2seq_forward.1} parent=11 // pred_check
        %p899 = pneg %p375
      $region42: #{seq2seq_forward.1} parent=11 // pred_check_branch
        %901 = sbr.rel (%p899) target = $region44
      $region43: #{seq2seq_forward.1} parent=11 // pred_region
        _
      $region44: #{seq2seq_forward.1} parent=11 // pred_fallthru
        _
      // Predicated region
      $region45: #{seq2seq_forward.1} parent=11 // pred_check
        %p902 = pneg %p396
      $region46: #{seq2seq_forward.1} parent=11 // pred_check_branch
        %904 = sbr.rel (%p902) target = $region48
      $region47: #{seq2seq_forward.1} parent=11 // pred_region
        _
      $region48: #{seq2seq_forward.1} parent=11 // pred_fallthru
        _
      // Predicated region
      $region49: #{seq2seq_forward.1} parent=11 // pred_check
        %p905 = pneg %p417
      $region50: #{seq2seq_forward.1} parent=11 // pred_check_branch
        %907 = sbr.rel (%p905) target = $region52
      $region51: #{seq2seq_forward.1} parent=11 // pred_region
        _
      $region52: #{seq2seq_forward.1} parent=11 // pred_fallthru
        _
      // Predicated region
      $region53: #{seq2seq_forward.1} parent=11 // pred_check
        %p908 = pneg %p438
      $region54: #{seq2seq_forward.1} parent=11 // pred_check_branch
        %910 = sbr.rel (%p908) target = $region56
      $region55: #{seq2seq_forward.1} parent=11 // pred_region
        _
      $region56: #{seq2seq_forward.1} parent=11 // pred_fallthru
        _
      // Predicated region
      $region57: #{seq2seq_forward.1} parent=11 // pred_check
        %p911 = pneg %p459
      $region58: #{seq2seq_forward.1} parent=11 // pred_check_branch
        %913 = sbr.rel (%p911) target = $region60
      $region59: #{seq2seq_forward.1} parent=11 // pred_region
        _
      $region60: #{seq2seq_forward.1} parent=11 // pred_fallthru
        _
      // Predicated region
      $region61: #{seq2seq_forward.1} parent=11 // pred_check
        %p914 = pneg %p480
      $region62: #{seq2seq_forward.1} parent=11 // pred_check_branch
        %916 = sbr.rel (%p914) target = $region64
      $region63: #{seq2seq_forward.1} parent=11 // pred_region
        _
      $region64: #{seq2seq_forward.1} parent=11 // pred_fallthru
        _
      // Predicated region
      $region65: #{seq2seq_forward.1} parent=11 // pred_check
        %p917 = pneg %p501
      $region66: #{seq2seq_forward.1} parent=11 // pred_check_branch
        %919 = sbr.rel (%p917) target = $region68
      $region67: #{seq2seq_forward.1} parent=11 // pred_region
        _
      $region68: #{seq2seq_forward.1} parent=11 // pred_fallthru
        _
      // Predicated region
      $region69: #{seq2seq_forward.1} parent=11 // pred_check
        %p920 = pneg %p522
      $region70: #{seq2seq_forward.1} parent=11 // pred_check_branch
        %922 = sbr.rel (%p920) target = $region72
      $region71: #{seq2seq_forward.1} parent=11 // pred_region
        _
      $region72: #{seq2seq_forward.1} parent=11 // pred_fallthru
        _
      // Predicated region
      $region73: #{seq2seq_forward.1} parent=11 // pred_check
        %p923 = pneg %p543
      $region74: #{seq2seq_forward.1} parent=11 // pred_check_branch
        %925 = sbr.rel (%p923) target = $region76
      $region75: #{seq2seq_forward.1} parent=11 // pred_region
        _
      $region76: #{seq2seq_forward.1} parent=11 // pred_fallthru
        _
      // Predicated region
      $region77: #{seq2seq_forward.1} parent=11 // pred_check
        %p926 = pneg %p564
      $region78: #{seq2seq_forward.1} parent=11 // pred_check_branch
        %928 = sbr.rel (%p926) target = $region80
      $region79: #{seq2seq_forward.1} parent=11 // pred_region
        _
      $region80: #{seq2seq_forward.1} parent=11 // pred_fallthru
        _
      // Predicated region
      $region81: #{seq2seq_forward.1} parent=11 // pred_check
        %p929 = pneg %p585
      $region82: #{seq2seq_forward.1} parent=11 // pred_check_branch
        %931 = sbr.rel (%p929) target = $region84
      $region83: #{seq2seq_forward.1} parent=11 // pred_region
        _
      $region84: #{seq2seq_forward.1} parent=11 // pred_fallthru
        _
      // Predicated region
      $region85: #{seq2seq_forward.1} parent=11 // pred_check
        %p932 = pneg %p606
      $region86: #{seq2seq_forward.1} parent=11 // pred_check_branch
        %934 = sbr.rel (%p932) target = $region88
      $region87: #{seq2seq_forward.1} parent=11 // pred_region
        _
      $region88: #{seq2seq_forward.1} parent=11 // pred_fallthru
        _
      // Predicated region
      $region89: #{seq2seq_forward.1} parent=11 // pred_check
        %p935 = pneg %p627
      $region90: #{seq2seq_forward.1} parent=11 // pred_check_branch
        %937 = sbr.rel (%p935) target = $region92
      $region91: #{seq2seq_forward.1} parent=11 // pred_region
        _
      $region92: #{seq2seq_forward.1} parent=11 // pred_fallthru
        _
      // Predicated region
      $region93: #{seq2seq_forward.1} parent=11 // pred_check
        %p938 = pneg %p648
      $region94: #{seq2seq_forward.1} parent=11 // pred_check_branch
        %940 = sbr.rel (%p938) target = $region96
      $region95: #{seq2seq_forward.1} parent=11 // pred_region
        _
      $region96: #{seq2seq_forward.1} parent=11 // pred_fallthru
        _
      // Predicated region
      $region97: #{seq2seq_forward.1} parent=11 // pred_check
        %p941 = pneg %p669
      $region98: #{seq2seq_forward.1} parent=11 // pred_check_branch
        %943 = sbr.rel (%p941) target = $region100
      $region99: #{seq2seq_forward.1} parent=11 // pred_region
        _
      $region100: #{seq2seq_forward.1} parent=11 // pred_fallthru
        _
      // Predicated region
      $region101: #{seq2seq_forward.1} parent=11 // pred_check
        %p944 = pneg %p690
      $region102: #{seq2seq_forward.1} parent=11 // pred_check_branch
        %946 = sbr.rel (%p944) target = $region104
      $region103: #{seq2seq_forward.1} parent=11 // pred_region
        _
      $region104: #{seq2seq_forward.1} parent=11 // pred_fallthru
        _
      // Predicated region
      $region105: #{seq2seq_forward.1} parent=11 // pred_check
        %p947 = pneg %p711
      $region106: #{seq2seq_forward.1} parent=11 // pred_check_branch
        %949 = sbr.rel (%p947) target = $region108
      $region107: #{seq2seq_forward.1} parent=11 // pred_region
        _
      $region108: #{seq2seq_forward.1} parent=11 // pred_fallthru
        _
      // Predicated region
      $region109: #{seq2seq_forward.1} parent=11 // pred_check
        %p950 = pneg %p732
      $region110: #{seq2seq_forward.1} parent=11 // pred_check_branch
        %952 = sbr.rel (%p950) target = $region112
      $region111: #{seq2seq_forward.1} parent=11 // pred_region
        _
      $region112: #{seq2seq_forward.1} parent=11 // pred_fallthru
        _
      // Predicated region
      $region113: #{seq2seq_forward.1} parent=11 // pred_check
        %p953 = pneg %p753
      $region114: #{seq2seq_forward.1} parent=11 // pred_check_branch
        %955 = sbr.rel (%p953) target = $region116
      $region115: #{seq2seq_forward.1} parent=11 // pred_region
        _
      $region116: #{seq2seq_forward.1} parent=11 // pred_fallthru
        _
      // Predicated region
      $region117: #{seq2seq_forward.1} parent=11 // pred_check
        %p956 = pneg %p774
      $region118: #{seq2seq_forward.1} parent=11 // pred_check_branch
        %958 = sbr.rel (%p956) target = $region120
      $region119: #{seq2seq_forward.1} parent=11 // pred_region
        _
      $region120: #{seq2seq_forward.1} parent=11 // pred_fallthru
        _
      // Predicated region
      $region121: #{seq2seq_forward.1} parent=11 // pred_check
        %p959 = pneg %p795
      $region122: #{seq2seq_forward.1} parent=11 // pred_check_branch
        %961 = sbr.rel (%p959) target = $region124
      $region123: #{seq2seq_forward.1} parent=11 // pred_region
        _
      $region124: #{seq2seq_forward.1} parent=11 // pred_fallthru
        _
      // Predicated region
      $region125: #{seq2seq_forward.1} parent=11 // pred_check
        %p962 = pneg %p816
      $region126: #{seq2seq_forward.1} parent=11 // pred_check_branch
        %964 = sbr.rel (%p962) target = $region128
      $region127: #{seq2seq_forward.1} parent=11 // pred_region
        _
      $region128: #{seq2seq_forward.1} parent=11 // pred_fallthru
        _
      // Predicated region
      $region129: #{seq2seq_forward.1} parent=11 // pred_check
        %p965 = pneg %p837
      $region130: #{seq2seq_forward.1} parent=11 // pred_check_branch
        %967 = sbr.rel (%p965) target = $region132
      $region131: #{seq2seq_forward.1} parent=11 // pred_region
        _
      $region132: #{seq2seq_forward.1} parent=11 // pred_fallthru
        _
    $region12: #{seq2seq_forward.1} parent=5 // pred_fallthru
      _
    %p968 = scmp.lt.s32.totalorder %s77, 2
    // Predicated region
    $region133: #{seq2seq_forward.1} parent=5 // pred_check
      %p969 = pneg %p968
    $region134: #{seq2seq_forward.1} parent=5 // pred_check_branch
      %971 = sbr.rel (%p969) target = $region136
    $region135: #{seq2seq_forward.1} parent=5 // pred_region
      // Predicated region
      $region137: #{seq2seq_forward.1} parent=135 // pred_check
        %p972 = pneg %p97
      $region138: #{seq2seq_forward.1} parent=135 // pred_check_branch
        %974 = sbr.rel (%p972) target = $region140
      $region139: #{seq2seq_forward.1} parent=135 // pred_region
        %p975 = scmp.lt.s32.totalorder %s77, 1
        %s976 = scalar_select %p975, %s77, 1
        %s977 = smul.addr %s976, 8
        %s978 = scalar_lea.vmem %s1, %s977
      $region140: #{seq2seq_forward.1} parent=135 // pred_fallthru
        _
      // Predicated region
      $region141: #{seq2seq_forward.1} parent=135 // pred_check
        %p979 = pneg %p123
      $region142: #{seq2seq_forward.1} parent=135 // pred_check_branch
        %981 = sbr.rel (%p979) target = $region144
      $region143: #{seq2seq_forward.1} parent=135 // pred_region
        %p982 = scmp.lt.s32.totalorder %s77, 1
        %s983 = scalar_select %p982, %s77, 1
        %s984 = scalar_lea.vmem %s3, %s983
      $region144: #{seq2seq_forward.1} parent=135 // pred_fallthru
        _
      // Predicated region
      $region145: #{seq2seq_forward.1} parent=135 // pred_check
        %p985 = pneg %p149
      $region146: #{seq2seq_forward.1} parent=135 // pred_check_branch
        %987 = sbr.rel (%p985) target = $region148
      $region147: #{seq2seq_forward.1} parent=135 // pred_region
        %p988 = scmp.lt.s32.totalorder %s77, 1
        %s989 = scalar_select %p988, %s77, 1
        %s990 = smul.addr %s989, 8
        %s991 = scalar_lea.vmem %s5, %s990
      $region148: #{seq2seq_forward.1} parent=135 // pred_fallthru
        _
      // Predicated region
      $region149: #{seq2seq_forward.1} parent=135 // pred_check
        %p992 = pneg %p175
      $region150: #{seq2seq_forward.1} parent=135 // pred_check_branch
        %994 = sbr.rel (%p992) target = $region152
      $region151: #{seq2seq_forward.1} parent=135 // pred_region
        %p995 = scmp.lt.s32.totalorder %s77, 1
        %s996 = scalar_select %p995, %s77, 1
        %s997 = scalar_lea.vmem %s7, %s996
      $region152: #{seq2seq_forward.1} parent=135 // pred_fallthru
        _
      // Predicated region
      $region153: #{seq2seq_forward.1} parent=135 // pred_check
        %p998 = pneg %p201
      $region154: #{seq2seq_forward.1} parent=135 // pred_check_branch
        %1000 = sbr.rel (%p998) target = $region156
      $region155: #{seq2seq_forward.1} parent=135 // pred_region
        %p1001 = scmp.lt.s32.totalorder %s77, 1
        %s1002 = scalar_select %p1001, %s77, 1
        %s1003 = smul.addr %s1002, 8
        %s1004 = scalar_lea.vmem %s9, %s1003
      $region156: #{seq2seq_forward.1} parent=135 // pred_fallthru
        _
    $region136: #{seq2seq_forward.1} parent=5 // pred_fallthru
      _
    %p1005 = scmp.le.s32.totalorder 1, %s77
    %p1006 = scmp.lt.s32.totalorder %s77, 3
    %p1007 = pnand %p1005, %p1006
    %p1008 = pneg %p1007
    // Predicated region
    $region157: #{seq2seq_forward.1} parent=5 // pred_check
      _
    $region158: #{seq2seq_forward.1} parent=5 // pred_check_branch
      %1010 = sbr.rel (%p1007) target = $region160
    $region159: #{seq2seq_forward.1} parent=5 // pred_region
      %s1011 = ssub.s32 %s77, 1
      %p1012 = scmp.lt.s32.totalorder %s82, 1
      %s1013 = scalar_select %p1012, %s82, 1
      %s1014 = smul.addr %s1013, 8
      %s1015 = scalar_lea.vmem %s1, %s1014
      %p1016 = pneg %p103
      %p1017 = pneg %p100
      %p1018 = scmp.lt.s32.totalorder %s82, 1
      %s1019 = scalar_select %p1018, %s82, 1
      %s1020 = scalar_lea.vmem %s3, %s1019
      %p1021 = pneg %p129
      %p1022 = pneg %p126
      %p1023 = scmp.lt.s32.totalorder %s82, 1
      %s1024 = scalar_select %p1023, %s82, 1
      %s1025 = smul.addr %s1024, 8
      %s1026 = scalar_lea.vmem %s5, %s1025
      %p1027 = pneg %p155
      %p1028 = pneg %p152
      %p1029 = scmp.lt.s32.totalorder %s82, 1
      %s1030 = scalar_select %p1029, %s82, 1
      %s1031 = scalar_lea.vmem %s7, %s1030
      %p1032 = pneg %p181
      %p1033 = pneg %p178
      %p1034 = scmp.lt.s32.totalorder %s82, 1
      %s1035 = scalar_select %p1034, %s82, 1
      %s1036 = smul.addr %s1035, 8
      %s1037 = scalar_lea.vmem %s9, %s1036
      %p1038 = pneg %p207
      %p1039 = pneg %p204
      %p1040 = pneg %p228
      %p1041 = pneg %p225
      %p1042 = pneg %p249
      %p1043 = pneg %p246
      %p1044 = pneg %p270
      %p1045 = pneg %p267
      %p1046 = pneg %p291
      %p1047 = pneg %p288
      %p1048 = pneg %p312
      %p1049 = pneg %p309
      %p1050 = pneg %p333
      %p1051 = pneg %p330
      %p1052 = pneg %p354
      %p1053 = pneg %p351
      %p1054 = pneg %p375
      %p1055 = pneg %p372
      %p1056 = pneg %p396
      %p1057 = pneg %p393
      %p1058 = pneg %p417
      %p1059 = pneg %p414
      %p1060 = pneg %p438
      %p1061 = pneg %p435
      %p1062 = pneg %p459
      %p1063 = pneg %p456
      %p1064 = pneg %p480
      %p1065 = pneg %p477
      %p1066 = pneg %p501
      %p1067 = pneg %p498
      %p1068 = pneg %p522
      %p1069 = pneg %p519
      %p1070 = pneg %p543
      %p1071 = pneg %p540
      %p1072 = pneg %p564
      %p1073 = pneg %p561
      %p1074 = pneg %p585
      %p1075 = pneg %p582
      %p1076 = pneg %p606
      %p1077 = pneg %p603
      %p1078 = pneg %p627
      %p1079 = pneg %p624
      %p1080 = pneg %p648
      %p1081 = pneg %p645
      %p1082 = pneg %p669
      %p1083 = pneg %p666
      %p1084 = pneg %p690
      %p1085 = pneg %p687
      %p1086 = pneg %p711
      %p1087 = pneg %p708
      %p1088 = pneg %p732
      %p1089 = pneg %p729
      %p1090 = pneg %p753
      %p1091 = pneg %p750
      %p1092 = pneg %p774
      %p1093 = pneg %p771
      %p1094 = pneg %p795
      %p1095 = pneg %p792
      %p1096 = pneg %p816
      %p1097 = pneg %p813
      %p1098 = pneg %p837
      %p1099 = pneg %p834
      %p1100 = pneg %p863
      %p1101 = pneg %p860
      %p1102 = scmp.lt.s32.totalorder %s82, 1
      %s1103 = scalar_select %p1102, %s82, 1
      %s1104 = scalar_lea.vmem %s71, %s1103
      %p1105 = scmp.lt.s32.totalorder %s82, 1
      %s1106 = scalar_select %p1105, %s82, 1
      %s1107 = smul.addr %s1106, 8
      %s1108 = scalar_lea.vmem %s1, %s1107
      %p1109 = scmp.lt.s32.totalorder %s82, 1
      %s1110 = scalar_select %p1109, %s82, 1
      %s1111 = scalar_lea.vmem %s3, %s1110
      %p1112 = scmp.lt.s32.totalorder %s82, 1
      %s1113 = scalar_select %p1112, %s82, 1
      %s1114 = smul.addr %s1113, 8
      %s1115 = scalar_lea.vmem %s5, %s1114
      %p1116 = scmp.lt.s32.totalorder %s82, 1
      %s1117 = scalar_select %p1116, %s82, 1
      %s1118 = scalar_lea.vmem %s7, %s1117
      %p1119 = scmp.lt.s32.totalorder %s82, 1
      %s1120 = scalar_select %p1119, %s82, 1
      %s1121 = smul.addr %s1120, 8
      %s1122 = scalar_lea.vmem %s9, %s1121
      %p1123 = scmp.lt.s32.totalorder %s82, 1
      %s1124 = scalar_select %p1123, %s82, 1
      %s1125 = scalar_lea.vmem %s71, %s1124
      %v1127 = vld [vmem:[%s1111] sm:$0x1]
      %vm1128 = vcmp.eq.s32.totalorder %v1127, 0
      %v1129 = vsel %vm1128, -1e+09, 0.0
      %v1130 = vld [vmem:[%s1118] sm:$0x1]
      %vm1131 = vcmp.eq.s32.totalorder %v1130, 0
      %v1132 = vsel %vm1131, -1e+09, 0.0
      %v1133 = vlaneseq
      %v1134 = vshrl.u32 %v1133, 7
      %v1135 = vlaneseq
      %v1136 = vand.u32 %v1135, 127
      %vm1137 = vcmp.gt.s32.totalorder %v1136, %v1134
      %v1138 = vsel %vm1137, -1e+09, 0.0
      %v1140 = vperm.slane %v1132, 0
      %v1142 = vadd.f32 %v1138, %v1140
      %v1143 = vld [vmem:[%s1108] sm:$0xff]
      %v1144 = vld [vmem:[%s11] sm:$0x3]
      %vm1145 = vcmask 261120
      %v1146 = vsel %vm1145, %v1143, 0.0
      %1147 = vadd.xlane.f32.xlu0 %v1146
      %v1148 = vpop.xlane.xlu0 %1147
      %v1149 = vrcp.pop 32.0
      %v1150 = vmul.f32 32.0, %v1149
      %v1151 = vsub.f32 1.0, %v1150
      %v1152 = vmul.f32 %v1149, %v1151
      %v1153 = vadd.f32 %v1149, %v1152
      %vm1154 = vweird.f32 %v1149
      %v1155 = vsel %vm1154, %v1149, %v1153
      %v1156 = vmul.f32 %v1148, %v1155
      %v1157 = vsub.f32 %v1143, %v1156
      %v1158 = vmul.f32 %v1157, %v1157
      %v1159 = vsel %vm1145, %v1158, 0.0
      %1160 = vadd.xlane.f32.xlu0 %v1159
      %v1161 = vpop.xlane.xlu0 %1160
      %v1162 = vmul.f32 %v1161, %v1155
      %v1163 = vadd.f32 %v1162, 1e-05
      %v1164 = vrsqrt.pop %v1163
      %v1165 = vmul.f32 %v1164, %v1163
      %v1166 = vmul.f32 %v1165, %v1164
      %v1167 = vmul.f32 0.5, %v1166
      %v1168 = vsub.f32 1.5, %v1167
      %v1169 = vmul.f32 %v1164, %v1168
      %vm1170 = vweird.f32 %v1163
      %vm1171 = vweird.f32 %v1164
      %vm1172 = vmor %vm1170, %vm1171
      %v1173 = vsel %vm1172, %v1164, %v1169
      %v1174 = vmul.f32 %v1157, %v1173
      %v1175 = vperm.slane %v1144, 0
      %v1176 = vmul.f32 %v1174, %v1175
      %v1177 = vperm.slane %v1144, 1
      %v1178 = vadd.f32 %v1176, %v1177
      %v1179 = vpack.c.bf16 %v1178, %v1178
      %v1180 = vld [vmem:[%s13] sm:$0xf]
      %v1181 = vld [vmem:[%s13 + $0x4] sm:$0xf]
      %v1182 = vld [vmem:[%s13 + $0x8] sm:$0xf]
      %v1183 = vld [vmem:[%s13 + $0xc] sm:$0xf]
      %v1184 = vld [vmem:[%s15] sm:$0x1]
      %v1186 = vperm.slane %v1184, 0
      %v1192 = vunpack.c.l.b16 %v1180
      %v1193 = vunpack.c.l.b16 %v1181
      %v1194 = vunpack.c.l.b16 %v1182
      %v1195 = vunpack.c.l.b16 %v1183
      %v1196 = vpack.c.b16 %v1193, %v1192
      %v1197 = vpack.c.b16 %v1195, %v1194
      %v1201 = vsel %vm1145, %v1179, 0
      %1203 = vmatpush.bf16.msra.mxu0 0
      %1204 = vmatpush.bf16.msra.mxu0 0
      %1205 = vmatpush.bf16.msra.mxu0 0
      %1206 = vmatpush.bf16.msra.mxu0 0
      %1207 = vmatpush.bf16.msra.mxu0 0
      %1208 = vmatpush.bf16.msra.mxu0 0
      %1209 = vmatpush.bf16.msra.mxu0 %v1197
      %1210 = vmatpush.bf16.msra.mxu0 %v1196
      %1211 = vmatmul.bf16.gmra.mxu0 %v1201
      %v1212 = vpop.f32.mrf.mxu0
      %v1213 = vadd.f32 %v1186, %v1212
      %v1214 = vpop.f32.mrf.mxu0
      %1215 = vdwg.mxu0
      %v1216 = vmul.f32 %v1213, 0.35355338
      %1218 = vrot.lane.b32.xlu0 %v1216, 120
      %v1219 = vpop.permute.xlu0 %1218
      %1221 = vrot.lane.b32.xlu0 %v1216, 112
      %v1222 = vpop.permute.xlu0 %1221
      %1224 = vrot.lane.b32.xlu0 %v1216, 104
      %v1225 = vpop.permute.xlu0 %1224
      %v1227 = vrot.slane %v1222, 4
      %vm1228 = vcmask 1047556
      %v1229 = vsel %vm1228, %v1227, %v1216
      %v1230 = vrot.slane %v1216, 4
      %v1231 = vsel %vm1228, %v1222, %v1230
      %v1233 = vunpack.c.l.s4 1983009808
      %v1234 = vunpack.c.0.s8 %v1233
      %v1235 = vperm.slane %v1229, %v1234
      %v1237 = vunpack.c.l.s4 1983009808
      %v1238 = vunpack.c.0.s8 %v1237
      %v1239 = vperm.slane %v1231, %v1238
      %v1240 = vrot.slane %v1225, 4
      %v1241 = vsel %vm1228, %v1240, %v1219
      %v1242 = vrot.slane %v1219, 4
      %v1243 = vsel %vm1228, %v1225, %v1242
      %v1245 = vunpack.c.l.s4 1983009808
      %v1246 = vunpack.c.0.s8 %v1245
      %v1247 = vperm.slane %v1241, %v1246
      %v1249 = vunpack.c.l.s4 1983009808
      %v1250 = vunpack.c.0.s8 %v1249
      %v1251 = vperm.slane %v1243, %v1250
      %v1252 = vrot.slane %v1247, 4
      %v1253 = vsel %vm1228, %v1252, %v1235
      %v1254 = vrot.slane %v1235, 4
      %v1255 = vsel %vm1228, %v1247, %v1254
      %v1257 = vunpack.c.l.s4 1934713408
      %v1258 = vunpack.c.0.s8 %v1257
      %v1259 = vperm.slane %v1253, %v1258
      %v1261 = vunpack.c.l.s4 1934713408
      %v1262 = vunpack.c.0.s8 %v1261
      %v1263 = vperm.slane %v1255, %v1262
      %v1264 = vrot.slane %v1251, 4
      %v1265 = vsel %vm1228, %v1264, %v1239
      %v1266 = vrot.slane %v1239, 4
      %v1267 = vsel %vm1228, %v1251, %v1266
      %v1269 = vunpack.c.l.s4 1934713408
      %v1270 = vunpack.c.0.s8 %v1269
      %v1271 = vperm.slane %v1265, %v1270
      %v1273 = vunpack.c.l.s4 1934713408
      %v1274 = vunpack.c.0.s8 %v1273
      %v1275 = vperm.slane %v1267, %v1274
      %v1276 = vrot.slane %v1259, 4
      %v1277 = vsel %vm1228, 0.0, %v1276
      %v1278 = vrot.slane %v1263, 4
      %v1279 = vsel %vm1228, 0.0, %v1278
      %v1280 = vrot.slane %v1271, 4
      %v1281 = vsel %vm1228, 0.0, %v1280
      %v1282 = vrot.slane %v1275, 4
      %v1283 = vsel %vm1228, 0.0, %v1282
      %v1284 = vsel %vm1228, %v1278, %v1259
      %v1286 = vunpack.c.l.s4 1983009808
      %v1287 = vunpack.c.0.s8 %v1286
      %v1288 = vperm.slane %v1284, %v1287
      %v1289 = vrot.slane %v1279, 4
      %v1290 = vsel %vm1228, %v1289, %v1277
      %v1292 = vunpack.c.l.s4 1983009808
      %v1293 = vunpack.c.0.s8 %v1292
      %v1294 = vperm.slane %v1290, %v1293
      %v1295 = vsel %vm1228, %v1282, %v1271
      %v1297 = vunpack.c.l.s4 1983009808
      %v1298 = vunpack.c.0.s8 %v1297
      %v1299 = vperm.slane %v1295, %v1298
      %v1300 = vrot.slane %v1283, 4
      %v1301 = vsel %vm1228, %v1300, %v1281
      %v1303 = vunpack.c.l.s4 1983009808
      %v1304 = vunpack.c.0.s8 %v1303
      %v1305 = vperm.slane %v1301, %v1304
      %v1306 = vrot.slane %v1294, 4
      %v1307 = vsel %vm1228, %v1306, %v1288
      %v1308 = vrot.slane %v1288, 4
      %v1309 = vsel %vm1228, %v1294, %v1308
      %v1311 = vunpack.c.l.s4 1934713408
      %v1312 = vunpack.c.0.s8 %v1311
      %v1313 = vperm.slane %v1307, %v1312
      %v1315 = vunpack.c.l.s4 1934713408
      %v1316 = vunpack.c.0.s8 %v1315
      %v1317 = vperm.slane %v1309, %v1316
      %v1318 = vrot.slane %v1305, 4
      %v1319 = vsel %vm1228, %v1318, %v1299
      %v1320 = vrot.slane %v1299, 4
      %v1321 = vsel %vm1228, %v1305, %v1320
      %v1323 = vunpack.c.l.s4 1934713408
      %v1324 = vunpack.c.0.s8 %v1323
      %v1325 = vperm.slane %v1319, %v1324
      %v1327 = vunpack.c.l.s4 1934713408
      %v1328 = vunpack.c.0.s8 %v1327
      %v1329 = vperm.slane %v1321, %v1328
      %v1330 = vrot.slane %v1325, 4
      %v1331 = vsel %vm1228, %v1330, %v1313
      %v1332 = vrot.slane %v1313, 4
      %v1333 = vsel %vm1228, %v1325, %v1332
      %v1334 = vrot.slane %v1329, 4
      %v1335 = vsel %vm1228, %v1334, %v1317
      %v1336 = vrot.slane %v1317, 4
      %v1337 = vsel %vm1228, %v1329, %v1336
      %v1338 = vpack.c.bf16 %v1331, %v1331
      %v1339 = vpack.c.bf16 %v1333, %v1333
      %v1340 = vpack.c.bf16 %v1335, %v1335
      %v1341 = vpack.c.bf16 %v1337, %v1337
      %1343 = vrot.lane.b32.xlu0 %v1213, 120
      %v1344 = vpop.permute.xlu0 %1343
      %1345 = vrot.lane.b32.xlu0 %v1213, 112
      %v1346 = vpop.permute.xlu0 %1345
      %1347 = vrot.lane.b32.xlu0 %v1213, 104
      %v1348 = vpop.permute.xlu0 %1347
      %1349 = vrot.lane.b32.xlu0 %v1213, 96
      %v1350 = vpop.permute.xlu0 %1349
      %1351 = vrot.lane.b32.xlu0 %v1344, 96
      %v1352 = vpop.permute.xlu0 %1351
      %1353 = vrot.lane.b32.xlu0 %v1346, 96
      %v1354 = vpop.permute.xlu0 %1353
      %1355 = vrot.lane.b32.xlu0 %v1348, 96
      %v1356 = vpop.permute.xlu0 %1355
      %v1361 = vrot.slane %v1354, 4
      %v1362 = vsel %vm1228, %v1361, %v1350
      %v1363 = vrot.slane %v1350, 4
      %v1364 = vsel %vm1228, %v1354, %v1363
      %v1366 = vunpack.c.l.s4 1983009808
      %v1367 = vunpack.c.0.s8 %v1366
      %v1368 = vperm.slane %v1362, %v1367
      %v1370 = vunpack.c.l.s4 1983009808
      %v1371 = vunpack.c.0.s8 %v1370
      %v1372 = vperm.slane %v1364, %v1371
      %v1373 = vrot.slane %v1356, 4
      %v1374 = vsel %vm1228, %v1373, %v1352
      %v1375 = vrot.slane %v1352, 4
      %v1376 = vsel %vm1228, %v1356, %v1375
      %v1378 = vunpack.c.l.s4 1983009808
      %v1379 = vunpack.c.0.s8 %v1378
      %v1380 = vperm.slane %v1374, %v1379
      %v1382 = vunpack.c.l.s4 1983009808
      %v1383 = vunpack.c.0.s8 %v1382
      %v1384 = vperm.slane %v1376, %v1383
      %v1385 = vrot.slane %v1380, 4
      %v1386 = vsel %vm1228, %v1385, %v1368
      %v1387 = vrot.slane %v1368, 4
      %v1388 = vsel %vm1228, %v1380, %v1387
      %v1390 = vunpack.c.l.s4 1934713408
      %v1391 = vunpack.c.0.s8 %v1390
      %v1392 = vperm.slane %v1386, %v1391
      %v1394 = vunpack.c.l.s4 1934713408
      %v1395 = vunpack.c.0.s8 %v1394
      %v1396 = vperm.slane %v1388, %v1395
      %v1397 = vrot.slane %v1384, 4
      %v1398 = vsel %vm1228, %v1397, %v1372
      %v1399 = vrot.slane %v1372, 4
      %v1400 = vsel %vm1228, %v1384, %v1399
      %v1402 = vunpack.c.l.s4 1934713408
      %v1403 = vunpack.c.0.s8 %v1402
      %v1404 = vperm.slane %v1398, %v1403
      %v1406 = vunpack.c.l.s4 1934713408
      %v1407 = vunpack.c.0.s8 %v1406
      %v1408 = vperm.slane %v1400, %v1407
      %v1409 = vrot.slane %v1392, 4
      %v1410 = vsel %vm1228, 0.0, %v1409
      %v1411 = vrot.slane %v1396, 4
      %v1412 = vsel %vm1228, 0.0, %v1411
      %v1413 = vrot.slane %v1404, 4
      %v1414 = vsel %vm1228, 0.0, %v1413
      %v1415 = vrot.slane %v1408, 4
      %v1416 = vsel %vm1228, 0.0, %v1415
      %v1417 = vsel %vm1228, %v1411, %v1392
      %v1419 = vunpack.c.l.s4 1983009808
      %v1420 = vunpack.c.0.s8 %v1419
      %v1421 = vperm.slane %v1417, %v1420
      %v1422 = vrot.slane %v1412, 4
      %v1423 = vsel %vm1228, %v1422, %v1410
      %v1425 = vunpack.c.l.s4 1983009808
      %v1426 = vunpack.c.0.s8 %v1425
      %v1427 = vperm.slane %v1423, %v1426
      %v1428 = vsel %vm1228, %v1415, %v1404
      %v1430 = vunpack.c.l.s4 1983009808
      %v1431 = vunpack.c.0.s8 %v1430
      %v1432 = vperm.slane %v1428, %v1431
      %v1433 = vrot.slane %v1416, 4
      %v1434 = vsel %vm1228, %v1433, %v1414
      %v1436 = vunpack.c.l.s4 1983009808
      %v1437 = vunpack.c.0.s8 %v1436
      %v1438 = vperm.slane %v1434, %v1437
      %v1439 = vrot.slane %v1427, 4
      %v1440 = vsel %vm1228, %v1439, %v1421
      %v1441 = vrot.slane %v1421, 4
      %v1442 = vsel %vm1228, %v1427, %v1441
      %v1444 = vunpack.c.l.s4 1934713408
      %v1445 = vunpack.c.0.s8 %v1444
      %v1446 = vperm.slane %v1440, %v1445
      %v1448 = vunpack.c.l.s4 1934713408
      %v1449 = vunpack.c.0.s8 %v1448
      %v1450 = vperm.slane %v1442, %v1449
      %v1451 = vrot.slane %v1438, 4
      %v1452 = vsel %vm1228, %v1451, %v1432
      %v1453 = vrot.slane %v1432, 4
      %v1454 = vsel %vm1228, %v1438, %v1453
      %v1456 = vunpack.c.l.s4 1934713408
      %v1457 = vunpack.c.0.s8 %v1456
      %v1458 = vperm.slane %v1452, %v1457
      %v1460 = vunpack.c.l.s4 1934713408
      %v1461 = vunpack.c.0.s8 %v1460
      %v1462 = vperm.slane %v1454, %v1461
      %v1463 = vrot.slane %v1458, 4
      %v1464 = vsel %vm1228, %v1463, %v1446
      %v1465 = vrot.slane %v1446, 4
      %v1466 = vsel %vm1228, %v1458, %v1465
      %v1467 = vrot.slane %v1462, 4
      %v1468 = vsel %vm1228, %v1467, %v1450
      %v1469 = vrot.slane %v1450, 4
      %v1470 = vsel %vm1228, %v1462, %v1469
      %v1471 = vpack.c.bf16 %v1464, %v1464
      %v1472 = vpack.c.bf16 %v1466, %v1466
      %v1473 = vpack.c.bf16 %v1468, %v1468
      %v1474 = vpack.c.bf16 %v1470, %v1470
      %1475 = vrot.lane.b32.xlu0 %v1213, 64
      %v1476 = vpop.permute.xlu0 %1475
      %1477 = vrot.lane.b32.xlu0 %v1344, 64
      %v1478 = vpop.permute.xlu0 %1477
      %1479 = vrot.lane.b32.xlu0 %v1346, 64
      %v1480 = vpop.permute.xlu0 %1479
      %1481 = vrot.lane.b32.xlu0 %v1348, 64
      %v1482 = vpop.permute.xlu0 %1481
      %v1487 = vrot.slane %v1480, 4
      %v1488 = vsel %vm1228, %v1487, %v1476
      %v1489 = vrot.slane %v1476, 4
      %v1490 = vsel %vm1228, %v1480, %v1489
      %v1492 = vunpack.c.l.s4 1983009808
      %v1493 = vunpack.c.0.s8 %v1492
      %v1494 = vperm.slane %v1488, %v1493
      %v1496 = vunpack.c.l.s4 1983009808
      %v1497 = vunpack.c.0.s8 %v1496
      %v1498 = vperm.slane %v1490, %v1497
      %v1499 = vrot.slane %v1482, 4
      %v1500 = vsel %vm1228, %v1499, %v1478
      %v1501 = vrot.slane %v1478, 4
      %v1502 = vsel %vm1228, %v1482, %v1501
      %v1504 = vunpack.c.l.s4 1983009808
      %v1505 = vunpack.c.0.s8 %v1504
      %v1506 = vperm.slane %v1500, %v1505
      %v1508 = vunpack.c.l.s4 1983009808
      %v1509 = vunpack.c.0.s8 %v1508
      %v1510 = vperm.slane %v1502, %v1509
      %v1511 = vrot.slane %v1506, 4
      %v1512 = vsel %vm1228, %v1511, %v1494
      %v1513 = vrot.slane %v1494, 4
      %v1514 = vsel %vm1228, %v1506, %v1513
      %v1516 = vunpack.c.l.s4 1934713408
      %v1517 = vunpack.c.0.s8 %v1516
      %v1518 = vperm.slane %v1512, %v1517
      %v1520 = vunpack.c.l.s4 1934713408
      %v1521 = vunpack.c.0.s8 %v1520
      %v1522 = vperm.slane %v1514, %v1521
      %v1523 = vrot.slane %v1510, 4
      %v1524 = vsel %vm1228, %v1523, %v1498
      %v1525 = vrot.slane %v1498, 4
      %v1526 = vsel %vm1228, %v1510, %v1525
      %v1528 = vunpack.c.l.s4 1934713408
      %v1529 = vunpack.c.0.s8 %v1528
      %v1530 = vperm.slane %v1524, %v1529
      %v1532 = vunpack.c.l.s4 1934713408
      %v1533 = vunpack.c.0.s8 %v1532
      %v1534 = vperm.slane %v1526, %v1533
      %v1535 = vrot.slane %v1518, 4
      %v1536 = vsel %vm1228, 0.0, %v1535
      %v1537 = vrot.slane %v1522, 4
      %v1538 = vsel %vm1228, 0.0, %v1537
      %v1539 = vrot.slane %v1530, 4
      %v1540 = vsel %vm1228, 0.0, %v1539
      %v1541 = vrot.slane %v1534, 4
      %v1542 = vsel %vm1228, 0.0, %v1541
      %v1543 = vsel %vm1228, %v1537, %v1518
      %v1545 = vunpack.c.l.s4 1983009808
      %v1546 = vunpack.c.0.s8 %v1545
      %v1547 = vperm.slane %v1543, %v1546
      %v1548 = vrot.slane %v1538, 4
      %v1549 = vsel %vm1228, %v1548, %v1536
      %v1551 = vunpack.c.l.s4 1983009808
      %v1552 = vunpack.c.0.s8 %v1551
      %v1553 = vperm.slane %v1549, %v1552
      %v1554 = vsel %vm1228, %v1541, %v1530
      %v1556 = vunpack.c.l.s4 1983009808
      %v1557 = vunpack.c.0.s8 %v1556
      %v1558 = vperm.slane %v1554, %v1557
      %v1559 = vrot.slane %v1542, 4
      %v1560 = vsel %vm1228, %v1559, %v1540
      %v1562 = vunpack.c.l.s4 1983009808
      %v1563 = vunpack.c.0.s8 %v1562
      %v1564 = vperm.slane %v1560, %v1563
      %v1565 = vrot.slane %v1553, 4
      %v1566 = vsel %vm1228, %v1565, %v1547
      %v1567 = vrot.slane %v1547, 4
      %v1568 = vsel %vm1228, %v1553, %v1567
      %v1570 = vunpack.c.l.s4 1934713408
      %v1571 = vunpack.c.0.s8 %v1570
      %v1572 = vperm.slane %v1566, %v1571
      %v1574 = vunpack.c.l.s4 1934713408
      %v1575 = vunpack.c.0.s8 %v1574
      %v1576 = vperm.slane %v1568, %v1575
      %v1577 = vrot.slane %v1564, 4
      %v1578 = vsel %vm1228, %v1577, %v1558
      %v1579 = vrot.slane %v1558, 4
      %v1580 = vsel %vm1228, %v1564, %v1579
      %v1582 = vunpack.c.l.s4 1934713408
      %v1583 = vunpack.c.0.s8 %v1582
      %v1584 = vperm.slane %v1578, %v1583
      %v1586 = vunpack.c.l.s4 1934713408
      %v1587 = vunpack.c.0.s8 %v1586
      %v1588 = vperm.slane %v1580, %v1587
      %v1589 = vrot.slane %v1584, 4
      %v1590 = vsel %vm1228, %v1589, %v1572
      %v1591 = vrot.slane %v1572, 4
      %v1592 = vsel %vm1228, %v1584, %v1591
      %v1593 = vrot.slane %v1588, 4
      %v1594 = vsel %vm1228, %v1593, %v1576
      %v1595 = vrot.slane %v1576, 4
      %v1596 = vsel %vm1228, %v1588, %v1595
      %v1597 = vpack.c.bf16 %v1590, %v1590
      %v1598 = vpack.c.bf16 %v1592, %v1592
      %v1599 = vpack.c.bf16 %v1594, %v1594
      %v1600 = vpack.c.bf16 %v1596, %v1596
      %v1602 = vperm.slane %v1129, 0
      %vm1604 = vcmask 64512
      %v1606 = vsel %vm1604, %v1338, 0
      %v1609 = vsel %vm1604, %v1471, 0
      %1611 = vmatpush.bf16.xpose.msra.mxu0 0
      %1612 = vmatpush.bf16.xpose.msra.mxu0 0
      %1613 = vmatpush.bf16.xpose.msra.mxu0 0
      %1614 = vmatpush.bf16.xpose.msra.mxu0 0
      %1615 = vmatpush.bf16.xpose.msra.mxu0 0
      %1616 = vmatpush.bf16.xpose.msra.mxu0 0
      %1617 = vmatpush.bf16.xpose.msra.mxu0 0
      %1618 = vmatpush.bf16.xpose.msra.mxu0 %v1609
      %1619 = vmatmul.bf16.gmra.mxu0 %v1606
      %v1620 = vpop.f32.mrf.mxu0
      %v1621 = vadd.f32 %v1602, %v1620
      %v1622 = vpop.f32.mrf.mxu0
      %1623 = vdwg.mxu0
      %v1625 = vsel %vm1604, %v1339, 0
      %v1628 = vsel %vm1604, %v1472, 0
      %1630 = vmatpush.bf16.xpose.msra.mxu0 0
      %1631 = vmatpush.bf16.xpose.msra.mxu0 0
      %1632 = vmatpush.bf16.xpose.msra.mxu0 0
      %1633 = vmatpush.bf16.xpose.msra.mxu0 0
      %1634 = vmatpush.bf16.xpose.msra.mxu0 0
      %1635 = vmatpush.bf16.xpose.msra.mxu0 0
      %1636 = vmatpush.bf16.xpose.msra.mxu0 0
      %1637 = vmatpush.bf16.xpose.msra.mxu0 %v1628
      %1638 = vmatmul.bf16.gmra.mxu0 %v1625
      %v1639 = vpop.f32.mrf.mxu0
      %v1640 = vadd.f32 %v1602, %v1639
      %v1641 = vpop.f32.mrf.mxu0
      %1642 = vdwg.mxu0
      %v1644 = vsel %vm1604, %v1340, 0
      %v1647 = vsel %vm1604, %v1473, 0
      %1649 = vmatpush.bf16.xpose.msra.mxu0 0
      %1650 = vmatpush.bf16.xpose.msra.mxu0 0
      %1651 = vmatpush.bf16.xpose.msra.mxu0 0
      %1652 = vmatpush.bf16.xpose.msra.mxu0 0
      %1653 = vmatpush.bf16.xpose.msra.mxu0 0
      %1654 = vmatpush.bf16.xpose.msra.mxu0 0
      %1655 = vmatpush.bf16.xpose.msra.mxu0 0
      %1656 = vmatpush.bf16.xpose.msra.mxu0 %v1647
      %1657 = vmatmul.bf16.gmra.mxu0 %v1644
      %v1658 = vpop.f32.mrf.mxu0
      %v1659 = vadd.f32 %v1602, %v1658
      %v1660 = vpop.f32.mrf.mxu0
      %1661 = vdwg.mxu0
      %v1663 = vsel %vm1604, %v1341, 0
      %v1666 = vsel %vm1604, %v1474, 0
      %1668 = vmatpush.bf16.xpose.msra.mxu0 0
      %1669 = vmatpush.bf16.xpose.msra.mxu0 0
      %1670 = vmatpush.bf16.xpose.msra.mxu0 0
      %1671 = vmatpush.bf16.xpose.msra.mxu0 0
      %1672 = vmatpush.bf16.xpose.msra.mxu0 0
      %1673 = vmatpush.bf16.xpose.msra.mxu0 0
      %1674 = vmatpush.bf16.xpose.msra.mxu0 0
      %1675 = vmatpush.bf16.xpose.msra.mxu0 %v1666
      %1676 = vmatmul.bf16.gmra.mxu0 %v1663
      %v1677 = vpop.f32.mrf.mxu0
      %v1678 = vadd.f32 %v1602, %v1677
      %v1679 = vpop.f32.mrf.mxu0
      %1680 = vdwg.mxu0
      %v1681 = vsel %vm1604, %v1621, -inf
      %1682 = vmax.xlane.f32.xlu0 %v1681
      %v1683 = vpop.xlane.xlu0 %1682
      %v1684 = vsel %vm1604, %v1640, -inf
      %1685 = vmax.xlane.f32.xlu0 %v1684
      %v1686 = vpop.xlane.xlu0 %1685
      %v1687 = vsel %vm1604, %v1659, -inf
      %1688 = vmax.xlane.f32.xlu0 %v1687
      %v1689 = vpop.xlane.xlu0 %1688
      %v1690 = vsel %vm1604, %v1678, -inf
      %1691 = vmax.xlane.f32.xlu0 %v1690
      %v1692 = vpop.xlane.xlu0 %1691
      %v1693 = vsub.f32 %v1621, %v1683
      %v1694 = vsub.f32 %v1640, %v1686
      %v1695 = vsub.f32 %v1659, %v1689
      %v1696 = vsub.f32 %v1678, %v1692
      %v1697 = vmul.f32 %v1693, 1.442695
      %v1698 = vpow.pop %v1697
      %v1699 = vmul.f32 %v1694, 1.442695
      %v1700 = vpow.pop %v1699
      %v1701 = vmul.f32 %v1695, 1.442695
      %v1702 = vpow.pop %v1701
      %v1703 = vmul.f32 %v1696, 1.442695
      %v1704 = vpow.pop %v1703
      %v1705 = vsel %vm1604, %v1698, 0.0
      %1706 = vadd.xlane.f32.xlu0 %v1705
      %v1707 = vpop.xlane.xlu0 %1706
      %v1708 = vsel %vm1604, %v1700, 0.0
      %1709 = vadd.xlane.f32.xlu0 %v1708
      %v1710 = vpop.xlane.xlu0 %1709
      %v1711 = vsel %vm1604, %v1702, 0.0
      %1712 = vadd.xlane.f32.xlu0 %v1711
      %v1713 = vpop.xlane.xlu0 %1712
      %v1714 = vsel %vm1604, %v1704, 0.0
      %1715 = vadd.xlane.f32.xlu0 %v1714
      %v1716 = vpop.xlane.xlu0 %1715
      %v1717 = vrcp.pop %v1707
      %v1718 = vrcp.pop %v1710
      %v1719 = vrcp.pop %v1713
      %v1720 = vrcp.pop %v1716
      %v1721 = vmul.f32 %v1698, %v1717
      %v1722 = vmul.f32 %v1700, %v1718
      %v1723 = vmul.f32 %v1702, %v1719
      %v1724 = vmul.f32 %v1704, %v1720
      %v1725 = vpack.c.bf16 %v1721, %v1721
      %v1726 = vpack.c.bf16 %v1722, %v1722
      %v1727 = vpack.c.bf16 %v1723, %v1723
      %v1728 = vpack.c.bf16 %v1724, %v1724
      %v1730 = vsel %vm1604, %v1725, 0
      %vm1732 = vcmask 1043456
      %v1734 = vsel %vm1732, %v1597, 0
      %1736 = vmatpush.bf16.msra.mxu0 0
      %1737 = vmatpush.bf16.msra.mxu0 0
      %1738 = vmatpush.bf16.msra.mxu0 0
      %1739 = vmatpush.bf16.msra.mxu0 0
      %1740 = vmatpush.bf16.msra.mxu0 0
      %1741 = vmatpush.bf16.msra.mxu0 0
      %1742 = vmatpush.bf16.msra.mxu0 0
      %1743 = vmatpush.bf16.msra.mxu0 %v1734
      %1744 = vmatmul.bf16.gmra.mxu0 %v1730
      %v1745 = vpop.f32.mrf.mxu0
      %v1746 = vadd.f32 0.0, %v1745
      %v1747 = vpop.f32.mrf.mxu0
      %1748 = vdwg.mxu0
      %v1750 = vsel %vm1604, %v1726, 0
      %v1753 = vsel %vm1732, %v1598, 0
      %1755 = vmatpush.bf16.msra.mxu0 0
      %1756 = vmatpush.bf16.msra.mxu0 0
      %1757 = vmatpush.bf16.msra.mxu0 0
      %1758 = vmatpush.bf16.msra.mxu0 0
      %1759 = vmatpush.bf16.msra.mxu0 0
      %1760 = vmatpush.bf16.msra.mxu0 0
      %1761 = vmatpush.bf16.msra.mxu0 0
      %1762 = vmatpush.bf16.msra.mxu0 %v1753
      %1763 = vmatmul.bf16.gmra.mxu0 %v1750
      %v1764 = vpop.f32.mrf.mxu0
      %v1765 = vadd.f32 0.0, %v1764
      %v1766 = vpop.f32.mrf.mxu0
      %1767 = vdwg.mxu0
      %v1769 = vsel %vm1604, %v1727, 0
      %v1772 = vsel %vm1732, %v1599, 0
      %1774 = vmatpush.bf16.msra.mxu0 0
      %1775 = vmatpush.bf16.msra.mxu0 0
      %1776 = vmatpush.bf16.msra.mxu0 0
      %1777 = vmatpush.bf16.msra.mxu0 0
      %1778 = vmatpush.bf16.msra.mxu0 0
      %1779 = vmatpush.bf16.msra.mxu0 0
      %1780 = vmatpush.bf16.msra.mxu0 0
      %1781 = vmatpush.bf16.msra.mxu0 %v1772
      %1782 = vmatmul.bf16.gmra.mxu0 %v1769
      %v1783 = vpop.f32.mrf.mxu0
      %v1784 = vadd.f32 0.0, %v1783
      %v1785 = vpop.f32.mrf.mxu0
      %1786 = vdwg.mxu0
      %v1788 = vsel %vm1604, %v1728, 0
      %v1791 = vsel %vm1732, %v1600, 0
      %1793 = vmatpush.bf16.msra.mxu0 0
      %1794 = vmatpush.bf16.msra.mxu0 0
      %1795 = vmatpush.bf16.msra.mxu0 0
      %1796 = vmatpush.bf16.msra.mxu0 0
      %1797 = vmatpush.bf16.msra.mxu0 0
      %1798 = vmatpush.bf16.msra.mxu0 0
      %1799 = vmatpush.bf16.msra.mxu0 0
      %1800 = vmatpush.bf16.msra.mxu0 %v1791
      %1801 = vmatmul.bf16.gmra.mxu0 %v1788
      %v1802 = vpop.f32.mrf.mxu0
      %v1803 = vadd.f32 0.0, %v1802
      %v1804 = vpop.f32.mrf.mxu0
      %1805 = vdwg.mxu0
      %v1806 = vrot.slane %v1784, 4
      %v1807 = vsel %vm1228, %v1806, %v1746
      %v1808 = vrot.slane %v1746, 4
      %v1809 = vsel %vm1228, %v1784, %v1808
      %v1811 = vunpack.c.l.s4 1983009808
      %v1812 = vunpack.c.0.s8 %v1811
      %v1813 = vperm.slane %v1807, %v1812
      %v1815 = vunpack.c.l.s4 1983009808
      %v1816 = vunpack.c.0.s8 %v1815
      %v1817 = vperm.slane %v1809, %v1816
      %v1818 = vrot.slane %v1803, 4
      %v1819 = vsel %vm1228, %v1818, %v1765
      %v1820 = vrot.slane %v1765, 4
      %v1821 = vsel %vm1228, %v1803, %v1820
      %v1823 = vunpack.c.l.s4 1983009808
      %v1824 = vunpack.c.0.s8 %v1823
      %v1825 = vperm.slane %v1819, %v1824
      %v1827 = vunpack.c.l.s4 1983009808
      %v1828 = vunpack.c.0.s8 %v1827
      %v1829 = vperm.slane %v1821, %v1828
      %v1830 = vrot.slane %v1825, 4
      %v1831 = vsel %vm1228, %v1830, %v1813
      %v1832 = vrot.slane %v1813, 4
      %v1833 = vsel %vm1228, %v1825, %v1832
      %v1835 = vunpack.c.l.s4 1934713408
      %v1836 = vunpack.c.0.s8 %v1835
      %v1837 = vperm.slane %v1831, %v1836
      %v1839 = vunpack.c.l.s4 1934713408
      %v1840 = vunpack.c.0.s8 %v1839
      %v1841 = vperm.slane %v1833, %v1840
      %v1842 = vrot.slane %v1829, 4
      %v1843 = vsel %vm1228, %v1842, %v1817
      %v1844 = vrot.slane %v1817, 4
      %v1845 = vsel %vm1228, %v1829, %v1844
      %v1847 = vunpack.c.l.s4 1934713408
      %v1848 = vunpack.c.0.s8 %v1847
      %v1849 = vperm.slane %v1843, %v1848
      %v1851 = vunpack.c.l.s4 1934713408
      %v1852 = vunpack.c.0.s8 %v1851
      %v1853 = vperm.slane %v1845, %v1852
      %v1854 = vrot.slane %v1837, 4
      %v1855 = vsel %vm1228, 0.0, %v1854
      %v1856 = vrot.slane %v1841, 4
      %v1857 = vsel %vm1228, 0.0, %v1856
      %v1858 = vrot.slane %v1849, 4
      %v1859 = vsel %vm1228, 0.0, %v1858
      %v1860 = vrot.slane %v1853, 4
      %v1861 = vsel %vm1228, 0.0, %v1860
      %v1862 = vsel %vm1228, %v1856, %v1837
      %v1864 = vunpack.c.l.s4 1983009808
      %v1865 = vunpack.c.0.s8 %v1864
      %v1866 = vperm.slane %v1862, %v1865
      %v1867 = vrot.slane %v1857, 4
      %v1868 = vsel %vm1228, %v1867, %v1855
      %v1870 = vunpack.c.l.s4 1983009808
      %v1871 = vunpack.c.0.s8 %v1870
      %v1872 = vperm.slane %v1868, %v1871
      %v1873 = vsel %vm1228, %v1860, %v1849
      %v1875 = vunpack.c.l.s4 1983009808
      %v1876 = vunpack.c.0.s8 %v1875
      %v1877 = vperm.slane %v1873, %v1876
      %v1878 = vrot.slane %v1861, 4
      %v1879 = vsel %vm1228, %v1878, %v1859
      %v1881 = vunpack.c.l.s4 1983009808
      %v1882 = vunpack.c.0.s8 %v1881
      %v1883 = vperm.slane %v1879, %v1882
      %v1884 = vrot.slane %v1872, 4
      %v1885 = vsel %vm1228, %v1884, %v1866
      %v1886 = vrot.slane %v1866, 4
      %v1887 = vsel %vm1228, %v1872, %v1886
      %v1889 = vunpack.c.l.s4 1934713408
      %v1890 = vunpack.c.0.s8 %v1889
      %v1891 = vperm.slane %v1885, %v1890
      %v1893 = vunpack.c.l.s4 1934713408
      %v1894 = vunpack.c.0.s8 %v1893
      %v1895 = vperm.slane %v1887, %v1894
      %v1896 = vrot.slane %v1883, 4
      %v1897 = vsel %vm1228, %v1896, %v1877
      %v1898 = vrot.slane %v1877, 4
      %v1899 = vsel %vm1228, %v1883, %v1898
      %v1901 = vunpack.c.l.s4 1934713408
      %v1902 = vunpack.c.0.s8 %v1901
      %v1903 = vperm.slane %v1897, %v1902
      %v1905 = vunpack.c.l.s4 1934713408
      %v1906 = vunpack.c.0.s8 %v1905
      %v1907 = vperm.slane %v1899, %v1906
      %v1908 = vrot.slane %v1903, 4
      %v1909 = vsel %vm1228, %v1908, %v1891
      %v1910 = vrot.slane %v1891, 4
      %v1911 = vsel %vm1228, %v1903, %v1910
      %v1912 = vrot.slane %v1907, 4
      %v1913 = vsel %vm1228, %v1912, %v1895
      %v1914 = vrot.slane %v1895, 4
      %v1915 = vsel %vm1228, %v1907, %v1914
      %1917 = vrot.lane.b32.xlu0 %v1911, 8
      %v1918 = vpop.permute.xlu0 %1917
      %1921 = vrot.lane.b32.xlu0 %v1913, 16
      %v1922 = vpop.permute.xlu0 %1921
      %1925 = vrot.lane.b32.xlu0 %v1915, 24
      %v1926 = vpop.permute.xlu0 %1925
      %v1928 = vsel %vm1604, %v1909, %v1918
      %vm1929 = vcmask 130048
      %v1930 = vsel %vm1929, %v1928, %v1922
      %vm1931 = vcmask 195584
      %v1932 = vsel %vm1931, %v1930, %v1926
      %v1933 = vpack.c.bf16 %v1932, %v1932
      %v1934 = vld [vmem:[%s17] sm:$0xf]
      %v1935 = vld [vmem:[%s17 + $0x4] sm:$0xf]
      %v1936 = vld [vmem:[%s17 + $0x8] sm:$0xf]
      %v1937 = vld [vmem:[%s17 + $0xc] sm:$0xf]
      %v1938 = vld [vmem:[%s19] sm:$0x1]
      %v1940 = vperm.slane %v1938, 0
      %v1946 = vunpack.c.l.b16 %v1934
      %v1947 = vunpack.c.l.b16 %v1935
      %v1948 = vunpack.c.l.b16 %v1936
      %v1949 = vunpack.c.l.b16 %v1937
      %v1950 = vpack.c.b16 %v1947, %v1946
      %v1951 = vpack.c.b16 %v1949, %v1948
      %v1955 = vsel %vm1145, %v1933, 0
      %1957 = vmatpush.bf16.msra.mxu0 0
      %1958 = vmatpush.bf16.msra.mxu0 0
      %1959 = vmatpush.bf16.msra.mxu0 0
      %1960 = vmatpush.bf16.msra.mxu0 0
      %1961 = vmatpush.bf16.msra.mxu0 0
      %1962 = vmatpush.bf16.msra.mxu0 0
      %1963 = vmatpush.bf16.msra.mxu0 %v1951
      %1964 = vmatpush.bf16.msra.mxu0 %v1950
      %1965 = vmatmul.bf16.gmra.mxu0 %v1955
      %v1966 = vpop.f32.mrf.mxu0
      %v1967 = vadd.f32 %v1940, %v1966
      %v1968 = vpop.f32.mrf.mxu0
      %1969 = vdwg.mxu0
      %v1970 = vadd.f32 %v1178, %v1967
      %v1971 = vld [vmem:[%s21] sm:$0x3]
      %v1972 = vsel %vm1145, %v1970, 0.0
      %1973 = vadd.xlane.f32.xlu0 %v1972
      %v1974 = vpop.xlane.xlu0 %1973
      %v1975 = vmul.f32 %v1974, %v1155
      %v1976 = vsub.f32 %v1970, %v1975
      %v1977 = vmul.f32 %v1976, %v1976
      %v1978 = vsel %vm1145, %v1977, 0.0
      %1979 = vadd.xlane.f32.xlu0 %v1978
      %v1980 = vpop.xlane.xlu0 %1979
      %v1981 = vmul.f32 %v1980, %v1155
      %v1982 = vadd.f32 %v1981, 1e-05
      %v1983 = vrsqrt.pop %v1982
      %v1984 = vmul.f32 %v1983, %v1982
      %v1985 = vmul.f32 %v1984, %v1983
      %v1986 = vmul.f32 0.5, %v1985
      %v1987 = vsub.f32 1.5, %v1986
      %v1988 = vmul.f32 %v1983, %v1987
      %vm1989 = vweird.f32 %v1982
      %vm1990 = vweird.f32 %v1983
      %vm1991 = vmor %vm1989, %vm1990
      %v1992 = vsel %vm1991, %v1983, %v1988
      %v1993 = vmul.f32 %v1976, %v1992
      %v1994 = vperm.slane %v1971, 0
      %v1995 = vmul.f32 %v1993, %v1994
      %v1996 = vperm.slane %v1971, 1
      %v1997 = vadd.f32 %v1995, %v1996
      %v1998 = vpack.c.bf16 %v1997, %v1997
      %v1999 = vld [vmem:[%s23] sm:$0xf]
      %v2000 = vld [vmem:[%s23 + $0x4] sm:$0xf]
      %v2001 = vld [vmem:[%s23 + $0x8] sm:$0xf]
      %v2002 = vld [vmem:[%s23 + $0xc] sm:$0xf]
      %v2003 = vld [vmem:[%s25] sm:$0x1]
      %v2005 = vperm.slane %v2003, 0
      %v2011 = vunpack.c.l.b16 %v1999
      %v2012 = vunpack.c.l.b16 %v2000
      %v2013 = vunpack.c.l.b16 %v2001
      %v2014 = vunpack.c.l.b16 %v2002
      %v2015 = vpack.c.b16 %v2012, %v2011
      %v2016 = vpack.c.b16 %v2014, %v2013
      %v2020 = vsel %vm1145, %v1998, 0
      %2022 = vmatpush.bf16.msra.mxu0 0
      %2023 = vmatpush.bf16.msra.mxu0 0
      %2024 = vmatpush.bf16.msra.mxu0 0
      %2025 = vmatpush.bf16.msra.mxu0 0
      %2026 = vmatpush.bf16.msra.mxu0 0
      %2027 = vmatpush.bf16.msra.mxu0 0
      %2028 = vmatpush.bf16.msra.mxu0 %v2016
      %2029 = vmatpush.bf16.msra.mxu0 %v2015
      %2030 = vmatmul.bf16.gmra.mxu0 %v2020
      %v2031 = vpop.f32.mrf.mxu0
      %v2032 = vadd.f32 %v2005, %v2031
      %v2033 = vpop.f32.mrf.mxu0
      %2034 = vdwg.mxu0
      %v2035 = vmax.f32 %v2032, 0.0
      %v2036 = vpack.c.bf16 %v2035, %v2035
      %v2037 = vld [vmem:[%s27] sm:$0xf]
      %v2038 = vld [vmem:[%s27 + $0x4] sm:$0xf]
      %v2039 = vld [vmem:[%s27 + $0x8] sm:$0xf]
      %v2040 = vld [vmem:[%s27 + $0xc] sm:$0xf]
      %v2041 = vld [vmem:[%s27 + $0x10] sm:$0xf]
      %v2042 = vld [vmem:[%s27 + $0x14] sm:$0xf]
      %v2043 = vld [vmem:[%s27 + $0x18] sm:$0xf]
      %v2044 = vld [vmem:[%s27 + $0x1c] sm:$0xf]
      %v2045 = vld [vmem:[%s29] sm:$0x1]
      %v2047 = vperm.slane %v2045, 0
      %v2057 = vunpack.c.l.b16 %v2037
      %v2058 = vunpack.c.l.b16 %v2038
      %v2059 = vunpack.c.l.b16 %v2039
      %v2060 = vunpack.c.l.b16 %v2040
      %v2061 = vunpack.c.l.b16 %v2041
      %v2062 = vunpack.c.l.b16 %v2042
      %v2063 = vunpack.c.l.b16 %v2043
      %v2064 = vunpack.c.l.b16 %v2044
      %v2065 = vpack.c.b16 %v2058, %v2057
      %v2066 = vpack.c.b16 %v2060, %v2059
      %v2067 = vpack.c.b16 %v2062, %v2061
      %v2068 = vpack.c.b16 %v2064, %v2063
      %vm2073 = vcmask 523264
      %v2075 = vsel %vm2073, %v2036, 0
      %2077 = vmatpush.bf16.msra.mxu0 0
      %2078 = vmatpush.bf16.msra.mxu0 0
      %2079 = vmatpush.bf16.msra.mxu0 0
      %2080 = vmatpush.bf16.msra.mxu0 0
      %2081 = vmatpush.bf16.msra.mxu0 %v2068
      %2082 = vmatpush.bf16.msra.mxu0 %v2067
      %2083 = vmatpush.bf16.msra.mxu0 %v2066
      %2084 = vmatpush.bf16.msra.mxu0 %v2065
      %2085 = vmatmul.bf16.gmra.mxu0 %v2075
      %v2086 = vpop.f32.mrf.mxu0
      %v2087 = vadd.f32 %v2047, %v2086
      %v2088 = vpop.f32.mrf.mxu0
      %2089 = vdwg.mxu0
      %v2090 = vadd.f32 %v1997, %v2087
      %v2091 = vld [vmem:[%s31] sm:$0x3]
      %v2092 = vsel %vm1145, %v2090, 0.0
      %2093 = vadd.xlane.f32.xlu0 %v2092
      %v2094 = vpop.xlane.xlu0 %2093
      %v2095 = vmul.f32 %v2094, %v1155
      %v2096 = vsub.f32 %v2090, %v2095
      %v2097 = vmul.f32 %v2096, %v2096
      %v2098 = vsel %vm1145, %v2097, 0.0
      %2099 = vadd.xlane.f32.xlu0 %v2098
      %v2100 = vpop.xlane.xlu0 %2099
      %v2101 = vmul.f32 %v2100, %v1155
      %v2102 = vadd.f32 %v2101, 1e-05
      %v2103 = vrsqrt.pop %v2102
      %v2104 = vmul.f32 %v2103, %v2102
      %v2105 = vmul.f32 %v2104, %v2103
      %v2106 = vmul.f32 0.5, %v2105
      %v2107 = vsub.f32 1.5, %v2106
      %v2108 = vmul.f32 %v2103, %v2107
      %vm2109 = vweird.f32 %v2102
      %vm2110 = vweird.f32 %v2103
      %vm2111 = vmor %vm2109, %vm2110
      %v2112 = vsel %vm2111, %v2103, %v2108
      %v2113 = vmul.f32 %v2096, %v2112
      %v2114 = vperm.slane %v2091, 0
      %v2115 = vmul.f32 %v2113, %v2114
      %v2116 = vperm.slane %v2091, 1
      %v2117 = vadd.f32 %v2115, %v2116
      %v2118 = vpack.c.bf16 %v2117, %v2117
      %v2119 = vld [vmem:[%s1115] sm:$0xff]
      %v2120 = vpack.c.bf16 %v2119, %v2119
      %v2121 = vld [vmem:[%s33] sm:$0xf]
      %v2122 = vld [vmem:[%s33 + $0x4] sm:$0xf]
      %v2123 = vld [vmem:[%s33 + $0x8] sm:$0xf]
      %v2124 = vld [vmem:[%s33 + $0xc] sm:$0xf]
      %v2125 = vld [vmem:[%s35] sm:$0x1]
      %v2127 = vperm.slane %v2125, 0
      %v2133 = vunpack.c.l.b16 %v2121
      %v2134 = vunpack.c.l.b16 %v2122
      %v2135 = vunpack.c.l.b16 %v2123
      %v2136 = vunpack.c.l.b16 %v2124
      %v2137 = vpack.c.b16 %v2134, %v2133
      %v2138 = vpack.c.b16 %v2136, %v2135
      %v2142 = vsel %vm1145, %v2120, 0
      %2144 = vmatpush.bf16.msra.mxu0 0
      %2145 = vmatpush.bf16.msra.mxu0 0
      %2146 = vmatpush.bf16.msra.mxu0 0
      %2147 = vmatpush.bf16.msra.mxu0 0
      %2148 = vmatpush.bf16.msra.mxu0 0
      %2149 = vmatpush.bf16.msra.mxu0 0
      %2150 = vmatpush.bf16.msra.mxu0 %v2138
      %2151 = vmatpush.bf16.msra.mxu0 %v2137
      %2152 = vmatmul.bf16.gmra.mxu0 %v2142
      %v2153 = vpop.f32.mrf.mxu0
      %v2154 = vadd.f32 %v2127, %v2153
      %v2155 = vpop.f32.mrf.mxu0
      %2156 = vdwg.mxu0
      %v2157 = vmul.f32 %v2154, 0.35355338
      %2159 = vrot.lane.b32.xlu0 %v2157, 120
      %v2160 = vpop.permute.xlu0 %2159
      %2162 = vrot.lane.b32.xlu0 %v2157, 112
      %v2163 = vpop.permute.xlu0 %2162
      %2165 = vrot.lane.b32.xlu0 %v2157, 104
      %v2166 = vpop.permute.xlu0 %2165
      %v2168 = vrot.slane %v2163, 4
      %v2169 = vsel %vm1228, %v2168, %v2157
      %v2170 = vrot.slane %v2157, 4
      %v2171 = vsel %vm1228, %v2163, %v2170
      %v2173 = vunpack.c.l.s4 1983009808
      %v2174 = vunpack.c.0.s8 %v2173
      %v2175 = vperm.slane %v2169, %v2174
      %v2177 = vunpack.c.l.s4 1983009808
      %v2178 = vunpack.c.0.s8 %v2177
      %v2179 = vperm.slane %v2171, %v2178
      %v2180 = vrot.slane %v2166, 4
      %v2181 = vsel %vm1228, %v2180, %v2160
      %v2182 = vrot.slane %v2160, 4
      %v2183 = vsel %vm1228, %v2166, %v2182
      %v2185 = vunpack.c.l.s4 1983009808
      %v2186 = vunpack.c.0.s8 %v2185
      %v2187 = vperm.slane %v2181, %v2186
      %v2189 = vunpack.c.l.s4 1983009808
      %v2190 = vunpack.c.0.s8 %v2189
      %v2191 = vperm.slane %v2183, %v2190
      %v2192 = vrot.slane %v2187, 4
      %v2193 = vsel %vm1228, %v2192, %v2175
      %v2194 = vrot.slane %v2175, 4
      %v2195 = vsel %vm1228, %v2187, %v2194
      %v2197 = vunpack.c.l.s4 1934713408
      %v2198 = vunpack.c.0.s8 %v2197
      %v2199 = vperm.slane %v2193, %v2198
      %v2201 = vunpack.c.l.s4 1934713408
      %v2202 = vunpack.c.0.s8 %v2201
      %v2203 = vperm.slane %v2195, %v2202
      %v2204 = vrot.slane %v2191, 4
      %v2205 = vsel %vm1228, %v2204, %v2179
      %v2206 = vrot.slane %v2179, 4
      %v2207 = vsel %vm1228, %v2191, %v2206
      %v2209 = vunpack.c.l.s4 1934713408
      %v2210 = vunpack.c.0.s8 %v2209
      %v2211 = vperm.slane %v2205, %v2210
      %v2213 = vunpack.c.l.s4 1934713408
      %v2214 = vunpack.c.0.s8 %v2213
      %v2215 = vperm.slane %v2207, %v2214
      %v2216 = vrot.slane %v2199, 4
      %v2217 = vsel %vm1228, 0.0, %v2216
      %v2218 = vrot.slane %v2203, 4
      %v2219 = vsel %vm1228, 0.0, %v2218
      %v2220 = vrot.slane %v2211, 4
      %v2221 = vsel %vm1228, 0.0, %v2220
      %v2222 = vrot.slane %v2215, 4
      %v2223 = vsel %vm1228, 0.0, %v2222
      %v2224 = vsel %vm1228, %v2218, %v2199
      %v2226 = vunpack.c.l.s4 1983009808
      %v2227 = vunpack.c.0.s8 %v2226
      %v2228 = vperm.slane %v2224, %v2227
      %v2229 = vrot.slane %v2219, 4
      %v2230 = vsel %vm1228, %v2229, %v2217
      %v2232 = vunpack.c.l.s4 1983009808
      %v2233 = vunpack.c.0.s8 %v2232
      %v2234 = vperm.slane %v2230, %v2233
      %v2235 = vsel %vm1228, %v2222, %v2211
      %v2237 = vunpack.c.l.s4 1983009808
      %v2238 = vunpack.c.0.s8 %v2237
      %v2239 = vperm.slane %v2235, %v2238
      %v2240 = vrot.slane %v2223, 4
      %v2241 = vsel %vm1228, %v2240, %v2221
      %v2243 = vunpack.c.l.s4 1983009808
      %v2244 = vunpack.c.0.s8 %v2243
      %v2245 = vperm.slane %v2241, %v2244
      %v2246 = vrot.slane %v2234, 4
      %v2247 = vsel %vm1228, %v2246, %v2228
      %v2248 = vrot.slane %v2228, 4
      %v2249 = vsel %vm1228, %v2234, %v2248
      %v2251 = vunpack.c.l.s4 1934713408
      %v2252 = vunpack.c.0.s8 %v2251
      %v2253 = vperm.slane %v2247, %v2252
      %v2255 = vunpack.c.l.s4 1934713408
      %v2256 = vunpack.c.0.s8 %v2255
      %v2257 = vperm.slane %v2249, %v2256
      %v2258 = vrot.slane %v2245, 4
      %v2259 = vsel %vm1228, %v2258, %v2239
      %v2260 = vrot.slane %v2239, 4
      %v2261 = vsel %vm1228, %v2245, %v2260
      %v2263 = vunpack.c.l.s4 1934713408
      %v2264 = vunpack.c.0.s8 %v2263
      %v2265 = vperm.slane %v2259, %v2264
      %v2267 = vunpack.c.l.s4 1934713408
      %v2268 = vunpack.c.0.s8 %v2267
      %v2269 = vperm.slane %v2261, %v2268
      %v2270 = vrot.slane %v2265, 4
      %v2271 = vsel %vm1228, %v2270, %v2253
      %v2272 = vrot.slane %v2253, 4
      %v2273 = vsel %vm1228, %v2265, %v2272
      %v2274 = vrot.slane %v2269, 4
      %v2275 = vsel %vm1228, %v2274, %v2257
      %v2276 = vrot.slane %v2257, 4
      %v2277 = vsel %vm1228, %v2269, %v2276
      %v2278 = vpack.c.bf16 %v2271, %v2271
      %v2279 = vpack.c.bf16 %v2273, %v2273
      %v2280 = vpack.c.bf16 %v2275, %v2275
      %v2281 = vpack.c.bf16 %v2277, %v2277
      %2283 = vrot.lane.b32.xlu0 %v2154, 120
      %v2284 = vpop.permute.xlu0 %2283
      %2285 = vrot.lane.b32.xlu0 %v2154, 112
      %v2286 = vpop.permute.xlu0 %2285
      %2287 = vrot.lane.b32.xlu0 %v2154, 104
      %v2288 = vpop.permute.xlu0 %2287
      %2289 = vrot.lane.b32.xlu0 %v2154, 96
      %v2290 = vpop.permute.xlu0 %2289
      %2291 = vrot.lane.b32.xlu0 %v2284, 96
      %v2292 = vpop.permute.xlu0 %2291
      %2293 = vrot.lane.b32.xlu0 %v2286, 96
      %v2294 = vpop.permute.xlu0 %2293
      %2295 = vrot.lane.b32.xlu0 %v2288, 96
      %v2296 = vpop.permute.xlu0 %2295
      %v2301 = vrot.slane %v2294, 4
      %v2302 = vsel %vm1228, %v2301, %v2290
      %v2303 = vrot.slane %v2290, 4
      %v2304 = vsel %vm1228, %v2294, %v2303
      %v2306 = vunpack.c.l.s4 1983009808
      %v2307 = vunpack.c.0.s8 %v2306
      %v2308 = vperm.slane %v2302, %v2307
      %v2310 = vunpack.c.l.s4 1983009808
      %v2311 = vunpack.c.0.s8 %v2310
      %v2312 = vperm.slane %v2304, %v2311
      %v2313 = vrot.slane %v2296, 4
      %v2314 = vsel %vm1228, %v2313, %v2292
      %v2315 = vrot.slane %v2292, 4
      %v2316 = vsel %vm1228, %v2296, %v2315
      %v2318 = vunpack.c.l.s4 1983009808
      %v2319 = vunpack.c.0.s8 %v2318
      %v2320 = vperm.slane %v2314, %v2319
      %v2322 = vunpack.c.l.s4 1983009808
      %v2323 = vunpack.c.0.s8 %v2322
      %v2324 = vperm.slane %v2316, %v2323
      %v2325 = vrot.slane %v2320, 4
      %v2326 = vsel %vm1228, %v2325, %v2308
      %v2327 = vrot.slane %v2308, 4
      %v2328 = vsel %vm1228, %v2320, %v2327
      %v2330 = vunpack.c.l.s4 1934713408
      %v2331 = vunpack.c.0.s8 %v2330
      %v2332 = vperm.slane %v2326, %v2331
      %v2334 = vunpack.c.l.s4 1934713408
      %v2335 = vunpack.c.0.s8 %v2334
      %v2336 = vperm.slane %v2328, %v2335
      %v2337 = vrot.slane %v2324, 4
      %v2338 = vsel %vm1228, %v2337, %v2312
      %v2339 = vrot.slane %v2312, 4
      %v2340 = vsel %vm1228, %v2324, %v2339
      %v2342 = vunpack.c.l.s4 1934713408
      %v2343 = vunpack.c.0.s8 %v2342
      %v2344 = vperm.slane %v2338, %v2343
      %v2346 = vunpack.c.l.s4 1934713408
      %v2347 = vunpack.c.0.s8 %v2346
      %v2348 = vperm.slane %v2340, %v2347
      %v2349 = vrot.slane %v2332, 4
      %v2350 = vsel %vm1228, 0.0, %v2349
      %v2351 = vrot.slane %v2336, 4
      %v2352 = vsel %vm1228, 0.0, %v2351
      %v2353 = vrot.slane %v2344, 4
      %v2354 = vsel %vm1228, 0.0, %v2353
      %v2355 = vrot.slane %v2348, 4
      %v2356 = vsel %vm1228, 0.0, %v2355
      %v2357 = vsel %vm1228, %v2351, %v2332
      %v2359 = vunpack.c.l.s4 1983009808
      %v2360 = vunpack.c.0.s8 %v2359
      %v2361 = vperm.slane %v2357, %v2360
      %v2362 = vrot.slane %v2352, 4
      %v2363 = vsel %vm1228, %v2362, %v2350
      %v2365 = vunpack.c.l.s4 1983009808
      %v2366 = vunpack.c.0.s8 %v2365
      %v2367 = vperm.slane %v2363, %v2366
      %v2368 = vsel %vm1228, %v2355, %v2344
      %v2370 = vunpack.c.l.s4 1983009808
      %v2371 = vunpack.c.0.s8 %v2370
      %v2372 = vperm.slane %v2368, %v2371
      %v2373 = vrot.slane %v2356, 4
      %v2374 = vsel %vm1228, %v2373, %v2354
      %v2376 = vunpack.c.l.s4 1983009808
      %v2377 = vunpack.c.0.s8 %v2376
      %v2378 = vperm.slane %v2374, %v2377
      %v2379 = vrot.slane %v2367, 4
      %v2380 = vsel %vm1228, %v2379, %v2361
      %v2381 = vrot.slane %v2361, 4
      %v2382 = vsel %vm1228, %v2367, %v2381
      %v2384 = vunpack.c.l.s4 1934713408
      %v2385 = vunpack.c.0.s8 %v2384
      %v2386 = vperm.slane %v2380, %v2385
      %v2388 = vunpack.c.l.s4 1934713408
      %v2389 = vunpack.c.0.s8 %v2388
      %v2390 = vperm.slane %v2382, %v2389
      %v2391 = vrot.slane %v2378, 4
      %v2392 = vsel %vm1228, %v2391, %v2372
      %v2393 = vrot.slane %v2372, 4
      %v2394 = vsel %vm1228, %v2378, %v2393
      %v2396 = vunpack.c.l.s4 1934713408
      %v2397 = vunpack.c.0.s8 %v2396
      %v2398 = vperm.slane %v2392, %v2397
      %v2400 = vunpack.c.l.s4 1934713408
      %v2401 = vunpack.c.0.s8 %v2400
      %v2402 = vperm.slane %v2394, %v2401
      %v2403 = vrot.slane %v2398, 4
      %v2404 = vsel %vm1228, %v2403, %v2386
      %v2405 = vrot.slane %v2386, 4
      %v2406 = vsel %vm1228, %v2398, %v2405
      %v2407 = vrot.slane %v2402, 4
      %v2408 = vsel %vm1228, %v2407, %v2390
      %v2409 = vrot.slane %v2390, 4
      %v2410 = vsel %vm1228, %v2402, %v2409
      %v2411 = vpack.c.bf16 %v2404, %v2404
      %v2412 = vpack.c.bf16 %v2406, %v2406
      %v2413 = vpack.c.bf16 %v2408, %v2408
      %v2414 = vpack.c.bf16 %v2410, %v2410
      %2415 = vrot.lane.b32.xlu0 %v2154, 64
      %v2416 = vpop.permute.xlu0 %2415
      %2417 = vrot.lane.b32.xlu0 %v2284, 64
      %v2418 = vpop.permute.xlu0 %2417
      %2419 = vrot.lane.b32.xlu0 %v2286, 64
      %v2420 = vpop.permute.xlu0 %2419
      %2421 = vrot.lane.b32.xlu0 %v2288, 64
      %v2422 = vpop.permute.xlu0 %2421
      %v2427 = vrot.slane %v2420, 4
      %v2428 = vsel %vm1228, %v2427, %v2416
      %v2429 = vrot.slane %v2416, 4
      %v2430 = vsel %vm1228, %v2420, %v2429
      %v2432 = vunpack.c.l.s4 1983009808
      %v2433 = vunpack.c.0.s8 %v2432
      %v2434 = vperm.slane %v2428, %v2433
      %v2436 = vunpack.c.l.s4 1983009808
      %v2437 = vunpack.c.0.s8 %v2436
      %v2438 = vperm.slane %v2430, %v2437
      %v2439 = vrot.slane %v2422, 4
      %v2440 = vsel %vm1228, %v2439, %v2418
      %v2441 = vrot.slane %v2418, 4
      %v2442 = vsel %vm1228, %v2422, %v2441
      %v2444 = vunpack.c.l.s4 1983009808
      %v2445 = vunpack.c.0.s8 %v2444
      %v2446 = vperm.slane %v2440, %v2445
      %v2448 = vunpack.c.l.s4 1983009808
      %v2449 = vunpack.c.0.s8 %v2448
      %v2450 = vperm.slane %v2442, %v2449
      %v2451 = vrot.slane %v2446, 4
      %v2452 = vsel %vm1228, %v2451, %v2434
      %v2453 = vrot.slane %v2434, 4
      %v2454 = vsel %vm1228, %v2446, %v2453
      %v2456 = vunpack.c.l.s4 1934713408
      %v2457 = vunpack.c.0.s8 %v2456
      %v2458 = vperm.slane %v2452, %v2457
      %v2460 = vunpack.c.l.s4 1934713408
      %v2461 = vunpack.c.0.s8 %v2460
      %v2462 = vperm.slane %v2454, %v2461
      %v2463 = vrot.slane %v2450, 4
      %v2464 = vsel %vm1228, %v2463, %v2438
      %v2465 = vrot.slane %v2438, 4
      %v2466 = vsel %vm1228, %v2450, %v2465
      %v2468 = vunpack.c.l.s4 1934713408
      %v2469 = vunpack.c.0.s8 %v2468
      %v2470 = vperm.slane %v2464, %v2469
      %v2472 = vunpack.c.l.s4 1934713408
      %v2473 = vunpack.c.0.s8 %v2472
      %v2474 = vperm.slane %v2466, %v2473
      %v2475 = vrot.slane %v2458, 4
      %v2476 = vsel %vm1228, 0.0, %v2475
      %v2477 = vrot.slane %v2462, 4
      %v2478 = vsel %vm1228, 0.0, %v2477
      %v2479 = vrot.slane %v2470, 4
      %v2480 = vsel %vm1228, 0.0, %v2479
      %v2481 = vrot.slane %v2474, 4
      %v2482 = vsel %vm1228, 0.0, %v2481
      %v2483 = vsel %vm1228, %v2477, %v2458
      %v2485 = vunpack.c.l.s4 1983009808
      %v2486 = vunpack.c.0.s8 %v2485
      %v2487 = vperm.slane %v2483, %v2486
      %v2488 = vrot.slane %v2478, 4
      %v2489 = vsel %vm1228, %v2488, %v2476
      %v2491 = vunpack.c.l.s4 1983009808
      %v2492 = vunpack.c.0.s8 %v2491
      %v2493 = vperm.slane %v2489, %v2492
      %v2494 = vsel %vm1228, %v2481, %v2470
      %v2496 = vunpack.c.l.s4 1983009808
      %v2497 = vunpack.c.0.s8 %v2496
      %v2498 = vperm.slane %v2494, %v2497
      %v2499 = vrot.slane %v2482, 4
      %v2500 = vsel %vm1228, %v2499, %v2480
      %v2502 = vunpack.c.l.s4 1983009808
      %v2503 = vunpack.c.0.s8 %v2502
      %v2504 = vperm.slane %v2500, %v2503
      %v2505 = vrot.slane %v2493, 4
      %v2506 = vsel %vm1228, %v2505, %v2487
      %v2507 = vrot.slane %v2487, 4
      %v2508 = vsel %vm1228, %v2493, %v2507
      %v2510 = vunpack.c.l.s4 1934713408
      %v2511 = vunpack.c.0.s8 %v2510
      %v2512 = vperm.slane %v2506, %v2511
      %v2514 = vunpack.c.l.s4 1934713408
      %v2515 = vunpack.c.0.s8 %v2514
      %v2516 = vperm.slane %v2508, %v2515
      %v2517 = vrot.slane %v2504, 4
      %v2518 = vsel %vm1228, %v2517, %v2498
      %v2519 = vrot.slane %v2498, 4
      %v2520 = vsel %vm1228, %v2504, %v2519
      %v2522 = vunpack.c.l.s4 1934713408
      %v2523 = vunpack.c.0.s8 %v2522
      %v2524 = vperm.slane %v2518, %v2523
      %v2526 = vunpack.c.l.s4 1934713408
      %v2527 = vunpack.c.0.s8 %v2526
      %v2528 = vperm.slane %v2520, %v2527
      %v2529 = vrot.slane %v2524, 4
      %v2530 = vsel %vm1228, %v2529, %v2512
      %v2531 = vrot.slane %v2512, 4
      %v2532 = vsel %vm1228, %v2524, %v2531
      %v2533 = vrot.slane %v2528, 4
      %v2534 = vsel %vm1228, %v2533, %v2516
      %v2535 = vrot.slane %v2516, 4
      %v2536 = vsel %vm1228, %v2528, %v2535
      %v2537 = vpack.c.bf16 %v2530, %v2530
      %v2538 = vpack.c.bf16 %v2532, %v2532
      %v2539 = vpack.c.bf16 %v2534, %v2534
      %v2540 = vpack.c.bf16 %v2536, %v2536
      %v2542 = vsel %vm1604, %v2278, 0
      %v2545 = vsel %vm1604, %v2411, 0
      %2547 = vmatpush.bf16.xpose.msra.mxu0 0
      %2548 = vmatpush.bf16.xpose.msra.mxu0 0
      %2549 = vmatpush.bf16.xpose.msra.mxu0 0
      %2550 = vmatpush.bf16.xpose.msra.mxu0 0
      %2551 = vmatpush.bf16.xpose.msra.mxu0 0
      %2552 = vmatpush.bf16.xpose.msra.mxu0 0
      %2553 = vmatpush.bf16.xpose.msra.mxu0 0
      %2554 = vmatpush.bf16.xpose.msra.mxu0 %v2545
      %2555 = vmatmul.bf16.gmra.mxu0 %v2542
      %v2556 = vpop.f32.mrf.mxu0
      %v2557 = vadd.f32 %v1142, %v2556
      %v2558 = vpop.f32.mrf.mxu0
      %2559 = vdwg.mxu0
      %v2561 = vsel %vm1604, %v2279, 0
      %v2564 = vsel %vm1604, %v2412, 0
      %2566 = vmatpush.bf16.xpose.msra.mxu0 0
      %2567 = vmatpush.bf16.xpose.msra.mxu0 0
      %2568 = vmatpush.bf16.xpose.msra.mxu0 0
      %2569 = vmatpush.bf16.xpose.msra.mxu0 0
      %2570 = vmatpush.bf16.xpose.msra.mxu0 0
      %2571 = vmatpush.bf16.xpose.msra.mxu0 0
      %2572 = vmatpush.bf16.xpose.msra.mxu0 0
      %2573 = vmatpush.bf16.xpose.msra.mxu0 %v2564
      %2574 = vmatmul.bf16.gmra.mxu0 %v2561
      %v2575 = vpop.f32.mrf.mxu0
      %v2576 = vadd.f32 %v1142, %v2575
      %v2577 = vpop.f32.mrf.mxu0
      %2578 = vdwg.mxu0
      %v2580 = vsel %vm1604, %v2280, 0
      %v2583 = vsel %vm1604, %v2413, 0
      %2585 = vmatpush.bf16.xpose.msra.mxu0 0
      %2586 = vmatpush.bf16.xpose.msra.mxu0 0
      %2587 = vmatpush.bf16.xpose.msra.mxu0 0
      %2588 = vmatpush.bf16.xpose.msra.mxu0 0
      %2589 = vmatpush.bf16.xpose.msra.mxu0 0
      %2590 = vmatpush.bf16.xpose.msra.mxu0 0
      %2591 = vmatpush.bf16.xpose.msra.mxu0 0
      %2592 = vmatpush.bf16.xpose.msra.mxu0 %v2583
      %2593 = vmatmul.bf16.gmra.mxu0 %v2580
      %v2594 = vpop.f32.mrf.mxu0
      %v2595 = vadd.f32 %v1142, %v2594
      %v2596 = vpop.f32.mrf.mxu0
      %2597 = vdwg.mxu0
      %v2599 = vsel %vm1604, %v2281, 0
      %v2602 = vsel %vm1604, %v2414, 0
      %2604 = vmatpush.bf16.xpose.msra.mxu0 0
      %2605 = vmatpush.bf16.xpose.msra.mxu0 0
      %2606 = vmatpush.bf16.xpose.msra.mxu0 0
      %2607 = vmatpush.bf16.xpose.msra.mxu0 0
      %2608 = vmatpush.bf16.xpose.msra.mxu0 0
      %2609 = vmatpush.bf16.xpose.msra.mxu0 0
      %2610 = vmatpush.bf16.xpose.msra.mxu0 0
      %2611 = vmatpush.bf16.xpose.msra.mxu0 %v2602
      %2612 = vmatmul.bf16.gmra.mxu0 %v2599
      %v2613 = vpop.f32.mrf.mxu0
      %v2614 = vadd.f32 %v1142, %v2613
      %v2615 = vpop.f32.mrf.mxu0
      %2616 = vdwg.mxu0
      %v2617 = vsel %vm1604, %v2557, -inf
      %2618 = vmax.xlane.f32.xlu0 %v2617
      %v2619 = vpop.xlane.xlu0 %2618
      %v2620 = vsel %vm1604, %v2576, -inf
      %2621 = vmax.xlane.f32.xlu0 %v2620
      %v2622 = vpop.xlane.xlu0 %2621
      %v2623 = vsel %vm1604, %v2595, -inf
      %2624 = vmax.xlane.f32.xlu0 %v2623
      %v2625 = vpop.xlane.xlu0 %2624
      %v2626 = vsel %vm1604, %v2614, -inf
      %2627 = vmax.xlane.f32.xlu0 %v2626
      %v2628 = vpop.xlane.xlu0 %2627
      %v2629 = vsub.f32 %v2557, %v2619
      %v2630 = vsub.f32 %v2576, %v2622
      %v2631 = vsub.f32 %v2595, %v2625
      %v2632 = vsub.f32 %v2614, %v2628
      %v2633 = vmul.f32 %v2629, 1.442695
      %v2634 = vpow.pop %v2633
      %v2635 = vmul.f32 %v2630, 1.442695
      %v2636 = vpow.pop %v2635
      %v2637 = vmul.f32 %v2631, 1.442695
      %v2638 = vpow.pop %v2637
      %v2639 = vmul.f32 %v2632, 1.442695
      %v2640 = vpow.pop %v2639
      %v2641 = vsel %vm1604, %v2634, 0.0
      %2642 = vadd.xlane.f32.xlu0 %v2641
      %v2643 = vpop.xlane.xlu0 %2642
      %v2644 = vsel %vm1604, %v2636, 0.0
      %2645 = vadd.xlane.f32.xlu0 %v2644
      %v2646 = vpop.xlane.xlu0 %2645
      %v2647 = vsel %vm1604, %v2638, 0.0
      %2648 = vadd.xlane.f32.xlu0 %v2647
      %v2649 = vpop.xlane.xlu0 %2648
      %v2650 = vsel %vm1604, %v2640, 0.0
      %2651 = vadd.xlane.f32.xlu0 %v2650
      %v2652 = vpop.xlane.xlu0 %2651
      %v2653 = vrcp.pop %v2643
      %v2654 = vrcp.pop %v2646
      %v2655 = vrcp.pop %v2649
      %v2656 = vrcp.pop %v2652
      %v2657 = vmul.f32 %v2634, %v2653
      %v2658 = vmul.f32 %v2636, %v2654
      %v2659 = vmul.f32 %v2638, %v2655
      %v2660 = vmul.f32 %v2640, %v2656
      %v2661 = vpack.c.bf16 %v2657, %v2657
      %v2662 = vpack.c.bf16 %v2658, %v2658
      %v2663 = vpack.c.bf16 %v2659, %v2659
      %v2664 = vpack.c.bf16 %v2660, %v2660
      %v2666 = vsel %vm1604, %v2661, 0
      %v2669 = vsel %vm1732, %v2537, 0
      %2671 = vmatpush.bf16.msra.mxu0 0
      %2672 = vmatpush.bf16.msra.mxu0 0
      %2673 = vmatpush.bf16.msra.mxu0 0
      %2674 = vmatpush.bf16.msra.mxu0 0
      %2675 = vmatpush.bf16.msra.mxu0 0
      %2676 = vmatpush.bf16.msra.mxu0 0
      %2677 = vmatpush.bf16.msra.mxu0 0
      %2678 = vmatpush.bf16.msra.mxu0 %v2669
      %2679 = vmatmul.bf16.gmra.mxu0 %v2666
      %v2680 = vpop.f32.mrf.mxu0
      %v2681 = vadd.f32 0.0, %v2680
      %v2682 = vpop.f32.mrf.mxu0
      %2683 = vdwg.mxu0
      %v2685 = vsel %vm1604, %v2662, 0
      %v2688 = vsel %vm1732, %v2538, 0
      %2690 = vmatpush.bf16.msra.mxu0 0
      %2691 = vmatpush.bf16.msra.mxu0 0
      %2692 = vmatpush.bf16.msra.mxu0 0
      %2693 = vmatpush.bf16.msra.mxu0 0
      %2694 = vmatpush.bf16.msra.mxu0 0
      %2695 = vmatpush.bf16.msra.mxu0 0
      %2696 = vmatpush.bf16.msra.mxu0 0
      %2697 = vmatpush.bf16.msra.mxu0 %v2688
      %2698 = vmatmul.bf16.gmra.mxu0 %v2685
      %v2699 = vpop.f32.mrf.mxu0
      %v2700 = vadd.f32 0.0, %v2699
      %v2701 = vpop.f32.mrf.mxu0
      %2702 = vdwg.mxu0
      %v2704 = vsel %vm1604, %v2663, 0
      %v2707 = vsel %vm1732, %v2539, 0
      %2709 = vmatpush.bf16.msra.mxu0 0
      %2710 = vmatpush.bf16.msra.mxu0 0
      %2711 = vmatpush.bf16.msra.mxu0 0
      %2712 = vmatpush.bf16.msra.mxu0 0
      %2713 = vmatpush.bf16.msra.mxu0 0
      %2714 = vmatpush.bf16.msra.mxu0 0
      %2715 = vmatpush.bf16.msra.mxu0 0
      %2716 = vmatpush.bf16.msra.mxu0 %v2707
      %2717 = vmatmul.bf16.gmra.mxu0 %v2704
      %v2718 = vpop.f32.mrf.mxu0
      %v2719 = vadd.f32 0.0, %v2718
      %v2720 = vpop.f32.mrf.mxu0
      %2721 = vdwg.mxu0
      %v2723 = vsel %vm1604, %v2664, 0
      %v2726 = vsel %vm1732, %v2540, 0
      %2728 = vmatpush.bf16.msra.mxu0 0
      %2729 = vmatpush.bf16.msra.mxu0 0
      %2730 = vmatpush.bf16.msra.mxu0 0
      %2731 = vmatpush.bf16.msra.mxu0 0
      %2732 = vmatpush.bf16.msra.mxu0 0
      %2733 = vmatpush.bf16.msra.mxu0 0
      %2734 = vmatpush.bf16.msra.mxu0 0
      %2735 = vmatpush.bf16.msra.mxu0 %v2726
      %2736 = vmatmul.bf16.gmra.mxu0 %v2723
      %v2737 = vpop.f32.mrf.mxu0
      %v2738 = vadd.f32 0.0, %v2737
      %v2739 = vpop.f32.mrf.mxu0
      %2740 = vdwg.mxu0
      %v2741 = vrot.slane %v2719, 4
      %v2742 = vsel %vm1228, %v2741, %v2681
      %v2743 = vrot.slane %v2681, 4
      %v2744 = vsel %vm1228, %v2719, %v2743
      %v2746 = vunpack.c.l.s4 1983009808
      %v2747 = vunpack.c.0.s8 %v2746
      %v2748 = vperm.slane %v2742, %v2747
      %v2750 = vunpack.c.l.s4 1983009808
      %v2751 = vunpack.c.0.s8 %v2750
      %v2752 = vperm.slane %v2744, %v2751
      %v2753 = vrot.slane %v2738, 4
      %v2754 = vsel %vm1228, %v2753, %v2700
      %v2755 = vrot.slane %v2700, 4
      %v2756 = vsel %vm1228, %v2738, %v2755
      %v2758 = vunpack.c.l.s4 1983009808
      %v2759 = vunpack.c.0.s8 %v2758
      %v2760 = vperm.slane %v2754, %v2759
      %v2762 = vunpack.c.l.s4 1983009808
      %v2763 = vunpack.c.0.s8 %v2762
      %v2764 = vperm.slane %v2756, %v2763
      %v2765 = vrot.slane %v2760, 4
      %v2766 = vsel %vm1228, %v2765, %v2748
      %v2767 = vrot.slane %v2748, 4
      %v2768 = vsel %vm1228, %v2760, %v2767
      %v2770 = vunpack.c.l.s4 1934713408
      %v2771 = vunpack.c.0.s8 %v2770
      %v2772 = vperm.slane %v2766, %v2771
      %v2774 = vunpack.c.l.s4 1934713408
      %v2775 = vunpack.c.0.s8 %v2774
      %v2776 = vperm.slane %v2768, %v2775
      %v2777 = vrot.slane %v2764, 4
      %v2778 = vsel %vm1228, %v2777, %v2752
      %v2779 = vrot.slane %v2752, 4
      %v2780 = vsel %vm1228, %v2764, %v2779
      %v2782 = vunpack.c.l.s4 1934713408
      %v2783 = vunpack.c.0.s8 %v2782
      %v2784 = vperm.slane %v2778, %v2783
      %v2786 = vunpack.c.l.s4 1934713408
      %v2787 = vunpack.c.0.s8 %v2786
      %v2788 = vperm.slane %v2780, %v2787
      %v2789 = vrot.slane %v2772, 4
      %v2790 = vsel %vm1228, 0.0, %v2789
      %v2791 = vrot.slane %v2776, 4
      %v2792 = vsel %vm1228, 0.0, %v2791
      %v2793 = vrot.slane %v2784, 4
      %v2794 = vsel %vm1228, 0.0, %v2793
      %v2795 = vrot.slane %v2788, 4
      %v2796 = vsel %vm1228, 0.0, %v2795
      %v2797 = vsel %vm1228, %v2791, %v2772
      %v2799 = vunpack.c.l.s4 1983009808
      %v2800 = vunpack.c.0.s8 %v2799
      %v2801 = vperm.slane %v2797, %v2800
      %v2802 = vrot.slane %v2792, 4
      %v2803 = vsel %vm1228, %v2802, %v2790
      %v2805 = vunpack.c.l.s4 1983009808
      %v2806 = vunpack.c.0.s8 %v2805
      %v2807 = vperm.slane %v2803, %v2806
      %v2808 = vsel %vm1228, %v2795, %v2784
      %v2810 = vunpack.c.l.s4 1983009808
      %v2811 = vunpack.c.0.s8 %v2810
      %v2812 = vperm.slane %v2808, %v2811
      %v2813 = vrot.slane %v2796, 4
      %v2814 = vsel %vm1228, %v2813, %v2794
      %v2816 = vunpack.c.l.s4 1983009808
      %v2817 = vunpack.c.0.s8 %v2816
      %v2818 = vperm.slane %v2814, %v2817
      %v2819 = vrot.slane %v2807, 4
      %v2820 = vsel %vm1228, %v2819, %v2801
      %v2821 = vrot.slane %v2801, 4
      %v2822 = vsel %vm1228, %v2807, %v2821
      %v2824 = vunpack.c.l.s4 1934713408
      %v2825 = vunpack.c.0.s8 %v2824
      %v2826 = vperm.slane %v2820, %v2825
      %v2828 = vunpack.c.l.s4 1934713408
      %v2829 = vunpack.c.0.s8 %v2828
      %v2830 = vperm.slane %v2822, %v2829
      %v2831 = vrot.slane %v2818, 4
      %v2832 = vsel %vm1228, %v2831, %v2812
      %v2833 = vrot.slane %v2812, 4
      %v2834 = vsel %vm1228, %v2818, %v2833
      %v2836 = vunpack.c.l.s4 1934713408
      %v2837 = vunpack.c.0.s8 %v2836
      %v2838 = vperm.slane %v2832, %v2837
      %v2840 = vunpack.c.l.s4 1934713408
      %v2841 = vunpack.c.0.s8 %v2840
      %v2842 = vperm.slane %v2834, %v2841
      %v2843 = vrot.slane %v2838, 4
      %v2844 = vsel %vm1228, %v2843, %v2826
      %v2845 = vrot.slane %v2826, 4
      %v2846 = vsel %vm1228, %v2838, %v2845
      %v2847 = vrot.slane %v2842, 4
      %v2848 = vsel %vm1228, %v2847, %v2830
      %v2849 = vrot.slane %v2830, 4
      %v2850 = vsel %vm1228, %v2842, %v2849
      %2852 = vrot.lane.b32.xlu0 %v2846, 8
      %v2853 = vpop.permute.xlu0 %2852
      %2856 = vrot.lane.b32.xlu0 %v2848, 16
      %v2857 = vpop.permute.xlu0 %2856
      %2860 = vrot.lane.b32.xlu0 %v2850, 24
      %v2861 = vpop.permute.xlu0 %2860
      %v2863 = vsel %vm1604, %v2844, %v2853
      %v2864 = vsel %vm1929, %v2863, %v2857
      %v2865 = vsel %vm1931, %v2864, %v2861
      %v2866 = vpack.c.bf16 %v2865, %v2865
      %v2867 = vld [vmem:[%s37] sm:$0xf]
      %v2868 = vld [vmem:[%s37 + $0x4] sm:$0xf]
      %v2869 = vld [vmem:[%s37 + $0x8] sm:$0xf]
      %v2870 = vld [vmem:[%s37 + $0xc] sm:$0xf]
      %v2871 = vld [vmem:[%s39] sm:$0x1]
      %v2873 = vperm.slane %v2871, 0
      %v2879 = vunpack.c.l.b16 %v2867
      %v2880 = vunpack.c.l.b16 %v2868
      %v2881 = vunpack.c.l.b16 %v2869
      %v2882 = vunpack.c.l.b16 %v2870
      %v2883 = vpack.c.b16 %v2880, %v2879
      %v2884 = vpack.c.b16 %v2882, %v2881
      %v2888 = vsel %vm1145, %v2866, 0
      %2890 = vmatpush.bf16.msra.mxu0 0
      %2891 = vmatpush.bf16.msra.mxu0 0
      %2892 = vmatpush.bf16.msra.mxu0 0
      %2893 = vmatpush.bf16.msra.mxu0 0
      %2894 = vmatpush.bf16.msra.mxu0 0
      %2895 = vmatpush.bf16.msra.mxu0 0
      %2896 = vmatpush.bf16.msra.mxu0 %v2884
      %2897 = vmatpush.bf16.msra.mxu0 %v2883
      %2898 = vmatmul.bf16.gmra.mxu0 %v2888
      %v2899 = vpop.f32.mrf.mxu0
      %v2900 = vadd.f32 %v2873, %v2899
      %v2901 = vpop.f32.mrf.mxu0
      %2902 = vdwg.mxu0
      %v2903 = vadd.f32 %v2119, %v2900
      %v2904 = vld [vmem:[%s41] sm:$0x3]
      %v2905 = vsel %vm1145, %v2903, 0.0
      %2906 = vadd.xlane.f32.xlu0 %v2905
      %v2907 = vpop.xlane.xlu0 %2906
      %v2908 = vmul.f32 %v2907, %v1155
      %v2909 = vsub.f32 %v2903, %v2908
      %v2910 = vmul.f32 %v2909, %v2909
      %v2911 = vsel %vm1145, %v2910, 0.0
      %2912 = vadd.xlane.f32.xlu0 %v2911
      %v2913 = vpop.xlane.xlu0 %2912
      %v2914 = vmul.f32 %v2913, %v1155
      %v2915 = vadd.f32 %v2914, 1e-05
      %v2916 = vrsqrt.pop %v2915
      %v2917 = vmul.f32 %v2916, %v2915
      %v2918 = vmul.f32 %v2917, %v2916
      %v2919 = vmul.f32 0.5, %v2918
      %v2920 = vsub.f32 1.5, %v2919
      %v2921 = vmul.f32 %v2916, %v2920
      %vm2922 = vweird.f32 %v2915
      %vm2923 = vweird.f32 %v2916
      %vm2924 = vmor %vm2922, %vm2923
      %v2925 = vsel %vm2924, %v2916, %v2921
      %v2926 = vmul.f32 %v2909, %v2925
      %v2927 = vperm.slane %v2904, 0
      %v2928 = vmul.f32 %v2926, %v2927
      %v2929 = vperm.slane %v2904, 1
      %v2930 = vadd.f32 %v2928, %v2929
      %v2931 = vpack.c.bf16 %v2930, %v2930
      %v2932 = vld [vmem:[%s43] sm:$0xf]
      %v2933 = vld [vmem:[%s43 + $0x4] sm:$0xf]
      %v2934 = vld [vmem:[%s43 + $0x8] sm:$0xf]
      %v2935 = vld [vmem:[%s43 + $0xc] sm:$0xf]
      %v2936 = vld [vmem:[%s45] sm:$0x1]
      %v2938 = vperm.slane %v2936, 0
      %v2944 = vunpack.c.l.b16 %v2932
      %v2945 = vunpack.c.l.b16 %v2933
      %v2946 = vunpack.c.l.b16 %v2934
      %v2947 = vunpack.c.l.b16 %v2935
      %v2948 = vpack.c.b16 %v2945, %v2944
      %v2949 = vpack.c.b16 %v2947, %v2946
      %v2953 = vsel %vm1145, %v2931, 0
      %2955 = vmatpush.bf16.msra.mxu0 0
      %2956 = vmatpush.bf16.msra.mxu0 0
      %2957 = vmatpush.bf16.msra.mxu0 0
      %2958 = vmatpush.bf16.msra.mxu0 0
      %2959 = vmatpush.bf16.msra.mxu0 0
      %2960 = vmatpush.bf16.msra.mxu0 0
      %2961 = vmatpush.bf16.msra.mxu0 %v2949
      %2962 = vmatpush.bf16.msra.mxu0 %v2948
      %2963 = vmatmul.bf16.gmra.mxu0 %v2953
      %v2964 = vpop.f32.mrf.mxu0
      %v2965 = vadd.f32 %v2938, %v2964
      %v2966 = vpop.f32.mrf.mxu0
      %2967 = vdwg.mxu0
      %v2968 = vld [vmem:[%s47] sm:$0xf]
      %v2969 = vld [vmem:[%s47 + $0x4] sm:$0xf]
      %v2970 = vld [vmem:[%s47 + $0x8] sm:$0xf]
      %v2971 = vld [vmem:[%s47 + $0xc] sm:$0xf]
      %v2972 = vld [vmem:[%s49] sm:$0x1]
      %v2974 = vperm.slane %v2972, 0
      %v2980 = vunpack.c.l.b16 %v2968
      %v2981 = vunpack.c.l.b16 %v2969
      %v2982 = vunpack.c.l.b16 %v2970
      %v2983 = vunpack.c.l.b16 %v2971
      %v2984 = vpack.c.b16 %v2981, %v2980
      %v2985 = vpack.c.b16 %v2983, %v2982
      %v2989 = vsel %vm1145, %v2118, 0
      %2991 = vmatpush.bf16.msra.mxu0 0
      %2992 = vmatpush.bf16.msra.mxu0 0
      %2993 = vmatpush.bf16.msra.mxu0 0
      %2994 = vmatpush.bf16.msra.mxu0 0
      %2995 = vmatpush.bf16.msra.mxu0 0
      %2996 = vmatpush.bf16.msra.mxu0 0
      %2997 = vmatpush.bf16.msra.mxu0 %v2985
      %2998 = vmatpush.bf16.msra.mxu0 %v2984
      %2999 = vmatmul.bf16.gmra.mxu0 %v2989
      %v3000 = vpop.f32.mrf.mxu0
      %v3001 = vadd.f32 %v2974, %v3000
      %v3002 = vpop.f32.mrf.mxu0
      %3003 = vdwg.mxu0
      %v3004 = vmul.f32 %v2965, 0.35355338
      %3006 = vrot.lane.b32.xlu0 %v3004, 120
      %v3007 = vpop.permute.xlu0 %3006
      %3009 = vrot.lane.b32.xlu0 %v3004, 112
      %v3010 = vpop.permute.xlu0 %3009
      %3012 = vrot.lane.b32.xlu0 %v3004, 104
      %v3013 = vpop.permute.xlu0 %3012
      %v3015 = vrot.slane %v3010, 4
      %v3016 = vsel %vm1228, %v3015, %v3004
      %v3017 = vrot.slane %v3004, 4
      %v3018 = vsel %vm1228, %v3010, %v3017
      %v3020 = vunpack.c.l.s4 1983009808
      %v3021 = vunpack.c.0.s8 %v3020
      %v3022 = vperm.slane %v3016, %v3021
      %v3024 = vunpack.c.l.s4 1983009808
      %v3025 = vunpack.c.0.s8 %v3024
      %v3026 = vperm.slane %v3018, %v3025
      %v3027 = vrot.slane %v3013, 4
      %v3028 = vsel %vm1228, %v3027, %v3007
      %v3029 = vrot.slane %v3007, 4
      %v3030 = vsel %vm1228, %v3013, %v3029
      %v3032 = vunpack.c.l.s4 1983009808
      %v3033 = vunpack.c.0.s8 %v3032
      %v3034 = vperm.slane %v3028, %v3033
      %v3036 = vunpack.c.l.s4 1983009808
      %v3037 = vunpack.c.0.s8 %v3036
      %v3038 = vperm.slane %v3030, %v3037
      %v3039 = vrot.slane %v3034, 4
      %v3040 = vsel %vm1228, %v3039, %v3022
      %v3041 = vrot.slane %v3022, 4
      %v3042 = vsel %vm1228, %v3034, %v3041
      %v3044 = vunpack.c.l.s4 1934713408
      %v3045 = vunpack.c.0.s8 %v3044
      %v3046 = vperm.slane %v3040, %v3045
      %v3048 = vunpack.c.l.s4 1934713408
      %v3049 = vunpack.c.0.s8 %v3048
      %v3050 = vperm.slane %v3042, %v3049
      %v3051 = vrot.slane %v3038, 4
      %v3052 = vsel %vm1228, %v3051, %v3026
      %v3053 = vrot.slane %v3026, 4
      %v3054 = vsel %vm1228, %v3038, %v3053
      %v3056 = vunpack.c.l.s4 1934713408
      %v3057 = vunpack.c.0.s8 %v3056
      %v3058 = vperm.slane %v3052, %v3057
      %v3060 = vunpack.c.l.s4 1934713408
      %v3061 = vunpack.c.0.s8 %v3060
      %v3062 = vperm.slane %v3054, %v3061
      %v3063 = vrot.slane %v3046, 4
      %v3064 = vsel %vm1228, 0.0, %v3063
      %v3065 = vrot.slane %v3050, 4
      %v3066 = vsel %vm1228, 0.0, %v3065
      %v3067 = vrot.slane %v3058, 4
      %v3068 = vsel %vm1228, 0.0, %v3067
      %v3069 = vrot.slane %v3062, 4
      %v3070 = vsel %vm1228, 0.0, %v3069
      %v3071 = vsel %vm1228, %v3065, %v3046
      %v3073 = vunpack.c.l.s4 1983009808
      %v3074 = vunpack.c.0.s8 %v3073
      %v3075 = vperm.slane %v3071, %v3074
      %v3076 = vrot.slane %v3066, 4
      %v3077 = vsel %vm1228, %v3076, %v3064
      %v3079 = vunpack.c.l.s4 1983009808
      %v3080 = vunpack.c.0.s8 %v3079
      %v3081 = vperm.slane %v3077, %v3080
      %v3082 = vsel %vm1228, %v3069, %v3058
      %v3084 = vunpack.c.l.s4 1983009808
      %v3085 = vunpack.c.0.s8 %v3084
      %v3086 = vperm.slane %v3082, %v3085
      %v3087 = vrot.slane %v3070, 4
      %v3088 = vsel %vm1228, %v3087, %v3068
      %v3090 = vunpack.c.l.s4 1983009808
      %v3091 = vunpack.c.0.s8 %v3090
      %v3092 = vperm.slane %v3088, %v3091
      %v3093 = vrot.slane %v3081, 4
      %v3094 = vsel %vm1228, %v3093, %v3075
      %v3095 = vrot.slane %v3075, 4
      %v3096 = vsel %vm1228, %v3081, %v3095
      %v3098 = vunpack.c.l.s4 1934713408
      %v3099 = vunpack.c.0.s8 %v3098
      %v3100 = vperm.slane %v3094, %v3099
      %v3102 = vunpack.c.l.s4 1934713408
      %v3103 = vunpack.c.0.s8 %v3102
      %v3104 = vperm.slane %v3096, %v3103
      %v3105 = vrot.slane %v3092, 4
      %v3106 = vsel %vm1228, %v3105, %v3086
      %v3107 = vrot.slane %v3086, 4
      %v3108 = vsel %vm1228, %v3092, %v3107
      %v3110 = vunpack.c.l.s4 1934713408
      %v3111 = vunpack.c.0.s8 %v3110
      %v3112 = vperm.slane %v3106, %v3111
      %v3114 = vunpack.c.l.s4 1934713408
      %v3115 = vunpack.c.0.s8 %v3114
      %v3116 = vperm.slane %v3108, %v3115
      %v3117 = vrot.slane %v3112, 4
      %v3118 = vsel %vm1228, %v3117, %v3100
      %v3119 = vrot.slane %v3100, 4
      %v3120 = vsel %vm1228, %v3112, %v3119
      %v3121 = vrot.slane %v3116, 4
      %v3122 = vsel %vm1228, %v3121, %v3104
      %v3123 = vrot.slane %v3104, 4
      %v3124 = vsel %vm1228, %v3116, %v3123
      %v3125 = vpack.c.bf16 %v3118, %v3118
      %v3126 = vpack.c.bf16 %v3120, %v3120
      %v3127 = vpack.c.bf16 %v3122, %v3122
      %v3128 = vpack.c.bf16 %v3124, %v3124
      %3130 = vrot.lane.b32.xlu0 %v3001, 120
      %v3131 = vpop.permute.xlu0 %3130
      %3133 = vrot.lane.b32.xlu0 %v3001, 112
      %v3134 = vpop.permute.xlu0 %3133
      %3136 = vrot.lane.b32.xlu0 %v3001, 104
      %v3137 = vpop.permute.xlu0 %3136
      %v3139 = vrot.slane %v3134, 4
      %v3140 = vsel %vm1228, %v3139, %v3001
      %v3141 = vrot.slane %v3001, 4
      %v3142 = vsel %vm1228, %v3134, %v3141
      %v3144 = vunpack.c.l.s4 1983009808
      %v3145 = vunpack.c.0.s8 %v3144
      %v3146 = vperm.slane %v3140, %v3145
      %v3148 = vunpack.c.l.s4 1983009808
      %v3149 = vunpack.c.0.s8 %v3148
      %v3150 = vperm.slane %v3142, %v3149
      %v3151 = vrot.slane %v3137, 4
      %v3152 = vsel %vm1228, %v3151, %v3131
      %v3153 = vrot.slane %v3131, 4
      %v3154 = vsel %vm1228, %v3137, %v3153
      %v3156 = vunpack.c.l.s4 1983009808
      %v3157 = vunpack.c.0.s8 %v3156
      %v3158 = vperm.slane %v3152, %v3157
      %v3160 = vunpack.c.l.s4 1983009808
      %v3161 = vunpack.c.0.s8 %v3160
      %v3162 = vperm.slane %v3154, %v3161
      %v3163 = vrot.slane %v3158, 4
      %v3164 = vsel %vm1228, %v3163, %v3146
      %v3165 = vrot.slane %v3146, 4
      %v3166 = vsel %vm1228, %v3158, %v3165
      %v3168 = vunpack.c.l.s4 1934713408
      %v3169 = vunpack.c.0.s8 %v3168
      %v3170 = vperm.slane %v3164, %v3169
      %v3172 = vunpack.c.l.s4 1934713408
      %v3173 = vunpack.c.0.s8 %v3172
      %v3174 = vperm.slane %v3166, %v3173
      %v3175 = vrot.slane %v3162, 4
      %v3176 = vsel %vm1228, %v3175, %v3150
      %v3177 = vrot.slane %v3150, 4
      %v3178 = vsel %vm1228, %v3162, %v3177
      %v3180 = vunpack.c.l.s4 1934713408
      %v3181 = vunpack.c.0.s8 %v3180
      %v3182 = vperm.slane %v3176, %v3181
      %v3184 = vunpack.c.l.s4 1934713408
      %v3185 = vunpack.c.0.s8 %v3184
      %v3186 = vperm.slane %v3178, %v3185
      %v3187 = vrot.slane %v3170, 4
      %v3188 = vsel %vm1228, 0.0, %v3187
      %v3189 = vrot.slane %v3174, 4
      %v3190 = vsel %vm1228, 0.0, %v3189
      %v3191 = vrot.slane %v3182, 4
      %v3192 = vsel %vm1228, 0.0, %v3191
      %v3193 = vrot.slane %v3186, 4
      %v3194 = vsel %vm1228, 0.0, %v3193
      %v3195 = vsel %vm1228, %v3189, %v3170
      %v3197 = vunpack.c.l.s4 1983009808
      %v3198 = vunpack.c.0.s8 %v3197
      %v3199 = vperm.slane %v3195, %v3198
      %v3200 = vrot.slane %v3190, 4
      %v3201 = vsel %vm1228, %v3200, %v3188
      %v3203 = vunpack.c.l.s4 1983009808
      %v3204 = vunpack.c.0.s8 %v3203
      %v3205 = vperm.slane %v3201, %v3204
      %v3206 = vsel %vm1228, %v3193, %v3182
      %v3208 = vunpack.c.l.s4 1983009808
      %v3209 = vunpack.c.0.s8 %v3208
      %v3210 = vperm.slane %v3206, %v3209
      %v3211 = vrot.slane %v3194, 4
      %v3212 = vsel %vm1228, %v3211, %v3192
      %v3214 = vunpack.c.l.s4 1983009808
      %v3215 = vunpack.c.0.s8 %v3214
      %v3216 = vperm.slane %v3212, %v3215
      %v3217 = vrot.slane %v3205, 4
      %v3218 = vsel %vm1228, %v3217, %v3199
      %v3219 = vrot.slane %v3199, 4
      %v3220 = vsel %vm1228, %v3205, %v3219
      %v3222 = vunpack.c.l.s4 1934713408
      %v3223 = vunpack.c.0.s8 %v3222
      %v3224 = vperm.slane %v3218, %v3223
      %v3226 = vunpack.c.l.s4 1934713408
      %v3227 = vunpack.c.0.s8 %v3226
      %v3228 = vperm.slane %v3220, %v3227
      %v3229 = vrot.slane %v3216, 4
      %v3230 = vsel %vm1228, %v3229, %v3210
      %v3231 = vrot.slane %v3210, 4
      %v3232 = vsel %vm1228, %v3216, %v3231
      %v3234 = vunpack.c.l.s4 1934713408
      %v3235 = vunpack.c.0.s8 %v3234
      %v3236 = vperm.slane %v3230, %v3235
      %v3238 = vunpack.c.l.s4 1934713408
      %v3239 = vunpack.c.0.s8 %v3238
      %v3240 = vperm.slane %v3232, %v3239
      %v3241 = vrot.slane %v3236, 4
      %v3242 = vsel %vm1228, %v3241, %v3224
      %v3243 = vrot.slane %v3224, 4
      %v3244 = vsel %vm1228, %v3236, %v3243
      %v3245 = vrot.slane %v3240, 4
      %v3246 = vsel %vm1228, %v3245, %v3228
      %v3247 = vrot.slane %v3228, 4
      %v3248 = vsel %vm1228, %v3240, %v3247
      %v3249 = vpack.c.bf16 %v3242, %v3242
      %v3250 = vpack.c.bf16 %v3244, %v3244
      %v3251 = vpack.c.bf16 %v3246, %v3246
      %v3252 = vpack.c.bf16 %v3248, %v3248
      %3253 = vrot.lane.b32.xlu0 %v3001, 96
      %v3254 = vpop.permute.xlu0 %3253
      %3255 = vrot.lane.b32.xlu0 %v3131, 96
      %v3256 = vpop.permute.xlu0 %3255
      %3257 = vrot.lane.b32.xlu0 %v3134, 96
      %v3258 = vpop.permute.xlu0 %3257
      %3259 = vrot.lane.b32.xlu0 %v3137, 96
      %v3260 = vpop.permute.xlu0 %3259
      %v3265 = vrot.slane %v3258, 4
      %v3266 = vsel %vm1228, %v3265, %v3254
      %v3267 = vrot.slane %v3254, 4
      %v3268 = vsel %vm1228, %v3258, %v3267
      %v3270 = vunpack.c.l.s4 1983009808
      %v3271 = vunpack.c.0.s8 %v3270
      %v3272 = vperm.slane %v3266, %v3271
      %v3274 = vunpack.c.l.s4 1983009808
      %v3275 = vunpack.c.0.s8 %v3274
      %v3276 = vperm.slane %v3268, %v3275
      %v3277 = vrot.slane %v3260, 4
      %v3278 = vsel %vm1228, %v3277, %v3256
      %v3279 = vrot.slane %v3256, 4
      %v3280 = vsel %vm1228, %v3260, %v3279
      %v3282 = vunpack.c.l.s4 1983009808
      %v3283 = vunpack.c.0.s8 %v3282
      %v3284 = vperm.slane %v3278, %v3283
      %v3286 = vunpack.c.l.s4 1983009808
      %v3287 = vunpack.c.0.s8 %v3286
      %v3288 = vperm.slane %v3280, %v3287
      %v3289 = vrot.slane %v3284, 4
      %v3290 = vsel %vm1228, %v3289, %v3272
      %v3291 = vrot.slane %v3272, 4
      %v3292 = vsel %vm1228, %v3284, %v3291
      %v3294 = vunpack.c.l.s4 1934713408
      %v3295 = vunpack.c.0.s8 %v3294
      %v3296 = vperm.slane %v3290, %v3295
      %v3298 = vunpack.c.l.s4 1934713408
      %v3299 = vunpack.c.0.s8 %v3298
      %v3300 = vperm.slane %v3292, %v3299
      %v3301 = vrot.slane %v3288, 4
      %v3302 = vsel %vm1228, %v3301, %v3276
      %v3303 = vrot.slane %v3276, 4
      %v3304 = vsel %vm1228, %v3288, %v3303
      %v3306 = vunpack.c.l.s4 1934713408
      %v3307 = vunpack.c.0.s8 %v3306
      %v3308 = vperm.slane %v3302, %v3307
      %v3310 = vunpack.c.l.s4 1934713408
      %v3311 = vunpack.c.0.s8 %v3310
      %v3312 = vperm.slane %v3304, %v3311
      %v3313 = vrot.slane %v3296, 4
      %v3314 = vsel %vm1228, 0.0, %v3313
      %v3315 = vrot.slane %v3300, 4
      %v3316 = vsel %vm1228, 0.0, %v3315
      %v3317 = vrot.slane %v3308, 4
      %v3318 = vsel %vm1228, 0.0, %v3317
      %v3319 = vrot.slane %v3312, 4
      %v3320 = vsel %vm1228, 0.0, %v3319
      %v3321 = vsel %vm1228, %v3315, %v3296
      %v3323 = vunpack.c.l.s4 1983009808
      %v3324 = vunpack.c.0.s8 %v3323
      %v3325 = vperm.slane %v3321, %v3324
      %v3326 = vrot.slane %v3316, 4
      %v3327 = vsel %vm1228, %v3326, %v3314
      %v3329 = vunpack.c.l.s4 1983009808
      %v3330 = vunpack.c.0.s8 %v3329
      %v3331 = vperm.slane %v3327, %v3330
      %v3332 = vsel %vm1228, %v3319, %v3308
      %v3334 = vunpack.c.l.s4 1983009808
      %v3335 = vunpack.c.0.s8 %v3334
      %v3336 = vperm.slane %v3332, %v3335
      %v3337 = vrot.slane %v3320, 4
      %v3338 = vsel %vm1228, %v3337, %v3318
      %v3340 = vunpack.c.l.s4 1983009808
      %v3341 = vunpack.c.0.s8 %v3340
      %v3342 = vperm.slane %v3338, %v3341
      %v3343 = vrot.slane %v3331, 4
      %v3344 = vsel %vm1228, %v3343, %v3325
      %v3345 = vrot.slane %v3325, 4
      %v3346 = vsel %vm1228, %v3331, %v3345
      %v3348 = vunpack.c.l.s4 1934713408
      %v3349 = vunpack.c.0.s8 %v3348
      %v3350 = vperm.slane %v3344, %v3349
      %v3352 = vunpack.c.l.s4 1934713408
      %v3353 = vunpack.c.0.s8 %v3352
      %v3354 = vperm.slane %v3346, %v3353
      %v3355 = vrot.slane %v3342, 4
      %v3356 = vsel %vm1228, %v3355, %v3336
      %v3357 = vrot.slane %v3336, 4
      %v3358 = vsel %vm1228, %v3342, %v3357
      %v3360 = vunpack.c.l.s4 1934713408
      %v3361 = vunpack.c.0.s8 %v3360
      %v3362 = vperm.slane %v3356, %v3361
      %v3364 = vunpack.c.l.s4 1934713408
      %v3365 = vunpack.c.0.s8 %v3364
      %v3366 = vperm.slane %v3358, %v3365
      %v3367 = vrot.slane %v3362, 4
      %v3368 = vsel %vm1228, %v3367, %v3350
      %v3369 = vrot.slane %v3350, 4
      %v3370 = vsel %vm1228, %v3362, %v3369
      %v3371 = vrot.slane %v3366, 4
      %v3372 = vsel %vm1228, %v3371, %v3354
      %v3373 = vrot.slane %v3354, 4
      %v3374 = vsel %vm1228, %v3366, %v3373
      %v3375 = vpack.c.bf16 %v3368, %v3368
      %v3376 = vpack.c.bf16 %v3370, %v3370
      %v3377 = vpack.c.bf16 %v3372, %v3372
      %v3378 = vpack.c.bf16 %v3374, %v3374
      %v3380 = vsel %vm1604, %v3125, 0
      %v3383 = vsel %vm1604, %v3249, 0
      %3385 = vmatpush.bf16.xpose.msra.mxu0 0
      %3386 = vmatpush.bf16.xpose.msra.mxu0 0
      %3387 = vmatpush.bf16.xpose.msra.mxu0 0
      %3388 = vmatpush.bf16.xpose.msra.mxu0 0
      %3389 = vmatpush.bf16.xpose.msra.mxu0 0
      %3390 = vmatpush.bf16.xpose.msra.mxu0 0
      %3391 = vmatpush.bf16.xpose.msra.mxu0 0
      %3392 = vmatpush.bf16.xpose.msra.mxu0 %v3383
      %3393 = vmatmul.bf16.gmra.mxu0 %v3380
      %v3394 = vpop.f32.mrf.mxu0
      %v3395 = vadd.f32 %v1602, %v3394
      %v3396 = vpop.f32.mrf.mxu0
      %3397 = vdwg.mxu0
      %v3399 = vsel %vm1604, %v3126, 0
      %v3402 = vsel %vm1604, %v3250, 0
      %3404 = vmatpush.bf16.xpose.msra.mxu0 0
      %3405 = vmatpush.bf16.xpose.msra.mxu0 0
      %3406 = vmatpush.bf16.xpose.msra.mxu0 0
      %3407 = vmatpush.bf16.xpose.msra.mxu0 0
      %3408 = vmatpush.bf16.xpose.msra.mxu0 0
      %3409 = vmatpush.bf16.xpose.msra.mxu0 0
      %3410 = vmatpush.bf16.xpose.msra.mxu0 0
      %3411 = vmatpush.bf16.xpose.msra.mxu0 %v3402
      %3412 = vmatmul.bf16.gmra.mxu0 %v3399
      %v3413 = vpop.f32.mrf.mxu0
      %v3414 = vadd.f32 %v1602, %v3413
      %v3415 = vpop.f32.mrf.mxu0
      %3416 = vdwg.mxu0
      %v3418 = vsel %vm1604, %v3127, 0
      %v3421 = vsel %vm1604, %v3251, 0
      %3423 = vmatpush.bf16.xpose.msra.mxu0 0
      %3424 = vmatpush.bf16.xpose.msra.mxu0 0
      %3425 = vmatpush.bf16.xpose.msra.mxu0 0
      %3426 = vmatpush.bf16.xpose.msra.mxu0 0
      %3427 = vmatpush.bf16.xpose.msra.mxu0 0
      %3428 = vmatpush.bf16.xpose.msra.mxu0 0
      %3429 = vmatpush.bf16.xpose.msra.mxu0 0
      %3430 = vmatpush.bf16.xpose.msra.mxu0 %v3421
      %3431 = vmatmul.bf16.gmra.mxu0 %v3418
      %v3432 = vpop.f32.mrf.mxu0
      %v3433 = vadd.f32 %v1602, %v3432
      %v3434 = vpop.f32.mrf.mxu0
      %3435 = vdwg.mxu0
      %v3437 = vsel %vm1604, %v3128, 0
      %v3440 = vsel %vm1604, %v3252, 0
      %3442 = vmatpush.bf16.xpose.msra.mxu0 0
      %3443 = vmatpush.bf16.xpose.msra.mxu0 0
      %3444 = vmatpush.bf16.xpose.msra.mxu0 0
      %3445 = vmatpush.bf16.xpose.msra.mxu0 0
      %3446 = vmatpush.bf16.xpose.msra.mxu0 0
      %3447 = vmatpush.bf16.xpose.msra.mxu0 0
      %3448 = vmatpush.bf16.xpose.msra.mxu0 0
      %3449 = vmatpush.bf16.xpose.msra.mxu0 %v3440
      %3450 = vmatmul.bf16.gmra.mxu0 %v3437
      %v3451 = vpop.f32.mrf.mxu0
      %v3452 = vadd.f32 %v1602, %v3451
      %v3453 = vpop.f32.mrf.mxu0
      %3454 = vdwg.mxu0
      %v3455 = vsel %vm1604, %v3395, -inf
      %3456 = vmax.xlane.f32.xlu0 %v3455
      %v3457 = vpop.xlane.xlu0 %3456
      %v3458 = vsel %vm1604, %v3414, -inf
      %3459 = vmax.xlane.f32.xlu0 %v3458
      %v3460 = vpop.xlane.xlu0 %3459
      %v3461 = vsel %vm1604, %v3433, -inf
      %3462 = vmax.xlane.f32.xlu0 %v3461
      %v3463 = vpop.xlane.xlu0 %3462
      %v3464 = vsel %vm1604, %v3452, -inf
      %3465 = vmax.xlane.f32.xlu0 %v3464
      %v3466 = vpop.xlane.xlu0 %3465
      %v3467 = vsub.f32 %v3395, %v3457
      %v3468 = vsub.f32 %v3414, %v3460
      %v3469 = vsub.f32 %v3433, %v3463
      %v3470 = vsub.f32 %v3452, %v3466
      %v3471 = vmul.f32 %v3467, 1.442695
      %v3472 = vpow.pop %v3471
      %v3473 = vmul.f32 %v3468, 1.442695
      %v3474 = vpow.pop %v3473
      %v3475 = vmul.f32 %v3469, 1.442695
      %v3476 = vpow.pop %v3475
      %v3477 = vmul.f32 %v3470, 1.442695
      %v3478 = vpow.pop %v3477
      %v3479 = vsel %vm1604, %v3472, 0.0
      %3480 = vadd.xlane.f32.xlu0 %v3479
      %v3481 = vpop.xlane.xlu0 %3480
      %v3482 = vsel %vm1604, %v3474, 0.0
      %3483 = vadd.xlane.f32.xlu0 %v3482
      %v3484 = vpop.xlane.xlu0 %3483
      %v3485 = vsel %vm1604, %v3476, 0.0
      %3486 = vadd.xlane.f32.xlu0 %v3485
      %v3487 = vpop.xlane.xlu0 %3486
      %v3488 = vsel %vm1604, %v3478, 0.0
      %3489 = vadd.xlane.f32.xlu0 %v3488
      %v3490 = vpop.xlane.xlu0 %3489
      %v3491 = vrcp.pop %v3481
      %v3492 = vrcp.pop %v3484
      %v3493 = vrcp.pop %v3487
      %v3494 = vrcp.pop %v3490
      %v3495 = vmul.f32 %v3472, %v3491
      %v3496 = vmul.f32 %v3474, %v3492
      %v3497 = vmul.f32 %v3476, %v3493
      %v3498 = vmul.f32 %v3478, %v3494
      %v3499 = vpack.c.bf16 %v3495, %v3495
      %v3500 = vpack.c.bf16 %v3496, %v3496
      %v3501 = vpack.c.bf16 %v3497, %v3497
      %v3502 = vpack.c.bf16 %v3498, %v3498
      %v3504 = vsel %vm1604, %v3499, 0
      %v3507 = vsel %vm1732, %v3375, 0
      %3509 = vmatpush.bf16.msra.mxu0 0
      %3510 = vmatpush.bf16.msra.mxu0 0
      %3511 = vmatpush.bf16.msra.mxu0 0
      %3512 = vmatpush.bf16.msra.mxu0 0
      %3513 = vmatpush.bf16.msra.mxu0 0
      %3514 = vmatpush.bf16.msra.mxu0 0
      %3515 = vmatpush.bf16.msra.mxu0 0
      %3516 = vmatpush.bf16.msra.mxu0 %v3507
      %3517 = vmatmul.bf16.gmra.mxu0 %v3504
      %v3518 = vpop.f32.mrf.mxu0
      %v3519 = vadd.f32 0.0, %v3518
      %v3520 = vpop.f32.mrf.mxu0
      %3521 = vdwg.mxu0
      %v3523 = vsel %vm1604, %v3500, 0
      %v3526 = vsel %vm1732, %v3376, 0
      %3528 = vmatpush.bf16.msra.mxu0 0
      %3529 = vmatpush.bf16.msra.mxu0 0
      %3530 = vmatpush.bf16.msra.mxu0 0
      %3531 = vmatpush.bf16.msra.mxu0 0
      %3532 = vmatpush.bf16.msra.mxu0 0
      %3533 = vmatpush.bf16.msra.mxu0 0
      %3534 = vmatpush.bf16.msra.mxu0 0
      %3535 = vmatpush.bf16.msra.mxu0 %v3526
      %3536 = vmatmul.bf16.gmra.mxu0 %v3523
      %v3537 = vpop.f32.mrf.mxu0
      %v3538 = vadd.f32 0.0, %v3537
      %v3539 = vpop.f32.mrf.mxu0
      %3540 = vdwg.mxu0
      %v3542 = vsel %vm1604, %v3501, 0
      %v3545 = vsel %vm1732, %v3377, 0
      %3547 = vmatpush.bf16.msra.mxu0 0
      %3548 = vmatpush.bf16.msra.mxu0 0
      %3549 = vmatpush.bf16.msra.mxu0 0
      %3550 = vmatpush.bf16.msra.mxu0 0
      %3551 = vmatpush.bf16.msra.mxu0 0
      %3552 = vmatpush.bf16.msra.mxu0 0
      %3553 = vmatpush.bf16.msra.mxu0 0
      %3554 = vmatpush.bf16.msra.mxu0 %v3545
      %3555 = vmatmul.bf16.gmra.mxu0 %v3542
      %v3556 = vpop.f32.mrf.mxu0
      %v3557 = vadd.f32 0.0, %v3556
      %v3558 = vpop.f32.mrf.mxu0
      %3559 = vdwg.mxu0
      %v3561 = vsel %vm1604, %v3502, 0
      %v3564 = vsel %vm1732, %v3378, 0
      %3566 = vmatpush.bf16.msra.mxu0 0
      %3567 = vmatpush.bf16.msra.mxu0 0
      %3568 = vmatpush.bf16.msra.mxu0 0
      %3569 = vmatpush.bf16.msra.mxu0 0
      %3570 = vmatpush.bf16.msra.mxu0 0
      %3571 = vmatpush.bf16.msra.mxu0 0
      %3572 = vmatpush.bf16.msra.mxu0 0
      %3573 = vmatpush.bf16.msra.mxu0 %v3564
      %3574 = vmatmul.bf16.gmra.mxu0 %v3561
      %v3575 = vpop.f32.mrf.mxu0
      %v3576 = vadd.f32 0.0, %v3575
      %v3577 = vpop.f32.mrf.mxu0
      %3578 = vdwg.mxu0
      %v3579 = vrot.slane %v3557, 4
      %v3580 = vsel %vm1228, %v3579, %v3519
      %v3581 = vrot.slane %v3519, 4
      %v3582 = vsel %vm1228, %v3557, %v3581
      %v3584 = vunpack.c.l.s4 1983009808
      %v3585 = vunpack.c.0.s8 %v3584
      %v3586 = vperm.slane %v3580, %v3585
      %v3588 = vunpack.c.l.s4 1983009808
      %v3589 = vunpack.c.0.s8 %v3588
      %v3590 = vperm.slane %v3582, %v3589
      %v3591 = vrot.slane %v3576, 4
      %v3592 = vsel %vm1228, %v3591, %v3538
      %v3593 = vrot.slane %v3538, 4
      %v3594 = vsel %vm1228, %v3576, %v3593
      %v3596 = vunpack.c.l.s4 1983009808
      %v3597 = vunpack.c.0.s8 %v3596
      %v3598 = vperm.slane %v3592, %v3597
      %v3600 = vunpack.c.l.s4 1983009808
      %v3601 = vunpack.c.0.s8 %v3600
      %v3602 = vperm.slane %v3594, %v3601
      %v3603 = vrot.slane %v3598, 4
      %v3604 = vsel %vm1228, %v3603, %v3586
      %v3605 = vrot.slane %v3586, 4
      %v3606 = vsel %vm1228, %v3598, %v3605
      %v3608 = vunpack.c.l.s4 1934713408
      %v3609 = vunpack.c.0.s8 %v3608
      %v3610 = vperm.slane %v3604, %v3609
      %v3612 = vunpack.c.l.s4 1934713408
      %v3613 = vunpack.c.0.s8 %v3612
      %v3614 = vperm.slane %v3606, %v3613
      %v3615 = vrot.slane %v3602, 4
      %v3616 = vsel %vm1228, %v3615, %v3590
      %v3617 = vrot.slane %v3590, 4
      %v3618 = vsel %vm1228, %v3602, %v3617
      %v3620 = vunpack.c.l.s4 1934713408
      %v3621 = vunpack.c.0.s8 %v3620
      %v3622 = vperm.slane %v3616, %v3621
      %v3624 = vunpack.c.l.s4 1934713408
      %v3625 = vunpack.c.0.s8 %v3624
      %v3626 = vperm.slane %v3618, %v3625
      %v3627 = vrot.slane %v3610, 4
      %v3628 = vsel %vm1228, 0.0, %v3627
      %v3629 = vrot.slane %v3614, 4
      %v3630 = vsel %vm1228, 0.0, %v3629
      %v3631 = vrot.slane %v3622, 4
      %v3632 = vsel %vm1228, 0.0, %v3631
      %v3633 = vrot.slane %v3626, 4
      %v3634 = vsel %vm1228, 0.0, %v3633
      %v3635 = vsel %vm1228, %v3629, %v3610
      %v3637 = vunpack.c.l.s4 1983009808
      %v3638 = vunpack.c.0.s8 %v3637
      %v3639 = vperm.slane %v3635, %v3638
      %v3640 = vrot.slane %v3630, 4
      %v3641 = vsel %vm1228, %v3640, %v3628
      %v3643 = vunpack.c.l.s4 1983009808
      %v3644 = vunpack.c.0.s8 %v3643
      %v3645 = vperm.slane %v3641, %v3644
      %v3646 = vsel %vm1228, %v3633, %v3622
      %v3648 = vunpack.c.l.s4 1983009808
      %v3649 = vunpack.c.0.s8 %v3648
      %v3650 = vperm.slane %v3646, %v3649
      %v3651 = vrot.slane %v3634, 4
      %v3652 = vsel %vm1228, %v3651, %v3632
      %v3654 = vunpack.c.l.s4 1983009808
      %v3655 = vunpack.c.0.s8 %v3654
      %v3656 = vperm.slane %v3652, %v3655
      %v3657 = vrot.slane %v3645, 4
      %v3658 = vsel %vm1228, %v3657, %v3639
      %v3659 = vrot.slane %v3639, 4
      %v3660 = vsel %vm1228, %v3645, %v3659
      %v3662 = vunpack.c.l.s4 1934713408
      %v3663 = vunpack.c.0.s8 %v3662
      %v3664 = vperm.slane %v3658, %v3663
      %v3666 = vunpack.c.l.s4 1934713408
      %v3667 = vunpack.c.0.s8 %v3666
      %v3668 = vperm.slane %v3660, %v3667
      %v3669 = vrot.slane %v3656, 4
      %v3670 = vsel %vm1228, %v3669, %v3650
      %v3671 = vrot.slane %v3650, 4
      %v3672 = vsel %vm1228, %v3656, %v3671
      %v3674 = vunpack.c.l.s4 1934713408
      %v3675 = vunpack.c.0.s8 %v3674
      %v3676 = vperm.slane %v3670, %v3675
      %v3678 = vunpack.c.l.s4 1934713408
      %v3679 = vunpack.c.0.s8 %v3678
      %v3680 = vperm.slane %v3672, %v3679
      %v3681 = vrot.slane %v3676, 4
      %v3682 = vsel %vm1228, %v3681, %v3664
      %v3683 = vrot.slane %v3664, 4
      %v3684 = vsel %vm1228, %v3676, %v3683
      %v3685 = vrot.slane %v3680, 4
      %v3686 = vsel %vm1228, %v3685, %v3668
      %v3687 = vrot.slane %v3668, 4
      %v3688 = vsel %vm1228, %v3680, %v3687
      %3690 = vrot.lane.b32.xlu0 %v3684, 8
      %v3691 = vpop.permute.xlu0 %3690
      %3694 = vrot.lane.b32.xlu0 %v3686, 16
      %v3695 = vpop.permute.xlu0 %3694
      %3698 = vrot.lane.b32.xlu0 %v3688, 24
      %v3699 = vpop.permute.xlu0 %3698
      %v3701 = vsel %vm1604, %v3682, %v3691
      %v3702 = vsel %vm1929, %v3701, %v3695
      %v3703 = vsel %vm1931, %v3702, %v3699
      %v3704 = vpack.c.bf16 %v3703, %v3703
      %v3705 = vld [vmem:[%s51] sm:$0xf]
      %v3706 = vld [vmem:[%s51 + $0x4] sm:$0xf]
      %v3707 = vld [vmem:[%s51 + $0x8] sm:$0xf]
      %v3708 = vld [vmem:[%s51 + $0xc] sm:$0xf]
      %v3709 = vld [vmem:[%s53] sm:$0x1]
      %v3711 = vperm.slane %v3709, 0
      %v3717 = vunpack.c.l.b16 %v3705
      %v3718 = vunpack.c.l.b16 %v3706
      %v3719 = vunpack.c.l.b16 %v3707
      %v3720 = vunpack.c.l.b16 %v3708
      %v3721 = vpack.c.b16 %v3718, %v3717
      %v3722 = vpack.c.b16 %v3720, %v3719
      %v3726 = vsel %vm1145, %v3704, 0
      %3728 = vmatpush.bf16.msra.mxu0 0
      %3729 = vmatpush.bf16.msra.mxu0 0
      %3730 = vmatpush.bf16.msra.mxu0 0
      %3731 = vmatpush.bf16.msra.mxu0 0
      %3732 = vmatpush.bf16.msra.mxu0 0
      %3733 = vmatpush.bf16.msra.mxu0 0
      %3734 = vmatpush.bf16.msra.mxu0 %v3722
      %3735 = vmatpush.bf16.msra.mxu0 %v3721
      %3736 = vmatmul.bf16.gmra.mxu0 %v3726
      %v3737 = vpop.f32.mrf.mxu0
      %v3738 = vadd.f32 %v3711, %v3737
      %v3739 = vpop.f32.mrf.mxu0
      %3740 = vdwg.mxu0
      %v3741 = vadd.f32 %v2930, %v3738
      %v3742 = vld [vmem:[%s55] sm:$0x3]
      %v3743 = vsel %vm1145, %v3741, 0.0
      %3744 = vadd.xlane.f32.xlu0 %v3743
      %v3745 = vpop.xlane.xlu0 %3744
      %v3746 = vmul.f32 %v3745, %v1155
      %v3747 = vsub.f32 %v3741, %v3746
      %v3748 = vmul.f32 %v3747, %v3747
      %v3749 = vsel %vm1145, %v3748, 0.0
      %3750 = vadd.xlane.f32.xlu0 %v3749
      %v3751 = vpop.xlane.xlu0 %3750
      %v3752 = vmul.f32 %v3751, %v1155
      %v3753 = vadd.f32 %v3752, 1e-05
      %v3754 = vrsqrt.pop %v3753
      %v3755 = vmul.f32 %v3754, %v3753
      %v3756 = vmul.f32 %v3755, %v3754
      %v3757 = vmul.f32 0.5, %v3756
      %v3758 = vsub.f32 1.5, %v3757
      %v3759 = vmul.f32 %v3754, %v3758
      %vm3760 = vweird.f32 %v3753
      %vm3761 = vweird.f32 %v3754
      %vm3762 = vmor %vm3760, %vm3761
      %v3763 = vsel %vm3762, %v3754, %v3759
      %v3764 = vmul.f32 %v3747, %v3763
      %v3765 = vperm.slane %v3742, 0
      %v3766 = vmul.f32 %v3764, %v3765
      %v3767 = vperm.slane %v3742, 1
      %v3768 = vadd.f32 %v3766, %v3767
      %v3769 = vpack.c.bf16 %v3768, %v3768
      %v3770 = vld [vmem:[%s57] sm:$0xf]
      %v3771 = vld [vmem:[%s57 + $0x4] sm:$0xf]
      %v3772 = vld [vmem:[%s57 + $0x8] sm:$0xf]
      %v3773 = vld [vmem:[%s57 + $0xc] sm:$0xf]
      %v3774 = vld [vmem:[%s59] sm:$0x1]
      %v3776 = vperm.slane %v3774, 0
      %v3782 = vunpack.c.l.b16 %v3770
      %v3783 = vunpack.c.l.b16 %v3771
      %v3784 = vunpack.c.l.b16 %v3772
      %v3785 = vunpack.c.l.b16 %v3773
      %v3786 = vpack.c.b16 %v3783, %v3782
      %v3787 = vpack.c.b16 %v3785, %v3784
      %v3791 = vsel %vm1145, %v3769, 0
      %3793 = vmatpush.bf16.msra.mxu0 0
      %3794 = vmatpush.bf16.msra.mxu0 0
      %3795 = vmatpush.bf16.msra.mxu0 0
      %3796 = vmatpush.bf16.msra.mxu0 0
      %3797 = vmatpush.bf16.msra.mxu0 0
      %3798 = vmatpush.bf16.msra.mxu0 0
      %3799 = vmatpush.bf16.msra.mxu0 %v3787
      %3800 = vmatpush.bf16.msra.mxu0 %v3786
      %3801 = vmatmul.bf16.gmra.mxu0 %v3791
      %v3802 = vpop.f32.mrf.mxu0
      %v3803 = vadd.f32 %v3776, %v3802
      %v3804 = vpop.f32.mrf.mxu0
      %3805 = vdwg.mxu0
      %v3806 = vmax.f32 %v3803, 0.0
      %v3807 = vpack.c.bf16 %v3806, %v3806
      %v3808 = vld [vmem:[%s61] sm:$0xf]
      %v3809 = vld [vmem:[%s61 + $0x4] sm:$0xf]
      %v3810 = vld [vmem:[%s61 + $0x8] sm:$0xf]
      %v3811 = vld [vmem:[%s61 + $0xc] sm:$0xf]
      %v3812 = vld [vmem:[%s61 + $0x10] sm:$0xf]
      %v3813 = vld [vmem:[%s61 + $0x14] sm:$0xf]
      %v3814 = vld [vmem:[%s61 + $0x18] sm:$0xf]
      %v3815 = vld [vmem:[%s61 + $0x1c] sm:$0xf]
      %v3816 = vld [vmem:[%s63] sm:$0x1]
      %v3818 = vperm.slane %v3816, 0
      %v3828 = vunpack.c.l.b16 %v3808
      %v3829 = vunpack.c.l.b16 %v3809
      %v3830 = vunpack.c.l.b16 %v3810
      %v3831 = vunpack.c.l.b16 %v3811
      %v3832 = vunpack.c.l.b16 %v3812
      %v3833 = vunpack.c.l.b16 %v3813
      %v3834 = vunpack.c.l.b16 %v3814
      %v3835 = vunpack.c.l.b16 %v3815
      %v3836 = vpack.c.b16 %v3829, %v3828
      %v3837 = vpack.c.b16 %v3831, %v3830
      %v3838 = vpack.c.b16 %v3833, %v3832
      %v3839 = vpack.c.b16 %v3835, %v3834
      %v3845 = vsel %vm2073, %v3807, 0
      %3847 = vmatpush.bf16.msra.mxu0 0
      %3848 = vmatpush.bf16.msra.mxu0 0
      %3849 = vmatpush.bf16.msra.mxu0 0
      %3850 = vmatpush.bf16.msra.mxu0 0
      %3851 = vmatpush.bf16.msra.mxu0 %v3839
      %3852 = vmatpush.bf16.msra.mxu0 %v3838
      %3853 = vmatpush.bf16.msra.mxu0 %v3837
      %3854 = vmatpush.bf16.msra.mxu0 %v3836
      %3855 = vmatmul.bf16.gmra.mxu0 %v3845
      %v3856 = vpop.f32.mrf.mxu0
      %v3857 = vadd.f32 %v3818, %v3856
      %v3858 = vpop.f32.mrf.mxu0
      %3859 = vdwg.mxu0
      %v3860 = vadd.f32 %v3768, %v3857
      %v3861 = vld [vmem:[%s65] sm:$0x3]
      %v3862 = vsel %vm1145, %v3860, 0.0
      %3863 = vadd.xlane.f32.xlu0 %v3862
      %v3864 = vpop.xlane.xlu0 %3863
      %v3865 = vmul.f32 %v3864, %v1155
      %v3866 = vsub.f32 %v3860, %v3865
      %v3867 = vmul.f32 %v3866, %v3866
      %v3868 = vsel %vm1145, %v3867, 0.0
      %3869 = vadd.xlane.f32.xlu0 %v3868
      %v3870 = vpop.xlane.xlu0 %3869
      %v3871 = vmul.f32 %v3870, %v1155
      %v3872 = vadd.f32 %v3871, 1e-05
      %v3873 = vrsqrt.pop %v3872
      %v3874 = vmul.f32 %v3873, %v3872
      %v3875 = vmul.f32 %v3874, %v3873
      %v3876 = vmul.f32 0.5, %v3875
      %v3877 = vsub.f32 1.5, %v3876
      %v3878 = vmul.f32 %v3873, %v3877
      %vm3879 = vweird.f32 %v3872
      %vm3880 = vweird.f32 %v3873
      %vm3881 = vmor %vm3879, %vm3880
      %v3882 = vsel %vm3881, %v3873, %v3878
      %v3883 = vmul.f32 %v3866, %v3882
      %v3884 = vperm.slane %v3861, 0
      %v3885 = vmul.f32 %v3883, %v3884
      %v3886 = vperm.slane %v3861, 1
      %v3887 = vadd.f32 %v3885, %v3886
      %v3888 = vpack.c.bf16 %v3887, %v3887
      %v3889 = vld [vmem:[%s67] sm:$0xf]
      %v3890 = vld [vmem:[%s67 + $0x4] sm:$0xf]
      %v3891 = vld [vmem:[%s67 + $0x8] sm:$0xf]
      %v3892 = vld [vmem:[%s67 + $0xc] sm:$0xf]
      %v3893 = vld [vmem:[%s69] sm:$0x1]
      %v3895 = vperm.slane %v3893, 0
      %v3901 = vunpack.c.l.b16 %v3889
      %v3902 = vunpack.c.l.b16 %v3890
      %v3903 = vunpack.c.l.b16 %v3891
      %v3904 = vunpack.c.l.b16 %v3892
      %v3905 = vpack.c.b16 %v3902, %v3901
      %v3906 = vpack.c.b16 %v3904, %v3903
      %v3910 = vsel %vm1145, %v3888, 0
      %3912 = vmatpush.bf16.msra.mxu0 0
      %3913 = vmatpush.bf16.msra.mxu0 0
      %3914 = vmatpush.bf16.msra.mxu0 0
      %3915 = vmatpush.bf16.msra.mxu0 0
      %3916 = vmatpush.bf16.msra.mxu0 0
      %3917 = vmatpush.bf16.msra.mxu0 0
      %3918 = vmatpush.bf16.msra.mxu0 %v3906
      %3919 = vmatpush.bf16.msra.mxu0 %v3905
      %3920 = vmatmul.bf16.gmra.mxu0 %v3910
      %v3921 = vpop.f32.mrf.mxu0
      %v3922 = vadd.f32 %v3895, %v3921
      %v3923 = vpop.f32.mrf.mxu0
      %3924 = vdwg.mxu0
      %v3925 = vsel %vm2073, %v3922, -inf
      %3926 = vmax.xlane.f32.xlu0 %v3925
      %v3927 = vpop.xlane.xlu0 %3926
      %v3928 = vsub.f32 %v3922, %v3927
      %v3929 = vmul.f32 %v3928, 1.442695
      %v3930 = vpow.pop %v3929
      %v3931 = vsel %vm2073, %v3930, 0.0
      %3932 = vadd.xlane.f32.xlu0 %v3931
      %v3933 = vpop.xlane.xlu0 %3932
      %v3934 = vlog2.pop %v3933
      %v3935 = vmul.f32 %v3934, 0.6931472
      %v3936 = vadd.f32 %v3935, %v3927
      %v3937 = vld [vmem:[%s1122] sm:$0xff]
      %3938 = vset.pattern.permute.xlu0 0
      %3939 = vperm.xlu0 %3938, %v3937
      %v3940 = vpop.permute.xlu0 %3939
      %vm3941 = vcmp.eq.s32.totalorder %v1136, %v3940
      %v3942 = vsel %vm3941, %v3922, 0.0
      %v3943 = vsel %vm2073, %v3942, 0.0
      %3944 = vadd.xlane.f32.xlu0 %v3943
      %v3945 = vpop.xlane.xlu0 %3944
      %v3946 = vsub.f32 %v3936, %v3945
      %v3947 = vrot.slane %v3946, 4
      %v3948 = vadd.f32 %v3946, %v3947
      %v3949 = vrot.slane %v3948, 2
      %v3950 = vadd.f32 %v3948, %v3949
      %v3951 = vrot.slane %v3950, 1
      %v3952 = vadd.f32 %v3950, %v3951
      %vm3953 = vcmask 0
      %3954 = vst.msk [vmem:[%s1125] sm:$0x1] %vm3953, %v3952
      %p3955 = scmp.lt.s32.totalorder %s82, 1
      %s3956 = scalar_select %p3955, %s82, 1
      %s3957 = scalar_lea.vmem %s71, %s3956
      // Predicated region
      $region161: #{seq2seq_forward.1} parent=159 // pred_check
        %p3958 = pneg %p860
      $region162: #{seq2seq_forward.1} parent=159 // pred_check_branch
        %3960 = sbr.rel (%p3958) target = $region164
      $region163: #{seq2seq_forward.1} parent=159 // pred_region
        _
      $region164: #{seq2seq_forward.1} parent=159 // pred_fallthru
        _
    $region160: #{seq2seq_forward.1} parent=5 // pred_fallthru
      _
    %p3961 = scmp.le.s32.totalorder 2, %s77
    // Predicated region
    $region165: #{seq2seq_forward.1} parent=5 // pred_check
      %p3962 = pneg %p3961
    $region166: #{seq2seq_forward.1} parent=5 // pred_check_branch
      %3964 = sbr.rel (%p3962) target = $region168
    $region167: #{seq2seq_forward.1} parent=5 // pred_region
      %s3965 = ssub.s32 %s77, 2
      // Predicated region
      $region169: #{seq2seq_forward.1} parent=167 // pred_check
        %p3966 = pneg %p866
      $region170: #{seq2seq_forward.1} parent=167 // pred_check_branch
        %3968 = sbr.rel (%p3966) target = $region172
      $region171: #{seq2seq_forward.1} parent=167 // pred_region
        %p3969 = scmp.lt.s32.totalorder %s83, 1
        %s3970 = scalar_select %p3969, %s83, 1
        %s3971 = scalar_lea.vmem %s71, %s3970
      $region172: #{seq2seq_forward.1} parent=167 // pred_fallthru
        _
    $region168: #{seq2seq_forward.1} parent=5 // pred_fallthru
      _
  $region6: #{seq2seq_forward.1} parent=0 // loop_footer
    %s81 = sadd.s32 1, %s77
  $region7: #{seq2seq_forward.1} parent=0 // loop_footer_branch
    %76 = sbr.rel target = $region3
  $region8: #{seq2seq_forward.1} parent=0 // loop_exit
    _

</llo_original>
